<compile_context>
chip_gen: v6e
topology: v6e:2x2x1
jax: 0.10.0
libtpu: 0.0.40
codegen_flags: <defaults>
</compile_context>

<pallas_src>
import functools
import math

import jax
import jax.numpy as jnp
from jax.experimental import pallas as pl
from jax.experimental.pallas import tpu as pltpu

EPS = 1e-6


# --------------------------- layer norm helpers ---------------------------- #

def _layer_norm_ref(x, a, b):
    # mu = mean(-1); sigma = std(-1) unbiased (/(D-1)); y = a*(x-mu)/(sigma+eps)+b
    d = x.shape[-1]
    mu = jnp.mean(x, axis=-1, keepdims=True)
    var = jnp.sum((x - mu) ** 2, axis=-1, keepdims=True) / (d - 1)
    sigma = jnp.sqrt(var)
    return a * (x - mu) / (sigma + EPS) + b


def _layer_norm_k(x, a, b):
    # Kernel version: same math, divide replaced by EUP reciprocal.
    d = x.shape[-1]
    mu = jnp.mean(x, axis=-1, keepdims=True)
    xc = x - mu
    var = jnp.sum(xc * xc, axis=-1, keepdims=True) * (1.0 / (d - 1))
    inv = pl.reciprocal(jnp.sqrt(var) + EPS, approx=True)
    return a * xc * inv + b


# ------------------------------- kernel ------------------------------------ #

def encoder_stack_kernel(x_ref, mask_ref,
                         ln1_a, ln1_b, wq, bq, wk, bk, wv, bv, wo, bo,
                         ln2_a, ln2_b, w1, b1, w2, b2,
                         fin_a, fin_b,
                         out_ref,
                         x_scr, attn_scr,
                         *, num_heads, batch, seq):
    """Grid axis 0 = layer index. Activations live in x_scr across layers."""
    layer = pl.program_id(0)
    n_layers = pl.num_programs(0)

    @pl.when(layer == 0)
    def _():
        x_scr[...] = x_ref[...].astype(jnp.float32)   # (B*S, D)

    x = x_scr[...]                                    # (B*S, D) f32
    D = x.shape[-1]
    dk = D // num_heads
    inv_sqrt_dk = 1.0 / math.sqrt(dk)

    # ---- sublayer 1: x = x + MultiHeadAttention(LN(x), mask) -------------- #
    xn = _layer_norm_k(x, ln1_a[0], ln1_b[0]).astype(jnp.bfloat16)
    q = jnp.dot(xn, wq[0], preferred_element_type=jnp.float32) + bq[0]
    k = jnp.dot(xn, wk[0], preferred_element_type=jnp.float32) + bk[0]
    v = jnp.dot(xn, wv[0], preferred_element_type=jnp.float32) + bv[0]

    for b in range(batch):                # static unrolled; B, S, H are tiny here
        rows = slice(b * seq, (b + 1) * seq)
        keep = mask_ref[b] != 0.0         # (1, S) — hoisted out of the head loop
        qb = q[rows].astype(jnp.bfloat16)
        kb = k[rows].astype(jnp.bfloat16)
        vb = v[rows].astype(jnp.bfloat16)
        for h in range(num_heads):
            cols = slice(h * dk, (h + 1) * dk)
            sc = jnp.dot(qb[:, cols], kb[:, cols].T,
                         preferred_element_type=jnp.float32) * inv_sqrt_dk
            sc = jnp.where(keep, sc, -1e9)            # masked_fill(mask==0, -1e9)
            sc = sc - jnp.max(sc, axis=-1, keepdims=True)
            e = jnp.exp(sc)
            p = e * pl.reciprocal(jnp.sum(e, axis=-1, keepdims=True), approx=True)
            oh = jnp.dot(p.astype(jnp.bfloat16), vb[:, cols],
                         preferred_element_type=jnp.float32)
            attn_scr[rows, cols] = oh                  # concat heads into (B*S, D)

    # single full-width output projection (instead of H tiny per-head matmuls)
    attn = jnp.dot(attn_scr[...].astype(jnp.bfloat16), wo[0],
                   preferred_element_type=jnp.float32) + bo[0]
    x = x + attn
    # TODO(synk): dropout inside the sublayers is eval-mode identity here.

    # ---- sublayer 2: x = x + FFN(LN(x)) ------------------------------------ #
    xn2 = _layer_norm_k(x, ln2_a[0], ln2_b[0]).astype(jnp.bfloat16)
    h1 = jnp.maximum(
        jnp.dot(xn2, w1[0], preferred_element_type=jnp.float32) + b1[0], 0.0)
    ff = jnp.dot(h1.astype(jnp.bfloat16), w2[0],
                 preferred_element_type=jnp.float32) + b2[0]
    x = x + ff

    x_scr[...] = x                                    # carry to next layer

    # ---- fused final LayerNorm on the last layer --------------------------- #
    @pl.when(layer == n_layers - 1)
    def _():
        out_ref[...] = _layer_norm_k(x, fin_a[...], fin_b[...]).astype(out_ref.dtype)


# ------------------------------- wrapper ------------------------------------ #

def encoder_forward(x, mask, layer_params, final_a, final_b, num_heads):
    B, S, D = x.shape
    L = len(layer_params)
    d_ff = layer_params[0]["w1"].shape[1]

    def stack(name, dtype=None):
        arr = jnp.stack([p[name] for p in layer_params], axis=0)
        return arr.astype(dtype) if dtype is not None else arr

    # weights in bf16 (halved HBM traffic / VMEM footprint); norms & biases in f32
    ln1_a, ln1_b = stack("ln1_a"), stack("ln1_b")                 # (L, 1, D)
    wq_s, wk_s = stack("wq", jnp.bfloat16), stack("wk", jnp.bfloat16)   # (L, D, D)
    wv_s, wo_s = stack("wv", jnp.bfloat16), stack("wo", jnp.bfloat16)
    bq_s, bk_s, bv_s, bo_s = stack("bq"), stack("bk"), stack("bv"), stack("bo")
    ln2_a, ln2_b = stack("ln2_a"), stack("ln2_b")
    w1_s, b1_s = stack("w1", jnp.bfloat16), stack("b1")            # (L, D, d_ff)
    w2_s, b2_s = stack("w2", jnp.bfloat16), stack("b2")            # (L, d_ff, D)

    x2 = x.reshape(B * S, D)   # lane/sublane-dense activation slab

    inv = lambda l: (0, 0)                 # grid-invariant 2-D blocks
    inv3 = lambda l: (0, 0, 0)             # grid-invariant 3-D blocks
    per_layer = lambda l: (l, 0, 0)        # stream layer l's parameters

    in_specs = [
        pl.BlockSpec((B * S, D), inv),          # x (flattened)
        pl.BlockSpec((B, 1, S), inv3),          # mask
        pl.BlockSpec((1, 1, D), per_layer), pl.BlockSpec((1, 1, D), per_layer),  # ln1
        pl.BlockSpec((1, D, D), per_layer), pl.BlockSpec((1, 1, D), per_layer),  # Wq,bq
        pl.BlockSpec((1, D, D), per_layer), pl.BlockSpec((1, 1, D), per_layer),  # Wk,bk
        pl.BlockSpec((1, D, D), per_layer), pl.BlockSpec((1, 1, D), per_layer),  # Wv,bv
        pl.BlockSpec((1, D, D), per_layer), pl.BlockSpec((1, 1, D), per_layer),  # Wo,bo
        pl.BlockSpec((1, 1, D), per_layer), pl.BlockSpec((1, 1, D), per_layer),  # ln2
        pl.BlockSpec((1, D, d_ff), per_layer), pl.BlockSpec((1, 1, d_ff), per_layer),  # W1,b1
        pl.BlockSpec((1, d_ff, D), per_layer), pl.BlockSpec((1, 1, D), per_layer),     # W2,b2
        pl.BlockSpec((1, D), inv), pl.BlockSpec((1, D), inv),       # final norm a, b
    ]

    grid_spec = pltpu.PrefetchScalarGridSpec(
        num_scalar_prefetch=0,
        grid=(L,),
        in_specs=in_specs,
        out_specs=pl.BlockSpec((B * S, D), inv),
        scratch_shapes=[
            pltpu.VMEM((B * S, D), jnp.float32),   # resident activations
            pltpu.VMEM((B * S, D), jnp.float32),   # concatenated head outputs
        ],
    )

    out2 = pl.pallas_call(
        functools.partial(encoder_stack_kernel,
                          num_heads=num_heads, batch=B, seq=S),
        out_shape=jax.ShapeDtypeStruct((B * S, D), x.dtype),
        grid_spec=grid_spec,
        compiler_params=pltpu.CompilerParams(
            dimension_semantics=("arbitrary",),        # layers are sequential
            vmem_limit_bytes=32 * 1024 * 1024,
        ),
    )(x2, mask,
      ln1_a, ln1_b, wq_s, bq_s, wk_s, bk_s, wv_s, bv_s, wo_s, bo_s,
      ln2_a, ln2_b, w1_s, b1_s, w2_s, b2_s,
      final_a, final_b)

    return out2.reshape(B, S, D)


# ----------------------- pure-JAX reference (sanity) ----------------------- #

def encoder_reference(x, mask, layer_params, final_a, final_b, num_heads):
    B, S, D = x.shape
    m = mask  # (B, 1, S)
    for p in layer_params:
        xn = _layer_norm_ref(x, p["ln1_a"], p["ln1_b"])
        q = xn @ p["wq"] + p["bq"]
        k = xn @ p["wk"] + p["bk"]
        v = xn @ p["wv"] + p["bv"]
        dk = D // num_heads
        acc = jnp.zeros_like(x)
        for h in range(num_heads):
            sl = slice(h * dk, (h + 1) * dk)
            s = jnp.einsum("bqd,bkd->bqk", q[:, :, sl], k[:, :, sl]) / math.sqrt(dk)
            s = jnp.where(m == 0.0, -1e9, s)
            pm = jax.nn.softmax(s, axis=-1)
            oh = jnp.einsum("bqk,bkd->bqd", pm, v[:, :, sl])
            acc = acc + oh @ p["wo"][sl, :]
        x = x + acc + p["bo"]
        xn2 = _layer_norm_ref(x, p["ln2_a"], p["ln2_b"])
        x = x + jnp.maximum(xn2 @ p["w1"] + p["b1"], 0.0) @ p["w2"] + p["b2"]
    return _layer_norm_ref(x, final_a, final_b)


# --------------------------------- main ------------------------------------ #

def init_layer_params(key, D, d_ff):
    ks = jax.random.split(key, 6)
    scale = 0.02
    return {
        "ln1_a": jnp.ones((1, D), jnp.float32),
        "ln1_b": jnp.zeros((1, D), jnp.float32),
        "wq": scale * jax.random.normal(ks[0], (D, D), jnp.float32),
        "bq": jnp.zeros((1, D), jnp.float32),
        "wk": scale * jax.random.normal(ks[1], (D, D), jnp.float32),
        "bk": jnp.zeros((1, D), jnp.float32),
        "wv": scale * jax.random.normal(ks[2], (D, D), jnp.float32),
        "bv": jnp.zeros((1, D), jnp.float32),
        "wo": scale * jax.random.normal(ks[3], (D, D), jnp.float32),
        "bo": jnp.zeros((1, D), jnp.float32),
        "ln2_a": jnp.ones((1, D), jnp.float32),
        "ln2_b": jnp.zeros((1, D), jnp.float32),
        "w1": scale * jax.random.normal(ks[4], (D, d_ff), jnp.float32),
        "b1": jnp.zeros((1, d_ff), jnp.float32),
        "w2": scale * jax.random.normal(ks[5], (d_ff, D), jnp.float32),
        "b2": jnp.zeros((1, D), jnp.float32),
    }


if __name__ == "__main__":
    B, S, D, H, D_FF, N_LAYERS = 2, 8, 32, 4, 64, 2

    key = jax.random.PRNGKey(0)
    kx, *lkeys = jax.random.split(key, 1 + N_LAYERS)
    x = jax.random.normal(kx, (B, S, D), jnp.float32)
    # src mask: last 2 positions of batch element 1 are padding
    mask = jnp.ones((B, 1, S), jnp.float32).at[1, 0, S - 2:].set(0.0)

    layer_params = [init_layer_params(k, D, D_FF) for k in lkeys]
    final_a = jnp.ones((1, D), jnp.float32)
    final_b = jnp.zeros((1, D), jnp.float32)

    out = encoder_forward(x, mask, layer_params, final_a, final_b, H)
    out = jax.block_until_ready(out)

    ref = encoder_reference(x, mask, layer_params, final_a, final_b, H)
    assert out.shape == (B, S, D)
    # f32 reference vs bf16-MXU / approx-reciprocal kernel
    assert jnp.allclose(out, ref, atol=2e-2, rtol=2e-2), "mismatch vs JAX reference"

    print("KERNEL_OK")
</pallas_src>

<mosaic_0001>
module attributes {stable_mosaic.version = 11 : i64} {
  func.func @encoder_stack_kernel(%arg0: i32, %arg1: memref<16x32xf32, #tpu.memory_space<vmem>>, %arg2: memref<2x1x8xf32, #tpu.memory_space<vmem>>, %arg3: memref<1x1x32xf32, #tpu.memory_space<vmem>>, %arg4: memref<1x1x32xf32, #tpu.memory_space<vmem>>, %arg5: memref<1x32x32xbf16, #tpu.memory_space<vmem>>, %arg6: memref<1x1x32xf32, #tpu.memory_space<vmem>>, %arg7: memref<1x32x32xbf16, #tpu.memory_space<vmem>>, %arg8: memref<1x1x32xf32, #tpu.memory_space<vmem>>, %arg9: memref<1x32x32xbf16, #tpu.memory_space<vmem>>, %arg10: memref<1x1x32xf32, #tpu.memory_space<vmem>>, %arg11: memref<1x32x32xbf16, #tpu.memory_space<vmem>>, %arg12: memref<1x1x32xf32, #tpu.memory_space<vmem>>, %arg13: memref<1x1x32xf32, #tpu.memory_space<vmem>>, %arg14: memref<1x1x32xf32, #tpu.memory_space<vmem>>, %arg15: memref<1x32x64xbf16, #tpu.memory_space<vmem>>, %arg16: memref<1x1x64xf32, #tpu.memory_space<vmem>>, %arg17: memref<1x64x32xbf16, #tpu.memory_space<vmem>>, %arg18: memref<1x1x32xf32, #tpu.memory_space<vmem>>, %arg19: memref<1x32xf32, #tpu.memory_space<vmem>>, %arg20: memref<1x32xf32, #tpu.memory_space<vmem>>, %arg21: memref<16x32xf32, #tpu.memory_space<vmem>>, %arg22: memref<16x32xf32, #tpu.memory_space<vmem>>, %arg23: memref<16x32xf32, #tpu.memory_space<vmem>>) attributes {dimension_semantics = [#tpu.dimension_semantics<arbitrary>], iteration_bounds = array<i64: 2>, scalar_prefetch = 0 : i64, scratch_operands = 2 : i64, tpu.core_type = #tpu.core_type<tc>, window_params = [{pipeline_mode = #tpu.pipeline_mode<synchronous>, transform_indices = @transform_0, window_bounds = array<i64: 16, 32>}, {pipeline_mode = #tpu.pipeline_mode<synchronous>, transform_indices = @transform_1, window_bounds = array<i64: 2, 1, 8>}, {transform_indices = @transform_2, window_bounds = array<i64: 1, 1, 32>}, {transform_indices = @transform_3, window_bounds = array<i64: 1, 1, 32>}, {transform_indices = @transform_4, window_bounds = array<i64: 1, 32, 32>}, {transform_indices = @transform_5, window_bounds = array<i64: 1, 1, 32>}, {transform_indices = @transform_6, window_bounds = array<i64: 1, 32, 32>}, {transform_indices = @transform_7, window_bounds = array<i64: 1, 1, 32>}, {transform_indices = @transform_8, window_bounds = array<i64: 1, 32, 32>}, {transform_indices = @transform_9, window_bounds = array<i64: 1, 1, 32>}, {transform_indices = @transform_10, window_bounds = array<i64: 1, 32, 32>}, {transform_indices = @transform_11, window_bounds = array<i64: 1, 1, 32>}, {transform_indices = @transform_12, window_bounds = array<i64: 1, 1, 32>}, {transform_indices = @transform_13, window_bounds = array<i64: 1, 1, 32>}, {transform_indices = @transform_14, window_bounds = array<i64: 1, 32, 64>}, {transform_indices = @transform_15, window_bounds = array<i64: 1, 1, 64>}, {transform_indices = @transform_16, window_bounds = array<i64: 1, 64, 32>}, {transform_indices = @transform_17, window_bounds = array<i64: 1, 1, 32>}, {pipeline_mode = #tpu.pipeline_mode<synchronous>, transform_indices = @transform_18, window_bounds = array<i64: 1, 32>}, {pipeline_mode = #tpu.pipeline_mode<synchronous>, transform_indices = @transform_19, window_bounds = array<i64: 1, 32>}, {pipeline_mode = #tpu.pipeline_mode<synchronous>, transform_indices = @transform_20, window_bounds = array<i64: 16, 32>}]} {
    %c0_i32 = arith.constant 0 : i32
    %0 = arith.cmpi eq, %arg0, %c0_i32 : i32
    %1 = arith.extui %0 : i1 to i32
    %c0_i32_0 = arith.constant 0 : i32
    %2 = arith.cmpi ne, %1, %c0_i32_0 : i32
    scf.if %2 {
      %c0_139 = arith.constant 0 : index
      %c0_140 = arith.constant 0 : index
      %321 = vector.load %arg1[%c0_139, %c0_140] : memref<16x32xf32, #tpu.memory_space<vmem>>, vector<16x32xf32>
      %c0_141 = arith.constant 0 : index
      %c0_142 = arith.constant 0 : index
      %322 = vector.load %arg22[%c0_141, %c0_142] : memref<16x32xf32, #tpu.memory_space<vmem>>, vector<16x32xf32>
      tpu.vector_store %arg22[%c0_141, %c0_142], %321 {strides = array<i32>} : memref<16x32xf32, #tpu.memory_space<vmem>>, vector<16x32xf32>,
    } else {
    }
    %c0 = arith.constant 0 : index
    %c0_1 = arith.constant 0 : index
    %3 = vector.load %arg22[%c0, %c0_1] : memref<16x32xf32, #tpu.memory_space<vmem>>, vector<16x32xf32>
    %c0_2 = arith.constant 0 : index
    %c0_3 = arith.constant 0 : index
    %c0_4 = arith.constant 0 : index
    %4 = vector.load %arg3[%c0_2, %c0_3, %c0_4] : memref<1x1x32xf32, #tpu.memory_space<vmem>>, vector<1x1x32xf32>
    %5 = vector.shape_cast %4 : vector<1x1x32xf32> to vector<1x32xf32>
    %c0_5 = arith.constant 0 : index
    %c0_6 = arith.constant 0 : index
    %c0_7 = arith.constant 0 : index
    %6 = vector.load %arg4[%c0_5, %c0_6, %c0_7] : memref<1x1x32xf32, #tpu.memory_space<vmem>>, vector<1x1x32xf32>
    %7 = vector.shape_cast %6 : vector<1x1x32xf32> to vector<1x32xf32>
    %cst = arith.constant dense<0.000000e+00> : vector<16xf32>
    %8 = vector.multi_reduction <add>, %3, %cst [1] : vector<16x32xf32> to vector<16xf32>
    %9 = vector.shape_cast %8 : vector<16xf32> to vector<16x1xf32>
    %cst_8 = arith.constant 3.200000e+01 : f32
    %10 = vector.broadcast %cst_8 : f32 to vector<16x1xf32>
    %11 = arith.divf %9, %10 : vector<16x1xf32>
    %12 = vector.broadcast %11 : vector<16x1xf32> to vector<16x32xf32>
    %13 = arith.subf %3, %12 : vector<16x32xf32>
    %14 = arith.mulf %13, %13 : vector<16x32xf32>
    %cst_9 = arith.constant dense<0.000000e+00> : vector<16xf32>
    %15 = vector.multi_reduction <add>, %14, %cst_9 [1] : vector<16x32xf32> to vector<16xf32>
    %16 = vector.shape_cast %15 : vector<16xf32> to vector<16x1xf32>
    %cst_10 = arith.constant 0.0322580636 : f32
    %17 = vector.broadcast %cst_10 : f32 to vector<16x1xf32>
    %18 = arith.mulf %16, %17 : vector<16x1xf32>
    %19 = math.sqrt %18 : vector<16x1xf32>
    %cst_11 = arith.constant 9.99999997E-7 : f32
    %20 = vector.broadcast %cst_11 : f32 to vector<16x1xf32>
    %21 = arith.addf %19, %20 : vector<16x1xf32>
    %22 = tpu.reciprocal %21 {approx = true} : vector<16x1xf32> -> vector<16x1xf32>
    %23 = vector.broadcast %5 : vector<1x32xf32> to vector<16x32xf32>
    %24 = arith.mulf %23, %13 : vector<16x32xf32>
    %25 = vector.broadcast %22 : vector<16x1xf32> to vector<16x32xf32>
    %26 = arith.mulf %24, %25 : vector<16x32xf32>
    %27 = vector.broadcast %7 : vector<1x32xf32> to vector<16x32xf32>
    %28 = arith.addf %26, %27 : vector<16x32xf32>
    %29 = arith.truncf %28 : vector<16x32xf32> to vector<16x32xbf16>
    %c0_12 = arith.constant 0 : index
    %c0_13 = arith.constant 0 : index
    %c0_14 = arith.constant 0 : index
    %30 = vector.load %arg5[%c0_12, %c0_13, %c0_14] : memref<1x32x32xbf16, #tpu.memory_space<vmem>>, vector<1x32x32xbf16>
    %31 = vector.shape_cast %30 : vector<1x32x32xbf16> to vector<32x32xbf16>
    %cst_15 = arith.constant dense<0.000000e+00> : vector<16x32xf32>
    %32 = tpu.matmul %29, %31, %cst_15 {dimension_numbers = #tpu.dot_dimension_numbers<[1], [0], [0], [1], [0, 0, 1, 1], [], []>} : vector<16x32xbf16>, vector<32x32xbf16>, vector<16x32xf32> -> vector<16x32xf32>
    %c0_16 = arith.constant 0 : index
    %c0_17 = arith.constant 0 : index
    %c0_18 = arith.constant 0 : index
    %33 = vector.load %arg6[%c0_16, %c0_17, %c0_18] : memref<1x1x32xf32, #tpu.memory_space<vmem>>, vector<1x1x32xf32>
    %34 = vector.shape_cast %33 : vector<1x1x32xf32> to vector<1x32xf32>
    %35 = vector.broadcast %34 : vector<1x32xf32> to vector<16x32xf32>
    %36 = arith.addf %32, %35 : vector<16x32xf32>
    %c0_19 = arith.constant 0 : index
    %c0_20 = arith.constant 0 : index
    %c0_21 = arith.constant 0 : index
    %37 = vector.load %arg7[%c0_19, %c0_20, %c0_21] : memref<1x32x32xbf16, #tpu.memory_space<vmem>>, vector<1x32x32xbf16>
    %38 = vector.shape_cast %37 : vector<1x32x32xbf16> to vector<32x32xbf16>
    %cst_22 = arith.constant dense<0.000000e+00> : vector<16x32xf32>
    %39 = tpu.matmul %29, %38, %cst_22 {dimension_numbers = #tpu.dot_dimension_numbers<[1], [0], [0], [1], [0, 0, 1, 1], [], []>} : vector<16x32xbf16>, vector<32x32xbf16>, vector<16x32xf32> -> vector<16x32xf32>
    %c0_23 = arith.constant 0 : index
    %c0_24 = arith.constant 0 : index
    %c0_25 = arith.constant 0 : index
    %40 = vector.load %arg8[%c0_23, %c0_24, %c0_25] : memref<1x1x32xf32, #tpu.memory_space<vmem>>, vector<1x1x32xf32>
    %41 = vector.shape_cast %40 : vector<1x1x32xf32> to vector<1x32xf32>
    %42 = vector.broadcast %41 : vector<1x32xf32> to vector<16x32xf32>
    %43 = arith.addf %39, %42 : vector<16x32xf32>
    %c0_26 = arith.constant 0 : index
    %c0_27 = arith.constant 0 : index
    %c0_28 = arith.constant 0 : index
    %44 = vector.load %arg9[%c0_26, %c0_27, %c0_28] : memref<1x32x32xbf16, #tpu.memory_space<vmem>>, vector<1x32x32xbf16>
    %45 = vector.shape_cast %44 : vector<1x32x32xbf16> to vector<32x32xbf16>
    %cst_29 = arith.constant dense<0.000000e+00> : vector<16x32xf32>
    %46 = tpu.matmul %29, %45, %cst_29 {dimension_numbers = #tpu.dot_dimension_numbers<[1], [0], [0], [1], [0, 0, 1, 1], [], []>} : vector<16x32xbf16>, vector<32x32xbf16>, vector<16x32xf32> -> vector<16x32xf32>
    %c0_30 = arith.constant 0 : index
    %c0_31 = arith.constant 0 : index
    %c0_32 = arith.constant 0 : index
    %47 = vector.load %arg10[%c0_30, %c0_31, %c0_32] : memref<1x1x32xf32, #tpu.memory_space<vmem>>, vector<1x1x32xf32>
    %48 = vector.shape_cast %47 : vector<1x1x32xf32> to vector<1x32xf32>
    %49 = vector.broadcast %48 : vector<1x32xf32> to vector<16x32xf32>
    %50 = arith.addf %46, %49 : vector<16x32xf32>
    %c0_33 = arith.constant 0 : index
    %c0_34 = arith.constant 0 : index
    %c0_35 = arith.constant 0 : index
    %51 = vector.load %arg2[%c0_33, %c0_34, %c0_35] : memref<2x1x8xf32, #tpu.memory_space<vmem>>, vector<1x1x8xf32>
    %52 = vector.shape_cast %51 : vector<1x1x8xf32> to vector<1x8xf32>
    %cst_36 = arith.constant 0.000000e+00 : f32
    %53 = vector.broadcast %cst_36 : f32 to vector<1x8xf32>
    %54 = arith.cmpf one, %52, %53 : vector<1x8xf32>
    %55 = vector.extract_strided_slice %36 {offsets = [0, 0], sizes = [8, 32], strides = [1, 1]} : vector<16x32xf32> to vector<8x32xf32>
    %56 = arith.truncf %55 : vector<8x32xf32> to vector<8x32xbf16>
    %57 = vector.extract_strided_slice %43 {offsets = [0, 0], sizes = [8, 32], strides = [1, 1]} : vector<16x32xf32> to vector<8x32xf32>
    %58 = arith.truncf %57 : vector<8x32xf32> to vector<8x32xbf16>
    %59 = vector.extract_strided_slice %50 {offsets = [0, 0], sizes = [8, 32], strides = [1, 1]} : vector<16x32xf32> to vector<8x32xf32>
    %60 = arith.truncf %59 : vector<8x32xf32> to vector<8x32xbf16>
    %61 = vector.extract_strided_slice %56 {offsets = [0, 0], sizes = [8, 8], strides = [1, 1]} : vector<8x32xbf16> to vector<8x8xbf16>
    %62 = vector.extract_strided_slice %58 {offsets = [0, 0], sizes = [8, 8], strides = [1, 1]} : vector<8x32xbf16> to vector<8x8xbf16>
    %63 = tpu.transpose %62, [1, 0] : vector<8x8xbf16> -> vector<8x8xbf16>
    %cst_37 = arith.constant dense<0.000000e+00> : vector<8x8xf32>
    %64 = tpu.matmul %61, %63, %cst_37 {dimension_numbers = #tpu.dot_dimension_numbers<[1], [0], [0], [1], [0, 0, 1, 1], [], []>} : vector<8x8xbf16>, vector<8x8xbf16>, vector<8x8xf32> -> vector<8x8xf32>
    %cst_38 = arith.constant 0.353553385 : f32
    %65 = vector.broadcast %cst_38 : f32 to vector<8x8xf32>
    %66 = arith.mulf %64, %65 : vector<8x8xf32>
    %cst_39 = arith.constant -1.000000e+09 : f32
    %67 = vector.shape_cast %54 : vector<1x8xi1> to vector<1x8xi1>
    %68 = vector.broadcast %67 : vector<1x8xi1> to vector<8x8xi1>
    %69 = vector.broadcast %cst_39 : f32 to vector<8x8xf32>
    %70 = arith.select %68, %66, %69 : vector<8x8xi1>, vector<8x8xf32>
    %cst_40 = arith.constant dense<0xFF800000> : vector<8xf32>
    %71 = vector.multi_reduction <maximumf>, %70, %cst_40 [1] : vector<8x8xf32> to vector<8xf32>
    %72 = vector.shape_cast %71 : vector<8xf32> to vector<8x1xf32>
    %73 = vector.broadcast %72 : vector<8x1xf32> to vector<8x8xf32>
    %74 = arith.subf %70, %73 : vector<8x8xf32>
    %75 = math.exp %74 : vector<8x8xf32>
    %cst_41 = arith.constant dense<0.000000e+00> : vector<8xf32>
    %76 = vector.multi_reduction <add>, %75, %cst_41 [1] : vector<8x8xf32> to vector<8xf32>
    %77 = vector.shape_cast %76 : vector<8xf32> to vector<8x1xf32>
    %78 = tpu.reciprocal %77 {approx = true} : vector<8x1xf32> -> vector<8x1xf32>
    %79 = vector.broadcast %78 : vector<8x1xf32> to vector<8x8xf32>
    %80 = arith.mulf %75, %79 : vector<8x8xf32>
    %81 = arith.truncf %80 : vector<8x8xf32> to vector<8x8xbf16>
    %82 = vector.extract_strided_slice %60 {offsets = [0, 0], sizes = [8, 8], strides = [1, 1]} : vector<8x32xbf16> to vector<8x8xbf16>
    %cst_42 = arith.constant dense<0.000000e+00> : vector<8x8xf32>
    %83 = tpu.matmul %81, %82, %cst_42 {dimension_numbers = #tpu.dot_dimension_numbers<[1], [0], [0], [1], [0, 0, 1, 1], [], []>} : vector<8x8xbf16>, vector<8x8xbf16>, vector<8x8xf32> -> vector<8x8xf32>
    %c0_43 = arith.constant 0 : index
    %c0_44 = arith.constant 0 : index
    %84 = vector.load %arg23[%c0_43, %c0_44] : memref<16x32xf32, #tpu.memory_space<vmem>>, vector<8x8xf32>
    tpu.vector_store %arg23[%c0_43, %c0_44], %83 {strides = array<i32>} : memref<16x32xf32, #tpu.memory_space<vmem>>, vector<8x8xf32>,
    %85 = vector.extract_strided_slice %56 {offsets = [0, 8], sizes = [8, 8], strides = [1, 1]} : vector<8x32xbf16> to vector<8x8xbf16>
    %86 = vector.extract_strided_slice %58 {offsets = [0, 8], sizes = [8, 8], strides = [1, 1]} : vector<8x32xbf16> to vector<8x8xbf16>
    %87 = tpu.transpose %86, [1, 0] : vector<8x8xbf16> -> vector<8x8xbf16>
    %cst_45 = arith.constant dense<0.000000e+00> : vector<8x8xf32>
    %88 = tpu.matmul %85, %87, %cst_45 {dimension_numbers = #tpu.dot_dimension_numbers<[1], [0], [0], [1], [0, 0, 1, 1], [], []>} : vector<8x8xbf16>, vector<8x8xbf16>, vector<8x8xf32> -> vector<8x8xf32>
    %cst_46 = arith.constant 0.353553385 : f32
    %89 = vector.broadcast %cst_46 : f32 to vector<8x8xf32>
    %90 = arith.mulf %88, %89 : vector<8x8xf32>
    %cst_47 = arith.constant -1.000000e+09 : f32
    %91 = vector.shape_cast %54 : vector<1x8xi1> to vector<1x8xi1>
    %92 = vector.broadcast %91 : vector<1x8xi1> to vector<8x8xi1>
    %93 = vector.broadcast %cst_47 : f32 to vector<8x8xf32>
    %94 = arith.select %92, %90, %93 : vector<8x8xi1>, vector<8x8xf32>
    %cst_48 = arith.constant dense<0xFF800000> : vector<8xf32>
    %95 = vector.multi_reduction <maximumf>, %94, %cst_48 [1] : vector<8x8xf32> to vector<8xf32>
    %96 = vector.shape_cast %95 : vector<8xf32> to vector<8x1xf32>
    %97 = vector.broadcast %96 : vector<8x1xf32> to vector<8x8xf32>
    %98 = arith.subf %94, %97 : vector<8x8xf32>
    %99 = math.exp %98 : vector<8x8xf32>
    %cst_49 = arith.constant dense<0.000000e+00> : vector<8xf32>
    %100 = vector.multi_reduction <add>, %99, %cst_49 [1] : vector<8x8xf32> to vector<8xf32>
    %101 = vector.shape_cast %100 : vector<8xf32> to vector<8x1xf32>
    %102 = tpu.reciprocal %101 {approx = true} : vector<8x1xf32> -> vector<8x1xf32>
    %103 = vector.broadcast %102 : vector<8x1xf32> to vector<8x8xf32>
    %104 = arith.mulf %99, %103 : vector<8x8xf32>
    %105 = arith.truncf %104 : vector<8x8xf32> to vector<8x8xbf16>
    %106 = vector.extract_strided_slice %60 {offsets = [0, 8], sizes = [8, 8], strides = [1, 1]} : vector<8x32xbf16> to vector<8x8xbf16>
    %cst_50 = arith.constant dense<0.000000e+00> : vector<8x8xf32>
    %107 = tpu.matmul %105, %106, %cst_50 {dimension_numbers = #tpu.dot_dimension_numbers<[1], [0], [0], [1], [0, 0, 1, 1], [], []>} : vector<8x8xbf16>, vector<8x8xbf16>, vector<8x8xf32> -> vector<8x8xf32>
    %c0_51 = arith.constant 0 : index
    %c8 = arith.constant 8 : index
    %108 = vector.load %arg23[%c0_51, %c8] : memref<16x32xf32, #tpu.memory_space<vmem>>, vector<8x8xf32>
    tpu.vector_store %arg23[%c0_51, %c8], %107 {strides = array<i32>} : memref<16x32xf32, #tpu.memory_space<vmem>>, vector<8x8xf32>,
    %109 = vector.extract_strided_slice %56 {offsets = [0, 16], sizes = [8, 8], strides = [1, 1]} : vector<8x32xbf16> to vector<8x8xbf16>
    %110 = vector.extract_strided_slice %58 {offsets = [0, 16], sizes = [8, 8], strides = [1, 1]} : vector<8x32xbf16> to vector<8x8xbf16>
    %111 = tpu.transpose %110, [1, 0] : vector<8x8xbf16> -> vector<8x8xbf16>
    %cst_52 = arith.constant dense<0.000000e+00> : vector<8x8xf32>
    %112 = tpu.matmul %109, %111, %cst_52 {dimension_numbers = #tpu.dot_dimension_numbers<[1], [0], [0], [1], [0, 0, 1, 1], [], []>} : vector<8x8xbf16>, vector<8x8xbf16>, vector<8x8xf32> -> vector<8x8xf32>
    %cst_53 = arith.constant 0.353553385 : f32
    %113 = vector.broadcast %cst_53 : f32 to vector<8x8xf32>
    %114 = arith.mulf %112, %113 : vector<8x8xf32>
    %cst_54 = arith.constant -1.000000e+09 : f32
    %115 = vector.shape_cast %54 : vector<1x8xi1> to vector<1x8xi1>
    %116 = vector.broadcast %115 : vector<1x8xi1> to vector<8x8xi1>
    %117 = vector.broadcast %cst_54 : f32 to vector<8x8xf32>
    %118 = arith.select %116, %114, %117 : vector<8x8xi1>, vector<8x8xf32>
    %cst_55 = arith.constant dense<0xFF800000> : vector<8xf32>
    %119 = vector.multi_reduction <maximumf>, %118, %cst_55 [1] : vector<8x8xf32> to vector<8xf32>
    %120 = vector.shape_cast %119 : vector<8xf32> to vector<8x1xf32>
    %121 = vector.broadcast %120 : vector<8x1xf32> to vector<8x8xf32>
    %122 = arith.subf %118, %121 : vector<8x8xf32>
    %123 = math.exp %122 : vector<8x8xf32>
    %cst_56 = arith.constant dense<0.000000e+00> : vector<8xf32>
    %124 = vector.multi_reduction <add>, %123, %cst_56 [1] : vector<8x8xf32> to vector<8xf32>
    %125 = vector.shape_cast %124 : vector<8xf32> to vector<8x1xf32>
    %126 = tpu.reciprocal %125 {approx = true} : vector<8x1xf32> -> vector<8x1xf32>
    %127 = vector.broadcast %126 : vector<8x1xf32> to vector<8x8xf32>
    %128 = arith.mulf %123, %127 : vector<8x8xf32>
    %129 = arith.truncf %128 : vector<8x8xf32> to vector<8x8xbf16>
    %130 = vector.extract_strided_slice %60 {offsets = [0, 16], sizes = [8, 8], strides = [1, 1]} : vector<8x32xbf16> to vector<8x8xbf16>
    %cst_57 = arith.constant dense<0.000000e+00> : vector<8x8xf32>
    %131 = tpu.matmul %129, %130, %cst_57 {dimension_numbers = #tpu.dot_dimension_numbers<[1], [0], [0], [1], [0, 0, 1, 1], [], []>} : vector<8x8xbf16>, vector<8x8xbf16>, vector<8x8xf32> -> vector<8x8xf32>
    %c0_58 = arith.constant 0 : index
    %c16 = arith.constant 16 : index
    %132 = vector.load %arg23[%c0_58, %c16] : memref<16x32xf32, #tpu.memory_space<vmem>>, vector<8x8xf32>
    tpu.vector_store %arg23[%c0_58, %c16], %131 {strides = array<i32>} : memref<16x32xf32, #tpu.memory_space<vmem>>, vector<8x8xf32>,
    %133 = vector.extract_strided_slice %56 {offsets = [0, 24], sizes = [8, 8], strides = [1, 1]} : vector<8x32xbf16> to vector<8x8xbf16>
    %134 = vector.extract_strided_slice %58 {offsets = [0, 24], sizes = [8, 8], strides = [1, 1]} : vector<8x32xbf16> to vector<8x8xbf16>
    %135 = tpu.transpose %134, [1, 0] : vector<8x8xbf16> -> vector<8x8xbf16>
    %cst_59 = arith.constant dense<0.000000e+00> : vector<8x8xf32>
    %136 = tpu.matmul %133, %135, %cst_59 {dimension_numbers = #tpu.dot_dimension_numbers<[1], [0], [0], [1], [0, 0, 1, 1], [], []>} : vector<8x8xbf16>, vector<8x8xbf16>, vector<8x8xf32> -> vector<8x8xf32>
    %cst_60 = arith.constant 0.353553385 : f32
    %137 = vector.broadcast %cst_60 : f32 to vector<8x8xf32>
    %138 = arith.mulf %136, %137 : vector<8x8xf32>
    %cst_61 = arith.constant -1.000000e+09 : f32
    %139 = vector.shape_cast %54 : vector<1x8xi1> to vector<1x8xi1>
    %140 = vector.broadcast %139 : vector<1x8xi1> to vector<8x8xi1>
    %141 = vector.broadcast %cst_61 : f32 to vector<8x8xf32>
    %142 = arith.select %140, %138, %141 : vector<8x8xi1>, vector<8x8xf32>
    %cst_62 = arith.constant dense<0xFF800000> : vector<8xf32>
    %143 = vector.multi_reduction <maximumf>, %142, %cst_62 [1] : vector<8x8xf32> to vector<8xf32>
    %144 = vector.shape_cast %143 : vector<8xf32> to vector<8x1xf32>
    %145 = vector.broadcast %144 : vector<8x1xf32> to vector<8x8xf32>
    %146 = arith.subf %142, %145 : vector<8x8xf32>
    %147 = math.exp %146 : vector<8x8xf32>
    %cst_63 = arith.constant dense<0.000000e+00> : vector<8xf32>
    %148 = vector.multi_reduction <add>, %147, %cst_63 [1] : vector<8x8xf32> to vector<8xf32>
    %149 = vector.shape_cast %148 : vector<8xf32> to vector<8x1xf32>
    %150 = tpu.reciprocal %149 {approx = true} : vector<8x1xf32> -> vector<8x1xf32>
    %151 = vector.broadcast %150 : vector<8x1xf32> to vector<8x8xf32>
    %152 = arith.mulf %147, %151 : vector<8x8xf32>
    %153 = arith.truncf %152 : vector<8x8xf32> to vector<8x8xbf16>
    %154 = vector.extract_strided_slice %60 {offsets = [0, 24], sizes = [8, 8], strides = [1, 1]} : vector<8x32xbf16> to vector<8x8xbf16>
    %cst_64 = arith.constant dense<0.000000e+00> : vector<8x8xf32>
    %155 = tpu.matmul %153, %154, %cst_64 {dimension_numbers = #tpu.dot_dimension_numbers<[1], [0], [0], [1], [0, 0, 1, 1], [], []>} : vector<8x8xbf16>, vector<8x8xbf16>, vector<8x8xf32> -> vector<8x8xf32>
    %c0_65 = arith.constant 0 : index
    %c24 = arith.constant 24 : index
    %156 = vector.load %arg23[%c0_65, %c24] : memref<16x32xf32, #tpu.memory_space<vmem>>, vector<8x8xf32>
    tpu.vector_store %arg23[%c0_65, %c24], %155 {strides = array<i32>} : memref<16x32xf32, #tpu.memory_space<vmem>>, vector<8x8xf32>,
    %c1 = arith.constant 1 : index
    %c0_66 = arith.constant 0 : index
    %c0_67 = arith.constant 0 : index
    %157 = vector.load %arg2[%c1, %c0_66, %c0_67] : memref<2x1x8xf32, #tpu.memory_space<vmem>>, vector<1x1x8xf32>
    %158 = vector.shape_cast %157 : vector<1x1x8xf32> to vector<1x8xf32>
    %cst_68 = arith.constant 0.000000e+00 : f32
    %159 = vector.broadcast %cst_68 : f32 to vector<1x8xf32>
    %160 = arith.cmpf one, %158, %159 : vector<1x8xf32>
    %161 = vector.extract_strided_slice %36 {offsets = [8, 0], sizes = [8, 32], strides = [1, 1]} : vector<16x32xf32> to vector<8x32xf32>
    %162 = arith.truncf %161 : vector<8x32xf32> to vector<8x32xbf16>
    %163 = vector.extract_strided_slice %43 {offsets = [8, 0], sizes = [8, 32], strides = [1, 1]} : vector<16x32xf32> to vector<8x32xf32>
    %164 = arith.truncf %163 : vector<8x32xf32> to vector<8x32xbf16>
    %165 = vector.extract_strided_slice %50 {offsets = [8, 0], sizes = [8, 32], strides = [1, 1]} : vector<16x32xf32> to vector<8x32xf32>
    %166 = arith.truncf %165 : vector<8x32xf32> to vector<8x32xbf16>
    %167 = vector.extract_strided_slice %162 {offsets = [0, 0], sizes = [8, 8], strides = [1, 1]} : vector<8x32xbf16> to vector<8x8xbf16>
    %168 = vector.extract_strided_slice %164 {offsets = [0, 0], sizes = [8, 8], strides = [1, 1]} : vector<8x32xbf16> to vector<8x8xbf16>
    %169 = tpu.transpose %168, [1, 0] : vector<8x8xbf16> -> vector<8x8xbf16>
    %cst_69 = arith.constant dense<0.000000e+00> : vector<8x8xf32>
    %170 = tpu.matmul %167, %169, %cst_69 {dimension_numbers = #tpu.dot_dimension_numbers<[1], [0], [0], [1], [0, 0, 1, 1], [], []>} : vector<8x8xbf16>, vector<8x8xbf16>, vector<8x8xf32> -> vector<8x8xf32>
    %cst_70 = arith.constant 0.353553385 : f32
    %171 = vector.broadcast %cst_70 : f32 to vector<8x8xf32>
    %172 = arith.mulf %170, %171 : vector<8x8xf32>
    %cst_71 = arith.constant -1.000000e+09 : f32
    %173 = vector.shape_cast %160 : vector<1x8xi1> to vector<1x8xi1>
    %174 = vector.broadcast %173 : vector<1x8xi1> to vector<8x8xi1>
    %175 = vector.broadcast %cst_71 : f32 to vector<8x8xf32>
    %176 = arith.select %174, %172, %175 : vector<8x8xi1>, vector<8x8xf32>
    %cst_72 = arith.constant dense<0xFF800000> : vector<8xf32>
    %177 = vector.multi_reduction <maximumf>, %176, %cst_72 [1] : vector<8x8xf32> to vector<8xf32>
    %178 = vector.shape_cast %177 : vector<8xf32> to vector<8x1xf32>
    %179 = vector.broadcast %178 : vector<8x1xf32> to vector<8x8xf32>
    %180 = arith.subf %176, %179 : vector<8x8xf32>
    %181 = math.exp %180 : vector<8x8xf32>
    %cst_73 = arith.constant dense<0.000000e+00> : vector<8xf32>
    %182 = vector.multi_reduction <add>, %181, %cst_73 [1] : vector<8x8xf32> to vector<8xf32>
    %183 = vector.shape_cast %182 : vector<8xf32> to vector<8x1xf32>
    %184 = tpu.reciprocal %183 {approx = true} : vector<8x1xf32> -> vector<8x1xf32>
    %185 = vector.broadcast %184 : vector<8x1xf32> to vector<8x8xf32>
    %186 = arith.mulf %181, %185 : vector<8x8xf32>
    %187 = arith.truncf %186 : vector<8x8xf32> to vector<8x8xbf16>
    %188 = vector.extract_strided_slice %166 {offsets = [0, 0], sizes = [8, 8], strides = [1, 1]} : vector<8x32xbf16> to vector<8x8xbf16>
    %cst_74 = arith.constant dense<0.000000e+00> : vector<8x8xf32>
    %189 = tpu.matmul %187, %188, %cst_74 {dimension_numbers = #tpu.dot_dimension_numbers<[1], [0], [0], [1], [0, 0, 1, 1], [], []>} : vector<8x8xbf16>, vector<8x8xbf16>, vector<8x8xf32> -> vector<8x8xf32>
    %c8_75 = arith.constant 8 : index
    %c0_76 = arith.constant 0 : index
    %190 = vector.load %arg23[%c8_75, %c0_76] : memref<16x32xf32, #tpu.memory_space<vmem>>, vector<8x8xf32>
    tpu.vector_store %arg23[%c8_75, %c0_76], %189 {strides = array<i32>} : memref<16x32xf32, #tpu.memory_space<vmem>>, vector<8x8xf32>,
    %191 = vector.extract_strided_slice %162 {offsets = [0, 8], sizes = [8, 8], strides = [1, 1]} : vector<8x32xbf16> to vector<8x8xbf16>
    %192 = vector.extract_strided_slice %164 {offsets = [0, 8], sizes = [8, 8], strides = [1, 1]} : vector<8x32xbf16> to vector<8x8xbf16>
    %193 = tpu.transpose %192, [1, 0] : vector<8x8xbf16> -> vector<8x8xbf16>
    %cst_77 = arith.constant dense<0.000000e+00> : vector<8x8xf32>
    %194 = tpu.matmul %191, %193, %cst_77 {dimension_numbers = #tpu.dot_dimension_numbers<[1], [0], [0], [1], [0, 0, 1, 1], [], []>} : vector<8x8xbf16>, vector<8x8xbf16>, vector<8x8xf32> -> vector<8x8xf32>
    %cst_78 = arith.constant 0.353553385 : f32
    %195 = vector.broadcast %cst_78 : f32 to vector<8x8xf32>
    %196 = arith.mulf %194, %195 : vector<8x8xf32>
    %cst_79 = arith.constant -1.000000e+09 : f32
    %197 = vector.shape_cast %160 : vector<1x8xi1> to vector<1x8xi1>
    %198 = vector.broadcast %197 : vector<1x8xi1> to vector<8x8xi1>
    %199 = vector.broadcast %cst_79 : f32 to vector<8x8xf32>
    %200 = arith.select %198, %196, %199 : vector<8x8xi1>, vector<8x8xf32>
    %cst_80 = arith.constant dense<0xFF800000> : vector<8xf32>
    %201 = vector.multi_reduction <maximumf>, %200, %cst_80 [1] : vector<8x8xf32> to vector<8xf32>
    %202 = vector.shape_cast %201 : vector<8xf32> to vector<8x1xf32>
    %203 = vector.broadcast %202 : vector<8x1xf32> to vector<8x8xf32>
    %204 = arith.subf %200, %203 : vector<8x8xf32>
    %205 = math.exp %204 : vector<8x8xf32>
    %cst_81 = arith.constant dense<0.000000e+00> : vector<8xf32>
    %206 = vector.multi_reduction <add>, %205, %cst_81 [1] : vector<8x8xf32> to vector<8xf32>
    %207 = vector.shape_cast %206 : vector<8xf32> to vector<8x1xf32>
    %208 = tpu.reciprocal %207 {approx = true} : vector<8x1xf32> -> vector<8x1xf32>
    %209 = vector.broadcast %208 : vector<8x1xf32> to vector<8x8xf32>
    %210 = arith.mulf %205, %209 : vector<8x8xf32>
    %211 = arith.truncf %210 : vector<8x8xf32> to vector<8x8xbf16>
    %212 = vector.extract_strided_slice %166 {offsets = [0, 8], sizes = [8, 8], strides = [1, 1]} : vector<8x32xbf16> to vector<8x8xbf16>
    %cst_82 = arith.constant dense<0.000000e+00> : vector<8x8xf32>
    %213 = tpu.matmul %211, %212, %cst_82 {dimension_numbers = #tpu.dot_dimension_numbers<[1], [0], [0], [1], [0, 0, 1, 1], [], []>} : vector<8x8xbf16>, vector<8x8xbf16>, vector<8x8xf32> -> vector<8x8xf32>
    %c8_83 = arith.constant 8 : index
    %c8_84 = arith.constant 8 : index
    %214 = vector.load %arg23[%c8_83, %c8_84] : memref<16x32xf32, #tpu.memory_space<vmem>>, vector<8x8xf32>
    tpu.vector_store %arg23[%c8_83, %c8_84], %213 {strides = array<i32>} : memref<16x32xf32, #tpu.memory_space<vmem>>, vector<8x8xf32>,
    %215 = vector.extract_strided_slice %162 {offsets = [0, 16], sizes = [8, 8], strides = [1, 1]} : vector<8x32xbf16> to vector<8x8xbf16>
    %216 = vector.extract_strided_slice %164 {offsets = [0, 16], sizes = [8, 8], strides = [1, 1]} : vector<8x32xbf16> to vector<8x8xbf16>
    %217 = tpu.transpose %216, [1, 0] : vector<8x8xbf16> -> vector<8x8xbf16>
    %cst_85 = arith.constant dense<0.000000e+00> : vector<8x8xf32>
    %218 = tpu.matmul %215, %217, %cst_85 {dimension_numbers = #tpu.dot_dimension_numbers<[1], [0], [0], [1], [0, 0, 1, 1], [], []>} : vector<8x8xbf16>, vector<8x8xbf16>, vector<8x8xf32> -> vector<8x8xf32>
    %cst_86 = arith.constant 0.353553385 : f32
    %219 = vector.broadcast %cst_86 : f32 to vector<8x8xf32>
    %220 = arith.mulf %218, %219 : vector<8x8xf32>
    %cst_87 = arith.constant -1.000000e+09 : f32
    %221 = vector.shape_cast %160 : vector<1x8xi1> to vector<1x8xi1>
    %222 = vector.broadcast %221 : vector<1x8xi1> to vector<8x8xi1>
    %223 = vector.broadcast %cst_87 : f32 to vector<8x8xf32>
    %224 = arith.select %222, %220, %223 : vector<8x8xi1>, vector<8x8xf32>
    %cst_88 = arith.constant dense<0xFF800000> : vector<8xf32>
    %225 = vector.multi_reduction <maximumf>, %224, %cst_88 [1] : vector<8x8xf32> to vector<8xf32>
    %226 = vector.shape_cast %225 : vector<8xf32> to vector<8x1xf32>
    %227 = vector.broadcast %226 : vector<8x1xf32> to vector<8x8xf32>
    %228 = arith.subf %224, %227 : vector<8x8xf32>
    %229 = math.exp %228 : vector<8x8xf32>
    %cst_89 = arith.constant dense<0.000000e+00> : vector<8xf32>
    %230 = vector.multi_reduction <add>, %229, %cst_89 [1] : vector<8x8xf32> to vector<8xf32>
    %231 = vector.shape_cast %230 : vector<8xf32> to vector<8x1xf32>
    %232 = tpu.reciprocal %231 {approx = true} : vector<8x1xf32> -> vector<8x1xf32>
    %233 = vector.broadcast %232 : vector<8x1xf32> to vector<8x8xf32>
    %234 = arith.mulf %229, %233 : vector<8x8xf32>
    %235 = arith.truncf %234 : vector<8x8xf32> to vector<8x8xbf16>
    %236 = vector.extract_strided_slice %166 {offsets = [0, 16], sizes = [8, 8], strides = [1, 1]} : vector<8x32xbf16> to vector<8x8xbf16>
    %cst_90 = arith.constant dense<0.000000e+00> : vector<8x8xf32>
    %237 = tpu.matmul %235, %236, %cst_90 {dimension_numbers = #tpu.dot_dimension_numbers<[1], [0], [0], [1], [0, 0, 1, 1], [], []>} : vector<8x8xbf16>, vector<8x8xbf16>, vector<8x8xf32> -> vector<8x8xf32>
    %c8_91 = arith.constant 8 : index
    %c16_92 = arith.constant 16 : index
    %238 = vector.load %arg23[%c8_91, %c16_92] : memref<16x32xf32, #tpu.memory_space<vmem>>, vector<8x8xf32>
    tpu.vector_store %arg23[%c8_91, %c16_92], %237 {strides = array<i32>} : memref<16x32xf32, #tpu.memory_space<vmem>>, vector<8x8xf32>,
    %239 = vector.extract_strided_slice %162 {offsets = [0, 24], sizes = [8, 8], strides = [1, 1]} : vector<8x32xbf16> to vector<8x8xbf16>
    %240 = vector.extract_strided_slice %164 {offsets = [0, 24], sizes = [8, 8], strides = [1, 1]} : vector<8x32xbf16> to vector<8x8xbf16>
    %241 = tpu.transpose %240, [1, 0] : vector<8x8xbf16> -> vector<8x8xbf16>
    %cst_93 = arith.constant dense<0.000000e+00> : vector<8x8xf32>
    %242 = tpu.matmul %239, %241, %cst_93 {dimension_numbers = #tpu.dot_dimension_numbers<[1], [0], [0], [1], [0, 0, 1, 1], [], []>} : vector<8x8xbf16>, vector<8x8xbf16>, vector<8x8xf32> -> vector<8x8xf32>
    %cst_94 = arith.constant 0.353553385 : f32
    %243 = vector.broadcast %cst_94 : f32 to vector<8x8xf32>
    %244 = arith.mulf %242, %243 : vector<8x8xf32>
    %cst_95 = arith.constant -1.000000e+09 : f32
    %245 = vector.shape_cast %160 : vector<1x8xi1> to vector<1x8xi1>
    %246 = vector.broadcast %245 : vector<1x8xi1> to vector<8x8xi1>
    %247 = vector.broadcast %cst_95 : f32 to vector<8x8xf32>
    %248 = arith.select %246, %244, %247 : vector<8x8xi1>, vector<8x8xf32>
    %cst_96 = arith.constant dense<0xFF800000> : vector<8xf32>
    %249 = vector.multi_reduction <maximumf>, %248, %cst_96 [1] : vector<8x8xf32> to vector<8xf32>
    %250 = vector.shape_cast %249 : vector<8xf32> to vector<8x1xf32>
    %251 = vector.broadcast %250 : vector<8x1xf32> to vector<8x8xf32>
    %252 = arith.subf %248, %251 : vector<8x8xf32>
    %253 = math.exp %252 : vector<8x8xf32>
    %cst_97 = arith.constant dense<0.000000e+00> : vector<8xf32>
    %254 = vector.multi_reduction <add>, %253, %cst_97 [1] : vector<8x8xf32> to vector<8xf32>
    %255 = vector.shape_cast %254 : vector<8xf32> to vector<8x1xf32>
    %256 = tpu.reciprocal %255 {approx = true} : vector<8x1xf32> -> vector<8x1xf32>
    %257 = vector.broadcast %256 : vector<8x1xf32> to vector<8x8xf32>
    %258 = arith.mulf %253, %257 : vector<8x8xf32>
    %259 = arith.truncf %258 : vector<8x8xf32> to vector<8x8xbf16>
    %260 = vector.extract_strided_slice %166 {offsets = [0, 24], sizes = [8, 8], strides = [1, 1]} : vector<8x32xbf16> to vector<8x8xbf16>
    %cst_98 = arith.constant dense<0.000000e+00> : vector<8x8xf32>
    %261 = tpu.matmul %259, %260, %cst_98 {dimension_numbers = #tpu.dot_dimension_numbers<[1], [0], [0], [1], [0, 0, 1, 1], [], []>} : vector<8x8xbf16>, vector<8x8xbf16>, vector<8x8xf32> -> vector<8x8xf32>
    %c8_99 = arith.constant 8 : index
    %c24_100 = arith.constant 24 : index
    %262 = vector.load %arg23[%c8_99, %c24_100] : memref<16x32xf32, #tpu.memory_space<vmem>>, vector<8x8xf32>
    tpu.vector_store %arg23[%c8_99, %c24_100], %261 {strides = array<i32>} : memref<16x32xf32, #tpu.memory_space<vmem>>, vector<8x8xf32>,
    %c0_101 = arith.constant 0 : index
    %c0_102 = arith.constant 0 : index
    %263 = vector.load %arg23[%c0_101, %c0_102] : memref<16x32xf32, #tpu.memory_space<vmem>>, vector<16x32xf32>
    %264 = arith.truncf %263 : vector<16x32xf32> to vector<16x32xbf16>
    %c0_103 = arith.constant 0 : index
    %c0_104 = arith.constant 0 : index
    %c0_105 = arith.constant 0 : index
    %265 = vector.load %arg11[%c0_103, %c0_104, %c0_105] : memref<1x32x32xbf16, #tpu.memory_space<vmem>>, vector<1x32x32xbf16>
    %266 = vector.shape_cast %265 : vector<1x32x32xbf16> to vector<32x32xbf16>
    %cst_106 = arith.constant dense<0.000000e+00> : vector<16x32xf32>
    %267 = tpu.matmul %264, %266, %cst_106 {dimension_numbers = #tpu.dot_dimension_numbers<[1], [0], [0], [1], [0, 0, 1, 1], [], []>} : vector<16x32xbf16>, vector<32x32xbf16>, vector<16x32xf32> -> vector<16x32xf32>
    %c0_107 = arith.constant 0 : index
    %c0_108 = arith.constant 0 : index
    %c0_109 = arith.constant 0 : index
    %268 = vector.load %arg12[%c0_107, %c0_108, %c0_109] : memref<1x1x32xf32, #tpu.memory_space<vmem>>, vector<1x1x32xf32>
    %269 = vector.shape_cast %268 : vector<1x1x32xf32> to vector<1x32xf32>
    %270 = vector.broadcast %269 : vector<1x32xf32> to vector<16x32xf32>
    %271 = arith.addf %267, %270 : vector<16x32xf32>
    %272 = arith.addf %3, %271 : vector<16x32xf32>
    %c0_110 = arith.constant 0 : index
    %c0_111 = arith.constant 0 : index
    %c0_112 = arith.constant 0 : index
    %273 = vector.load %arg13[%c0_110, %c0_111, %c0_112] : memref<1x1x32xf32, #tpu.memory_space<vmem>>, vector<1x1x32xf32>
    %274 = vector.shape_cast %273 : vector<1x1x32xf32> to vector<1x32xf32>
    %c0_113 = arith.constant 0 : index
    %c0_114 = arith.constant 0 : index
    %c0_115 = arith.constant 0 : index
    %275 = vector.load %arg14[%c0_113, %c0_114, %c0_115] : memref<1x1x32xf32, #tpu.memory_space<vmem>>, vector<1x1x32xf32>
    %276 = vector.shape_cast %275 : vector<1x1x32xf32> to vector<1x32xf32>
    %cst_116 = arith.constant dense<0.000000e+00> : vector<16xf32>
    %277 = vector.multi_reduction <add>, %272, %cst_116 [1] : vector<16x32xf32> to vector<16xf32>
    %278 = vector.shape_cast %277 : vector<16xf32> to vector<16x1xf32>
    %cst_117 = arith.constant 3.200000e+01 : f32
    %279 = vector.broadcast %cst_117 : f32 to vector<16x1xf32>
    %280 = arith.divf %278, %279 : vector<16x1xf32>
    %281 = vector.broadcast %280 : vector<16x1xf32> to vector<16x32xf32>
    %282 = arith.subf %272, %281 : vector<16x32xf32>
    %283 = arith.mulf %282, %282 : vector<16x32xf32>
    %cst_118 = arith.constant dense<0.000000e+00> : vector<16xf32>
    %284 = vector.multi_reduction <add>, %283, %cst_118 [1] : vector<16x32xf32> to vector<16xf32>
    %285 = vector.shape_cast %284 : vector<16xf32> to vector<16x1xf32>
    %cst_119 = arith.constant 0.0322580636 : f32
    %286 = vector.broadcast %cst_119 : f32 to vector<16x1xf32>
    %287 = arith.mulf %285, %286 : vector<16x1xf32>
    %288 = math.sqrt %287 : vector<16x1xf32>
    %cst_120 = arith.constant 9.99999997E-7 : f32
    %289 = vector.broadcast %cst_120 : f32 to vector<16x1xf32>
    %290 = arith.addf %288, %289 : vector<16x1xf32>
    %291 = tpu.reciprocal %290 {approx = true} : vector<16x1xf32> -> vector<16x1xf32>
    %292 = vector.broadcast %274 : vector<1x32xf32> to vector<16x32xf32>
    %293 = arith.mulf %292, %282 : vector<16x32xf32>
    %294 = vector.broadcast %291 : vector<16x1xf32> to vector<16x32xf32>
    %295 = arith.mulf %293, %294 : vector<16x32xf32>
    %296 = vector.broadcast %276 : vector<1x32xf32> to vector<16x32xf32>
    %297 = arith.addf %295, %296 : vector<16x32xf32>
    %298 = arith.truncf %297 : vector<16x32xf32> to vector<16x32xbf16>
    %c0_121 = arith.constant 0 : index
    %c0_122 = arith.constant 0 : index
    %c0_123 = arith.constant 0 : index
    %299 = vector.load %arg15[%c0_121, %c0_122, %c0_123] : memref<1x32x64xbf16, #tpu.memory_space<vmem>>, vector<1x32x64xbf16>
    %300 = vector.shape_cast %299 : vector<1x32x64xbf16> to vector<32x64xbf16>
    %cst_124 = arith.constant dense<0.000000e+00> : vector<16x64xf32>
    %301 = tpu.matmul %298, %300, %cst_124 {dimension_numbers = #tpu.dot_dimension_numbers<[1], [0], [0], [1], [0, 0, 1, 1], [], []>} : vector<16x32xbf16>, vector<32x64xbf16>, vector<16x64xf32> -> vector<16x64xf32>
    %c0_125 = arith.constant 0 : index
    %c0_126 = arith.constant 0 : index
    %c0_127 = arith.constant 0 : index
    %302 = vector.load %arg16[%c0_125, %c0_126, %c0_127] : memref<1x1x64xf32, #tpu.memory_space<vmem>>, vector<1x1x64xf32>
    %303 = vector.shape_cast %302 : vector<1x1x64xf32> to vector<1x64xf32>
    %304 = vector.broadcast %303 : vector<1x64xf32> to vector<16x64xf32>
    %305 = arith.addf %301, %304 : vector<16x64xf32>
    %cst_128 = arith.constant 0.000000e+00 : f32
    %306 = vector.broadcast %cst_128 : f32 to vector<16x64xf32>
    %307 = arith.maximumf %305, %306 : vector<16x64xf32>
    %308 = arith.truncf %307 : vector<16x64xf32> to vector<16x64xbf16>
    %c0_129 = arith.constant 0 : index
    %c0_130 = arith.constant 0 : index
    %c0_131 = arith.constant 0 : index
    %309 = vector.load %arg17[%c0_129, %c0_130, %c0_131] : memref<1x64x32xbf16, #tpu.memory_space<vmem>>, vector<1x64x32xbf16>
    %310 = vector.shape_cast %309 : vector<1x64x32xbf16> to vector<64x32xbf16>
    %cst_132 = arith.constant dense<0.000000e+00> : vector<16x32xf32>
    %311 = tpu.matmul %308, %310, %cst_132 {dimension_numbers = #tpu.dot_dimension_numbers<[1], [0], [0], [1], [0, 0, 1, 1], [], []>} : vector<16x64xbf16>, vector<64x32xbf16>, vector<16x32xf32> -> vector<16x32xf32>
    %c0_133 = arith.constant 0 : index
    %c0_134 = arith.constant 0 : index
    %c0_135 = arith.constant 0 : index
    %312 = vector.load %arg18[%c0_133, %c0_134, %c0_135] : memref<1x1x32xf32, #tpu.memory_space<vmem>>, vector<1x1x32xf32>
    %313 = vector.shape_cast %312 : vector<1x1x32xf32> to vector<1x32xf32>
    %314 = vector.broadcast %313 : vector<1x32xf32> to vector<16x32xf32>
    %315 = arith.addf %311, %314 : vector<16x32xf32>
    %316 = arith.addf %272, %315 : vector<16x32xf32>
    %c0_136 = arith.constant 0 : index
    %c0_137 = arith.constant 0 : index
    %317 = vector.load %arg22[%c0_136, %c0_137] : memref<16x32xf32, #tpu.memory_space<vmem>>, vector<16x32xf32>
    tpu.vector_store %arg22[%c0_136, %c0_137], %316 {strides = array<i32>} : memref<16x32xf32, #tpu.memory_space<vmem>>, vector<16x32xf32>,
    %c1_i32 = arith.constant 1 : i32
    %318 = arith.cmpi eq, %arg0, %c1_i32 : i32
    %319 = arith.extui %318 : i1 to i32
    %c0_i32_138 = arith.constant 0 : i32
    %320 = arith.cmpi ne, %319, %c0_i32_138 : i32
    scf.if %320 {
      %c0_139 = arith.constant 0 : index
      %c0_140 = arith.constant 0 : index
      %321 = vector.load %arg19[%c0_139, %c0_140] : memref<1x32xf32, #tpu.memory_space<vmem>>, vector<1x32xf32>
      %c0_141 = arith.constant 0 : index
      %c0_142 = arith.constant 0 : index
      %322 = vector.load %arg20[%c0_141, %c0_142] : memref<1x32xf32, #tpu.memory_space<vmem>>, vector<1x32xf32>
      %cst_143 = arith.constant dense<0.000000e+00> : vector<16xf32>
      %323 = vector.multi_reduction <add>, %316, %cst_143 [1] : vector<16x32xf32> to vector<16xf32>
      %324 = vector.shape_cast %323 : vector<16xf32> to vector<16x1xf32>
      %cst_144 = arith.constant 3.200000e+01 : f32
      %325 = vector.broadcast %cst_144 : f32 to vector<16x1xf32>
      %326 = arith.divf %324, %325 : vector<16x1xf32>
      %327 = vector.broadcast %326 : vector<16x1xf32> to vector<16x32xf32>
      %328 = arith.subf %316, %327 : vector<16x32xf32>
      %329 = arith.mulf %328, %328 : vector<16x32xf32>
      %cst_145 = arith.constant dense<0.000000e+00> : vector<16xf32>
      %330 = vector.multi_reduction <add>, %329, %cst_145 [1] : vector<16x32xf32> to vector<16xf32>
      %331 = vector.shape_cast %330 : vector<16xf32> to vector<16x1xf32>
      %cst_146 = arith.constant 0.0322580636 : f32
      %332 = vector.broadcast %cst_146 : f32 to vector<16x1xf32>
      %333 = arith.mulf %331, %332 : vector<16x1xf32>
      %334 = math.sqrt %333 : vector<16x1xf32>
      %cst_147 = arith.constant 9.99999997E-7 : f32
      %335 = vector.broadcast %cst_147 : f32 to vector<16x1xf32>
      %336 = arith.addf %334, %335 : vector<16x1xf32>
      %337 = tpu.reciprocal %336 {approx = true} : vector<16x1xf32> -> vector<16x1xf32>
      %338 = vector.broadcast %321 : vector<1x32xf32> to vector<16x32xf32>
      %339 = arith.mulf %338, %328 : vector<16x32xf32>
      %340 = vector.broadcast %337 : vector<16x1xf32> to vector<16x32xf32>
      %341 = arith.mulf %339, %340 : vector<16x32xf32>
      %342 = vector.broadcast %322 : vector<1x32xf32> to vector<16x32xf32>
      %343 = arith.addf %341, %342 : vector<16x32xf32>
      %c0_148 = arith.constant 0 : index
      %c0_149 = arith.constant 0 : index
      %344 = vector.load %arg21[%c0_148, %c0_149] : memref<16x32xf32, #tpu.memory_space<vmem>>, vector<16x32xf32>
      tpu.vector_store %arg21[%c0_148, %c0_149], %343 {strides = array<i32>} : memref<16x32xf32, #tpu.memory_space<vmem>>, vector<16x32xf32>,
    } else {
    }
    return
  }
  func.func @transform_0(%arg0: i32) -> (i32, i32) {
    %c0_i32 = arith.constant 0 : i32
    %c0_i32_0 = arith.constant 0 : i32
    %c0_i32_1 = arith.constant 0 : i32
    return %c0_i32, %c0_i32_0 : i32, i32
  }
  func.func @transform_1(%arg0: i32) -> (i32, i32, i32) {
    %c0_i32 = arith.constant 0 : i32
    %c0_i32_0 = arith.constant 0 : i32
    %c0_i32_1 = arith.constant 0 : i32
    %c0_i32_2 = arith.constant 0 : i32
    return %c0_i32, %c0_i32_0, %c0_i32_1 : i32, i32, i32
  }
  func.func @transform_2(%arg0: i32) -> (i32, i32, i32) {
    %c0_i32 = arith.constant 0 : i32
    %c0_i32_0 = arith.constant 0 : i32
    %c0_i32_1 = arith.constant 0 : i32
    return %arg0, %c0_i32, %c0_i32_0 : i32, i32, i32
  }
  func.func @transform_3(%arg0: i32) -> (i32, i32, i32) {
    %c0_i32 = arith.constant 0 : i32
    %c0_i32_0 = arith.constant 0 : i32
    %c0_i32_1 = arith.constant 0 : i32
    return %arg0, %c0_i32, %c0_i32_0 : i32, i32, i32
  }
  func.func @transform_4(%arg0: i32) -> (i32, i32, i32) {
    %c0_i32 = arith.constant 0 : i32
    %c0_i32_0 = arith.constant 0 : i32
    %c0_i32_1 = arith.constant 0 : i32
    return %arg0, %c0_i32, %c0_i32_0 : i32, i32, i32
  }
  func.func @transform_5(%arg0: i32) -> (i32, i32, i32) {
    %c0_i32 = arith.constant 0 : i32
    %c0_i32_0 = arith.constant 0 : i32
    %c0_i32_1 = arith.constant 0 : i32
    return %arg0, %c0_i32, %c0_i32_0 : i32, i32, i32
  }
  func.func @transform_6(%arg0: i32) -> (i32, i32, i32) {
    %c0_i32 = arith.constant 0 : i32
    %c0_i32_0 = arith.constant 0 : i32
    %c0_i32_1 = arith.constant 0 : i32
    return %arg0, %c0_i32, %c0_i32_0 : i32, i32, i32
  }
  func.func @transform_7(%arg0: i32) -> (i32, i32, i32) {
    %c0_i32 = arith.constant 0 : i32
    %c0_i32_0 = arith.constant 0 : i32
    %c0_i32_1 = arith.constant 0 : i32
    return %arg0, %c0_i32, %c0_i32_0 : i32, i32, i32
  }
  func.func @transform_8(%arg0: i32) -> (i32, i32, i32) {
    %c0_i32 = arith.constant 0 : i32
    %c0_i32_0 = arith.constant 0 : i32
    %c0_i32_1 = arith.constant 0 : i32
    return %arg0, %c0_i32, %c0_i32_0 : i32, i32, i32
  }
  func.func @transform_9(%arg0: i32) -> (i32, i32, i32) {
    %c0_i32 = arith.constant 0 : i32
    %c0_i32_0 = arith.constant 0 : i32
    %c0_i32_1 = arith.constant 0 : i32
    return %arg0, %c0_i32, %c0_i32_0 : i32, i32, i32
  }
  func.func @transform_10(%arg0: i32) -> (i32, i32, i32) {
    %c0_i32 = arith.constant 0 : i32
    %c0_i32_0 = arith.constant 0 : i32
    %c0_i32_1 = arith.constant 0 : i32
    return %arg0, %c0_i32, %c0_i32_0 : i32, i32, i32
  }
  func.func @transform_11(%arg0: i32) -> (i32, i32, i32) {
    %c0_i32 = arith.constant 0 : i32
    %c0_i32_0 = arith.constant 0 : i32
    %c0_i32_1 = arith.constant 0 : i32
    return %arg0, %c0_i32, %c0_i32_0 : i32, i32, i32
  }
  func.func @transform_12(%arg0: i32) -> (i32, i32, i32) {
    %c0_i32 = arith.constant 0 : i32
    %c0_i32_0 = arith.constant 0 : i32
    %c0_i32_1 = arith.constant 0 : i32
    return %arg0, %c0_i32, %c0_i32_0 : i32, i32, i32
  }
  func.func @transform_13(%arg0: i32) -> (i32, i32, i32) {
    %c0_i32 = arith.constant 0 : i32
    %c0_i32_0 = arith.constant 0 : i32
    %c0_i32_1 = arith.constant 0 : i32
    return %arg0, %c0_i32, %c0_i32_0 : i32, i32, i32
  }
  func.func @transform_14(%arg0: i32) -> (i32, i32, i32) {
    %c0_i32 = arith.constant 0 : i32
    %c0_i32_0 = arith.constant 0 : i32
    %c0_i32_1 = arith.constant 0 : i32
    return %arg0, %c0_i32, %c0_i32_0 : i32, i32, i32
  }
  func.func @transform_15(%arg0: i32) -> (i32, i32, i32) {
    %c0_i32 = arith.constant 0 : i32
    %c0_i32_0 = arith.constant 0 : i32
    %c0_i32_1 = arith.constant 0 : i32
    return %arg0, %c0_i32, %c0_i32_0 : i32, i32, i32
  }
  func.func @transform_16(%arg0: i32) -> (i32, i32, i32) {
    %c0_i32 = arith.constant 0 : i32
    %c0_i32_0 = arith.constant 0 : i32
    %c0_i32_1 = arith.constant 0 : i32
    return %arg0, %c0_i32, %c0_i32_0 : i32, i32, i32
  }
  func.func @transform_17(%arg0: i32) -> (i32, i32, i32) {
    %c0_i32 = arith.constant 0 : i32
    %c0_i32_0 = arith.constant 0 : i32
    %c0_i32_1 = arith.constant 0 : i32
    return %arg0, %c0_i32, %c0_i32_0 : i32, i32, i32
  }
  func.func @transform_18(%arg0: i32) -> (i32, i32) {
    %c0_i32 = arith.constant 0 : i32
    %c0_i32_0 = arith.constant 0 : i32
    %c0_i32_1 = arith.constant 0 : i32
    return %c0_i32, %c0_i32_0 : i32, i32
  }
  func.func @transform_19(%arg0: i32) -> (i32, i32) {
    %c0_i32 = arith.constant 0 : i32
    %c0_i32_0 = arith.constant 0 : i32
    %c0_i32_1 = arith.constant 0 : i32
    return %c0_i32, %c0_i32_0 : i32, i32
  }
  func.func @transform_20(%arg0: i32) -> (i32, i32) {
    %c0_i32 = arith.constant 0 : i32
    %c0_i32_0 = arith.constant 0 : i32
    %c0_i32_1 = arith.constant 0 : i32
    return %c0_i32, %c0_i32_0 : i32, i32
  }
}

</mosaic_0001>

<llo_original>
// kernel: tpu_custom_call.1
$region0: #{tpu_custom_call.1}
  #allocation0 [shape = 'u32[]', space=smem, size = 0x4, offset = 0x4, fixed_abs, tag = 'smem constant byte address 0x4 - core index']
  #allocation1 [shape = 'u32[144,128]{1,0:T(1,128)}', space=vmem, size = 0x12000, scoped, tag = 'internal scratch']
  #allocation2 [shape = 'f32[16,32]{1,0:T(8,128)}', space=vmem, size = 0x2000, scoped, tag = 'scratch operand']
  #allocation3 [shape = 'f32[16,32]{1,0:T(8,128)}', space=vmem, size = 0x2000, scoped, tag = 'scratch operand']
  %s0 = inlined_call_operand.hbm [shape: f32[16,32], index: 0, kind: input, shape index: {}]
  %s1 = inlined_call_operand.hbm [shape: f32[2,1,8], index: 1, kind: input, shape index: {}]
  %s2 = inlined_call_operand.vmem [shape: f32[2,1,32], index: 2, kind: input, shape index: {}]
  %s3 = inlined_call_operand.vmem [shape: f32[2,1,32], index: 3, kind: input, shape index: {}]
  %s4 = inlined_call_operand.vmem [shape: bf16[2,32,32], index: 4, kind: input, shape index: {}]
  %s5 = inlined_call_operand.vmem [shape: f32[2,1,32], index: 5, kind: input, shape index: {}]
  %s6 = inlined_call_operand.vmem [shape: bf16[2,32,32], index: 6, kind: input, shape index: {}]
  %s7 = inlined_call_operand.vmem [shape: f32[2,1,32], index: 7, kind: input, shape index: {}]
  %s8 = inlined_call_operand.vmem [shape: bf16[2,32,32], index: 8, kind: input, shape index: {}]
  %s9 = inlined_call_operand.vmem [shape: f32[2,1,32], index: 9, kind: input, shape index: {}]
  %s10 = inlined_call_operand.hbm [shape: bf16[2,32,32], index: 10, kind: input, shape index: {}]
  %s11 = inlined_call_operand.vmem [shape: f32[2,1,32], index: 11, kind: input, shape index: {}]
  %s12 = inlined_call_operand.vmem [shape: f32[2,1,32], index: 12, kind: input, shape index: {}]
  %s13 = inlined_call_operand.vmem [shape: f32[2,1,32], index: 13, kind: input, shape index: {}]
  %s14 = inlined_call_operand.hbm [shape: bf16[2,32,64], index: 14, kind: input, shape index: {}]
  %s15 = inlined_call_operand.vmem [shape: f32[2,1,64], index: 15, kind: input, shape index: {}]
  %s16 = inlined_call_operand.vmem [shape: bf16[2,64,32], index: 16, kind: input, shape index: {}]
  %s17 = inlined_call_operand.vmem [shape: f32[2,1,32], index: 17, kind: input, shape index: {}]
  %s18 = inlined_call_operand.vmem [shape: f32[1,32], index: 18, kind: input, shape index: {}]
  %s19 = inlined_call_operand.vmem [shape: f32[1,32], index: 19, kind: input, shape index: {}]
  %s20 = inlined_call_operand.hbm [shape: f32[16,32], index: 20, kind: output, shape index: {}]
  %s21 = sld [smem:[#allocation0]]
  $region137: #{tpu_custom_call.1} parent=0
    _
  %s23 = ssub.s32 1, %s21
  %s24 = scalar_select 0, %s23, %s21
  $region1: #{tpu_custom_call.1} parent=0
    #allocation4 [shape = 'u8[8192]{0}', space=vmem, size = 0x2000, scoped, tag = 'input window, operand 0, single buffered']
    #allocation5 [shape = 's32[2]{0}', space=sflag, size = 0x8, scoped, tag = 'scoped memory for tpu_custom_call.1']
    #allocation6 [shape = 's32[2]{0}', space=sflag, size = 0x8, scoped, tag = 'scoped memory for tpu_custom_call.1']
    #allocation7 [shape = 'u8[1024]{0}', space=vmem, size = 0x400, scoped, tag = 'input window, operand 1, single buffered']
    #allocation8 [shape = 's32[1]{0}', space=sflag, size = 0x4, scoped, tag = 'scoped memory for tpu_custom_call.1']
    #allocation9 [shape = 'u8[16384]{0}', space=vmem, size = 0x4000, scoped, tag = 'input window, operand 10']
    #allocation10 [shape = 'u8[16384]{0}', space=vmem, size = 0x4000, scoped, tag = 'input window, operand 14']
    #allocation11 [shape = 'u8[8192]{0}', space=vmem, size = 0x2000, scoped, tag = 'output window, operand 0, single buffered']
    %25 = vsyncpa [#allocation5], 0
    %26 = vsyncpa [#allocation8], 0
    %27 = vsyncpa [#allocation6], 0
    loop: start=0, step=1, limit=4
    $region2: #{tpu_custom_call.1} parent=1 // loop_pre_header
      _
    $region3: #{tpu_custom_call.1} parent=1 // loop_header
      %s29 = sphi 0, %s33
      %p30 = scmp.ge.s32.totalorder %s29, 4
      %s37 = sphi 0, %s37
      %s39 = sphi 0, %s37
      %s40 = sphi 0, %s39
      %s54 = sphi 0, %s40
      %s58 = sphi 0, %s58
      %s60 = sphi 0, %s58
      %s61 = sphi 0, %s60
      %s75 = sphi 0, %s61
      %s81 = sphi 0, %s83
      %s84 = sphi 0, %s81
      %s85 = sphi 0, %s84
      %s101 = sphi 0, %s85
      %s107 = sphi 0, %s109
      %s110 = sphi 0, %s107
      %s111 = sphi 0, %s110
      %s127 = sphi 0, %s111
      %s133 = sphi 0, %s135
      %s136 = sphi 0, %s133
      %s137 = sphi 0, %s136
      %s153 = sphi 0, %s137
      %s159 = sphi 0, %s161
      %s162 = sphi 0, %s159
      %s163 = sphi 0, %s162
      %s179 = sphi 0, %s163
      %s185 = sphi 0, %s187
      %s188 = sphi 0, %s185
      %s189 = sphi 0, %s188
      %s205 = sphi 0, %s189
      %s211 = sphi 0, %s213
      %s214 = sphi 0, %s211
      %s215 = sphi 0, %s214
      %s231 = sphi 0, %s215
      %s237 = sphi 0, %s239
      %s240 = sphi 0, %s237
      %s241 = sphi 0, %s240
      %s257 = sphi 0, %s241
      %s263 = sphi 0, %s265
      %s266 = sphi 0, %s263
      %s267 = sphi 0, %s266
      %s283 = sphi 0, %s267
      %s289 = sphi 0, %s291
      %s292 = sphi 0, %s289
      %s293 = sphi 0, %s292
      %s309 = sphi 0, %s293
      %s315 = sphi 0, %s317
      %s318 = sphi 0, %s315
      %s319 = sphi 0, %s318
      %s335 = sphi 0, %s319
      %s341 = sphi 0, %s343
      %s344 = sphi 0, %s341
      %s345 = sphi 0, %s344
      %s361 = sphi 0, %s345
      %s367 = sphi 0, %s369
      %s370 = sphi 0, %s367
      %s371 = sphi 0, %s370
      %s387 = sphi 0, %s371
      %s393 = sphi 0, %s395
      %s396 = sphi 0, %s393
      %s397 = sphi 0, %s396
      %s413 = sphi 0, %s397
      %s419 = sphi 0, %s421
      %s422 = sphi 0, %s419
      %s423 = sphi 0, %s422
      %s439 = sphi 0, %s423
      %s445 = sphi 0, %s447
      %s448 = sphi 0, %s445
      %s449 = sphi 0, %s448
      %s465 = sphi 0, %s449
      %s471 = sphi 0, %s473
      %s474 = sphi 0, %s471
      %s475 = sphi 0, %s474
      %s491 = sphi 0, %s475
      %s495 = sphi 0, %s495
      %s497 = sphi 0, %s495
      %s498 = sphi 0, %s497
      %s512 = sphi 0, %s498
      %s516 = sphi 0, %s516
      %s518 = sphi 0, %s516
      %s519 = sphi 0, %s518
      %s533 = sphi 0, %s519
      %s537 = sphi 0, %s537
      %s539 = sphi 0, %s537
      %s540 = sphi 0, %s539
      %s554 = sphi 0, %s540
    $region4: #{tpu_custom_call.1} parent=1 // loop_header_branch
      %32 = sbr.rel (%p30) target = $region8
    $region5: #{tpu_custom_call.1} parent=1 // loop_body
      %s34 = ssub.s32 %s29, 1
      %s35 = ssub.s32 %s29, 2
      %s36 = sadd.s32 %s29, 1
      %s38 = sadd.s32 %s37, 1
      %p41 = scmp.eq.s32.totalorder %s29, 1
      %p42 = scmp.ne.s32.totalorder %s37, %s39
      %p43 = scmp.eq.s32.totalorder %s29, 0
      %p44 = por %p42, %p43
      %p45 = scmp.ne.s32.totalorder %s37, %s39
      %p46 = scmp.eq.s32.totalorder %s34, 1
      %p47 = por %p45, %p46
      %p48 = scmp.ne.s32.totalorder %s39, %s40
      %p49 = scmp.eq.s32.totalorder %s34, 0
      %p50 = por %p48, %p49
      %p51 = scmp.ne.s32.totalorder %s39, %s40
      %p52 = scmp.eq.s32.totalorder %s35, 1
      %p53 = por %p51, %p52
      %p55 = scmp.ne.s32.totalorder %s40, %s54
      %p56 = scmp.eq.s32.totalorder %s35, 0
      %p57 = por %p55, %p56
      %s59 = sadd.s32 %s58, 1
      %p62 = scmp.eq.s32.totalorder %s29, 1
      %p63 = scmp.ne.s32.totalorder %s58, %s60
      %p64 = scmp.eq.s32.totalorder %s29, 0
      %p65 = por %p63, %p64
      %p66 = scmp.ne.s32.totalorder %s58, %s60
      %p67 = scmp.eq.s32.totalorder %s34, 1
      %p68 = por %p66, %p67
      %p69 = scmp.ne.s32.totalorder %s60, %s61
      %p70 = scmp.eq.s32.totalorder %s34, 0
      %p71 = por %p69, %p70
      %p72 = scmp.ne.s32.totalorder %s60, %s61
      %p73 = scmp.eq.s32.totalorder %s35, 1
      %p74 = por %p72, %p73
      %p76 = scmp.ne.s32.totalorder %s61, %s75
      %p77 = scmp.eq.s32.totalorder %s35, 0
      %p78 = por %p76, %p77
      %s79 = ssub.s32 %s29, %s36
      %p80 = scmp.eq.s32.totalorder %s79, 0
      %s82 = sadd.s32 %s81, 1
      %s83 = scalar_select %p80, %s81, %s82
      %p86 = pneg %p80
      %p87 = scmp.eq.s32.totalorder %s29, 1
      %p88 = por %p86, %p87
      %p89 = scmp.ne.s32.totalorder %s81, %s84
      %p90 = scmp.eq.s32.totalorder %s29, 0
      %p91 = por %p89, %p90
      %p92 = scmp.ne.s32.totalorder %s81, %s84
      %p93 = scmp.eq.s32.totalorder %s34, 1
      %p94 = por %p92, %p93
      %p95 = scmp.ne.s32.totalorder %s84, %s85
      %p96 = scmp.eq.s32.totalorder %s34, 0
      %p97 = por %p95, %p96
      %p98 = scmp.ne.s32.totalorder %s84, %s85
      %p99 = scmp.eq.s32.totalorder %s35, 1
      %p100 = por %p98, %p99
      %p102 = scmp.ne.s32.totalorder %s85, %s101
      %p103 = scmp.eq.s32.totalorder %s35, 0
      %p104 = por %p102, %p103
      %s105 = ssub.s32 %s29, %s36
      %p106 = scmp.eq.s32.totalorder %s105, 0
      %s108 = sadd.s32 %s107, 1
      %s109 = scalar_select %p106, %s107, %s108
      %p112 = pneg %p106
      %p113 = scmp.eq.s32.totalorder %s29, 1
      %p114 = por %p112, %p113
      %p115 = scmp.ne.s32.totalorder %s107, %s110
      %p116 = scmp.eq.s32.totalorder %s29, 0
      %p117 = por %p115, %p116
      %p118 = scmp.ne.s32.totalorder %s107, %s110
      %p119 = scmp.eq.s32.totalorder %s34, 1
      %p120 = por %p118, %p119
      %p121 = scmp.ne.s32.totalorder %s110, %s111
      %p122 = scmp.eq.s32.totalorder %s34, 0
      %p123 = por %p121, %p122
      %p124 = scmp.ne.s32.totalorder %s110, %s111
      %p125 = scmp.eq.s32.totalorder %s35, 1
      %p126 = por %p124, %p125
      %p128 = scmp.ne.s32.totalorder %s111, %s127
      %p129 = scmp.eq.s32.totalorder %s35, 0
      %p130 = por %p128, %p129
      %s131 = ssub.s32 %s29, %s36
      %p132 = scmp.eq.s32.totalorder %s131, 0
      %s134 = sadd.s32 %s133, 1
      %s135 = scalar_select %p132, %s133, %s134
      %p138 = pneg %p132
      %p139 = scmp.eq.s32.totalorder %s29, 1
      %p140 = por %p138, %p139
      %p141 = scmp.ne.s32.totalorder %s133, %s136
      %p142 = scmp.eq.s32.totalorder %s29, 0
      %p143 = por %p141, %p142
      %p144 = scmp.ne.s32.totalorder %s133, %s136
      %p145 = scmp.eq.s32.totalorder %s34, 1
      %p146 = por %p144, %p145
      %p147 = scmp.ne.s32.totalorder %s136, %s137
      %p148 = scmp.eq.s32.totalorder %s34, 0
      %p149 = por %p147, %p148
      %p150 = scmp.ne.s32.totalorder %s136, %s137
      %p151 = scmp.eq.s32.totalorder %s35, 1
      %p152 = por %p150, %p151
      %p154 = scmp.ne.s32.totalorder %s137, %s153
      %p155 = scmp.eq.s32.totalorder %s35, 0
      %p156 = por %p154, %p155
      %s157 = ssub.s32 %s29, %s36
      %p158 = scmp.eq.s32.totalorder %s157, 0
      %s160 = sadd.s32 %s159, 1
      %s161 = scalar_select %p158, %s159, %s160
      %p164 = pneg %p158
      %p165 = scmp.eq.s32.totalorder %s29, 1
      %p166 = por %p164, %p165
      %p167 = scmp.ne.s32.totalorder %s159, %s162
      %p168 = scmp.eq.s32.totalorder %s29, 0
      %p169 = por %p167, %p168
      %p170 = scmp.ne.s32.totalorder %s159, %s162
      %p171 = scmp.eq.s32.totalorder %s34, 1
      %p172 = por %p170, %p171
      %p173 = scmp.ne.s32.totalorder %s162, %s163
      %p174 = scmp.eq.s32.totalorder %s34, 0
      %p175 = por %p173, %p174
      %p176 = scmp.ne.s32.totalorder %s162, %s163
      %p177 = scmp.eq.s32.totalorder %s35, 1
      %p178 = por %p176, %p177
      %p180 = scmp.ne.s32.totalorder %s163, %s179
      %p181 = scmp.eq.s32.totalorder %s35, 0
      %p182 = por %p180, %p181
      %s183 = ssub.s32 %s29, %s36
      %p184 = scmp.eq.s32.totalorder %s183, 0
      %s186 = sadd.s32 %s185, 1
      %s187 = scalar_select %p184, %s185, %s186
      %p190 = pneg %p184
      %p191 = scmp.eq.s32.totalorder %s29, 1
      %p192 = por %p190, %p191
      %p193 = scmp.ne.s32.totalorder %s185, %s188
      %p194 = scmp.eq.s32.totalorder %s29, 0
      %p195 = por %p193, %p194
      %p196 = scmp.ne.s32.totalorder %s185, %s188
      %p197 = scmp.eq.s32.totalorder %s34, 1
      %p198 = por %p196, %p197
      %p199 = scmp.ne.s32.totalorder %s188, %s189
      %p200 = scmp.eq.s32.totalorder %s34, 0
      %p201 = por %p199, %p200
      %p202 = scmp.ne.s32.totalorder %s188, %s189
      %p203 = scmp.eq.s32.totalorder %s35, 1
      %p204 = por %p202, %p203
      %p206 = scmp.ne.s32.totalorder %s189, %s205
      %p207 = scmp.eq.s32.totalorder %s35, 0
      %p208 = por %p206, %p207
      %s209 = ssub.s32 %s29, %s36
      %p210 = scmp.eq.s32.totalorder %s209, 0
      %s212 = sadd.s32 %s211, 1
      %s213 = scalar_select %p210, %s211, %s212
      %p216 = pneg %p210
      %p217 = scmp.eq.s32.totalorder %s29, 1
      %p218 = por %p216, %p217
      %p219 = scmp.ne.s32.totalorder %s211, %s214
      %p220 = scmp.eq.s32.totalorder %s29, 0
      %p221 = por %p219, %p220
      %p222 = scmp.ne.s32.totalorder %s211, %s214
      %p223 = scmp.eq.s32.totalorder %s34, 1
      %p224 = por %p222, %p223
      %p225 = scmp.ne.s32.totalorder %s214, %s215
      %p226 = scmp.eq.s32.totalorder %s34, 0
      %p227 = por %p225, %p226
      %p228 = scmp.ne.s32.totalorder %s214, %s215
      %p229 = scmp.eq.s32.totalorder %s35, 1
      %p230 = por %p228, %p229
      %p232 = scmp.ne.s32.totalorder %s215, %s231
      %p233 = scmp.eq.s32.totalorder %s35, 0
      %p234 = por %p232, %p233
      %s235 = ssub.s32 %s29, %s36
      %p236 = scmp.eq.s32.totalorder %s235, 0
      %s238 = sadd.s32 %s237, 1
      %s239 = scalar_select %p236, %s237, %s238
      %p242 = pneg %p236
      %p243 = scmp.eq.s32.totalorder %s29, 1
      %p244 = por %p242, %p243
      %p245 = scmp.ne.s32.totalorder %s237, %s240
      %p246 = scmp.eq.s32.totalorder %s29, 0
      %p247 = por %p245, %p246
      %p248 = scmp.ne.s32.totalorder %s237, %s240
      %p249 = scmp.eq.s32.totalorder %s34, 1
      %p250 = por %p248, %p249
      %p251 = scmp.ne.s32.totalorder %s240, %s241
      %p252 = scmp.eq.s32.totalorder %s34, 0
      %p253 = por %p251, %p252
      %p254 = scmp.ne.s32.totalorder %s240, %s241
      %p255 = scmp.eq.s32.totalorder %s35, 1
      %p256 = por %p254, %p255
      %p258 = scmp.ne.s32.totalorder %s241, %s257
      %p259 = scmp.eq.s32.totalorder %s35, 0
      %p260 = por %p258, %p259
      %s261 = ssub.s32 %s29, %s36
      %p262 = scmp.eq.s32.totalorder %s261, 0
      %s264 = sadd.s32 %s263, 1
      %s265 = scalar_select %p262, %s263, %s264
      %p268 = pneg %p262
      %p269 = scmp.eq.s32.totalorder %s29, 1
      %p270 = por %p268, %p269
      %p271 = scmp.ne.s32.totalorder %s263, %s266
      %p272 = scmp.eq.s32.totalorder %s29, 0
      %p273 = por %p271, %p272
      %p274 = scmp.ne.s32.totalorder %s263, %s266
      %p275 = scmp.eq.s32.totalorder %s34, 1
      %p276 = por %p274, %p275
      %p277 = scmp.ne.s32.totalorder %s266, %s267
      %p278 = scmp.eq.s32.totalorder %s34, 0
      %p279 = por %p277, %p278
      %p280 = scmp.ne.s32.totalorder %s266, %s267
      %p281 = scmp.eq.s32.totalorder %s35, 1
      %p282 = por %p280, %p281
      %p284 = scmp.ne.s32.totalorder %s267, %s283
      %p285 = scmp.eq.s32.totalorder %s35, 0
      %p286 = por %p284, %p285
      %s287 = ssub.s32 %s29, %s36
      %p288 = scmp.eq.s32.totalorder %s287, 0
      %s290 = sadd.s32 %s289, 1
      %s291 = scalar_select %p288, %s289, %s290
      %p294 = pneg %p288
      %p295 = scmp.eq.s32.totalorder %s29, 1
      %p296 = por %p294, %p295
      %p297 = scmp.ne.s32.totalorder %s289, %s292
      %p298 = scmp.eq.s32.totalorder %s29, 0
      %p299 = por %p297, %p298
      %p300 = scmp.ne.s32.totalorder %s289, %s292
      %p301 = scmp.eq.s32.totalorder %s34, 1
      %p302 = por %p300, %p301
      %p303 = scmp.ne.s32.totalorder %s292, %s293
      %p304 = scmp.eq.s32.totalorder %s34, 0
      %p305 = por %p303, %p304
      %p306 = scmp.ne.s32.totalorder %s292, %s293
      %p307 = scmp.eq.s32.totalorder %s35, 1
      %p308 = por %p306, %p307
      %p310 = scmp.ne.s32.totalorder %s293, %s309
      %p311 = scmp.eq.s32.totalorder %s35, 0
      %p312 = por %p310, %p311
      %s313 = ssub.s32 %s29, %s36
      %p314 = scmp.eq.s32.totalorder %s313, 0
      %s316 = sadd.s32 %s315, 1
      %s317 = scalar_select %p314, %s315, %s316
      %p320 = pneg %p314
      %p321 = scmp.eq.s32.totalorder %s29, 1
      %p322 = por %p320, %p321
      %p323 = scmp.ne.s32.totalorder %s315, %s318
      %p324 = scmp.eq.s32.totalorder %s29, 0
      %p325 = por %p323, %p324
      %p326 = scmp.ne.s32.totalorder %s315, %s318
      %p327 = scmp.eq.s32.totalorder %s34, 1
      %p328 = por %p326, %p327
      %p329 = scmp.ne.s32.totalorder %s318, %s319
      %p330 = scmp.eq.s32.totalorder %s34, 0
      %p331 = por %p329, %p330
      %p332 = scmp.ne.s32.totalorder %s318, %s319
      %p333 = scmp.eq.s32.totalorder %s35, 1
      %p334 = por %p332, %p333
      %p336 = scmp.ne.s32.totalorder %s319, %s335
      %p337 = scmp.eq.s32.totalorder %s35, 0
      %p338 = por %p336, %p337
      %s339 = ssub.s32 %s29, %s36
      %p340 = scmp.eq.s32.totalorder %s339, 0
      %s342 = sadd.s32 %s341, 1
      %s343 = scalar_select %p340, %s341, %s342
      %p346 = pneg %p340
      %p347 = scmp.eq.s32.totalorder %s29, 1
      %p348 = por %p346, %p347
      %p349 = scmp.ne.s32.totalorder %s341, %s344
      %p350 = scmp.eq.s32.totalorder %s29, 0
      %p351 = por %p349, %p350
      %p352 = scmp.ne.s32.totalorder %s341, %s344
      %p353 = scmp.eq.s32.totalorder %s34, 1
      %p354 = por %p352, %p353
      %p355 = scmp.ne.s32.totalorder %s344, %s345
      %p356 = scmp.eq.s32.totalorder %s34, 0
      %p357 = por %p355, %p356
      %p358 = scmp.ne.s32.totalorder %s344, %s345
      %p359 = scmp.eq.s32.totalorder %s35, 1
      %p360 = por %p358, %p359
      %p362 = scmp.ne.s32.totalorder %s345, %s361
      %p363 = scmp.eq.s32.totalorder %s35, 0
      %p364 = por %p362, %p363
      %s365 = ssub.s32 %s29, %s36
      %p366 = scmp.eq.s32.totalorder %s365, 0
      %s368 = sadd.s32 %s367, 1
      %s369 = scalar_select %p366, %s367, %s368
      %p372 = pneg %p366
      %p373 = scmp.eq.s32.totalorder %s29, 1
      %p374 = por %p372, %p373
      %p375 = scmp.ne.s32.totalorder %s367, %s370
      %p376 = scmp.eq.s32.totalorder %s29, 0
      %p377 = por %p375, %p376
      %p378 = scmp.ne.s32.totalorder %s367, %s370
      %p379 = scmp.eq.s32.totalorder %s34, 1
      %p380 = por %p378, %p379
      %p381 = scmp.ne.s32.totalorder %s370, %s371
      %p382 = scmp.eq.s32.totalorder %s34, 0
      %p383 = por %p381, %p382
      %p384 = scmp.ne.s32.totalorder %s370, %s371
      %p385 = scmp.eq.s32.totalorder %s35, 1
      %p386 = por %p384, %p385
      %p388 = scmp.ne.s32.totalorder %s371, %s387
      %p389 = scmp.eq.s32.totalorder %s35, 0
      %p390 = por %p388, %p389
      %s391 = ssub.s32 %s29, %s36
      %p392 = scmp.eq.s32.totalorder %s391, 0
      %s394 = sadd.s32 %s393, 1
      %s395 = scalar_select %p392, %s393, %s394
      %p398 = pneg %p392
      %p399 = scmp.eq.s32.totalorder %s29, 1
      %p400 = por %p398, %p399
      %p401 = scmp.ne.s32.totalorder %s393, %s396
      %p402 = scmp.eq.s32.totalorder %s29, 0
      %p403 = por %p401, %p402
      %p404 = scmp.ne.s32.totalorder %s393, %s396
      %p405 = scmp.eq.s32.totalorder %s34, 1
      %p406 = por %p404, %p405
      %p407 = scmp.ne.s32.totalorder %s396, %s397
      %p408 = scmp.eq.s32.totalorder %s34, 0
      %p409 = por %p407, %p408
      %p410 = scmp.ne.s32.totalorder %s396, %s397
      %p411 = scmp.eq.s32.totalorder %s35, 1
      %p412 = por %p410, %p411
      %p414 = scmp.ne.s32.totalorder %s397, %s413
      %p415 = scmp.eq.s32.totalorder %s35, 0
      %p416 = por %p414, %p415
      %s417 = ssub.s32 %s29, %s36
      %p418 = scmp.eq.s32.totalorder %s417, 0
      %s420 = sadd.s32 %s419, 1
      %s421 = scalar_select %p418, %s419, %s420
      %p424 = pneg %p418
      %p425 = scmp.eq.s32.totalorder %s29, 1
      %p426 = por %p424, %p425
      %p427 = scmp.ne.s32.totalorder %s419, %s422
      %p428 = scmp.eq.s32.totalorder %s29, 0
      %p429 = por %p427, %p428
      %p430 = scmp.ne.s32.totalorder %s419, %s422
      %p431 = scmp.eq.s32.totalorder %s34, 1
      %p432 = por %p430, %p431
      %p433 = scmp.ne.s32.totalorder %s422, %s423
      %p434 = scmp.eq.s32.totalorder %s34, 0
      %p435 = por %p433, %p434
      %p436 = scmp.ne.s32.totalorder %s422, %s423
      %p437 = scmp.eq.s32.totalorder %s35, 1
      %p438 = por %p436, %p437
      %p440 = scmp.ne.s32.totalorder %s423, %s439
      %p441 = scmp.eq.s32.totalorder %s35, 0
      %p442 = por %p440, %p441
      %s443 = ssub.s32 %s29, %s36
      %p444 = scmp.eq.s32.totalorder %s443, 0
      %s446 = sadd.s32 %s445, 1
      %s447 = scalar_select %p444, %s445, %s446
      %p450 = pneg %p444
      %p451 = scmp.eq.s32.totalorder %s29, 1
      %p452 = por %p450, %p451
      %p453 = scmp.ne.s32.totalorder %s445, %s448
      %p454 = scmp.eq.s32.totalorder %s29, 0
      %p455 = por %p453, %p454
      %p456 = scmp.ne.s32.totalorder %s445, %s448
      %p457 = scmp.eq.s32.totalorder %s34, 1
      %p458 = por %p456, %p457
      %p459 = scmp.ne.s32.totalorder %s448, %s449
      %p460 = scmp.eq.s32.totalorder %s34, 0
      %p461 = por %p459, %p460
      %p462 = scmp.ne.s32.totalorder %s448, %s449
      %p463 = scmp.eq.s32.totalorder %s35, 1
      %p464 = por %p462, %p463
      %p466 = scmp.ne.s32.totalorder %s449, %s465
      %p467 = scmp.eq.s32.totalorder %s35, 0
      %p468 = por %p466, %p467
      %s469 = ssub.s32 %s29, %s36
      %p470 = scmp.eq.s32.totalorder %s469, 0
      %s472 = sadd.s32 %s471, 1
      %s473 = scalar_select %p470, %s471, %s472
      %p476 = pneg %p470
      %p477 = scmp.eq.s32.totalorder %s29, 1
      %p478 = por %p476, %p477
      %p479 = scmp.ne.s32.totalorder %s471, %s474
      %p480 = scmp.eq.s32.totalorder %s29, 0
      %p481 = por %p479, %p480
      %p482 = scmp.ne.s32.totalorder %s471, %s474
      %p483 = scmp.eq.s32.totalorder %s34, 1
      %p484 = por %p482, %p483
      %p485 = scmp.ne.s32.totalorder %s474, %s475
      %p486 = scmp.eq.s32.totalorder %s34, 0
      %p487 = por %p485, %p486
      %p488 = scmp.ne.s32.totalorder %s474, %s475
      %p489 = scmp.eq.s32.totalorder %s35, 1
      %p490 = por %p488, %p489
      %p492 = scmp.ne.s32.totalorder %s475, %s491
      %p493 = scmp.eq.s32.totalorder %s35, 0
      %p494 = por %p492, %p493
      %s496 = sadd.s32 %s495, 1
      %p499 = scmp.eq.s32.totalorder %s29, 1
      %p500 = scmp.ne.s32.totalorder %s495, %s497
      %p501 = scmp.eq.s32.totalorder %s29, 0
      %p502 = por %p500, %p501
      %p503 = scmp.ne.s32.totalorder %s495, %s497
      %p504 = scmp.eq.s32.totalorder %s34, 1
      %p505 = por %p503, %p504
      %p506 = scmp.ne.s32.totalorder %s497, %s498
      %p507 = scmp.eq.s32.totalorder %s34, 0
      %p508 = por %p506, %p507
      %p509 = scmp.ne.s32.totalorder %s497, %s498
      %p510 = scmp.eq.s32.totalorder %s35, 1
      %p511 = por %p509, %p510
      %p513 = scmp.ne.s32.totalorder %s498, %s512
      %p514 = scmp.eq.s32.totalorder %s35, 0
      %p515 = por %p513, %p514
      %s517 = sadd.s32 %s516, 1
      %p520 = scmp.eq.s32.totalorder %s29, 1
      %p521 = scmp.ne.s32.totalorder %s516, %s518
      %p522 = scmp.eq.s32.totalorder %s29, 0
      %p523 = por %p521, %p522
      %p524 = scmp.ne.s32.totalorder %s516, %s518
      %p525 = scmp.eq.s32.totalorder %s34, 1
      %p526 = por %p524, %p525
      %p527 = scmp.ne.s32.totalorder %s518, %s519
      %p528 = scmp.eq.s32.totalorder %s34, 0
      %p529 = por %p527, %p528
      %p530 = scmp.ne.s32.totalorder %s518, %s519
      %p531 = scmp.eq.s32.totalorder %s35, 1
      %p532 = por %p530, %p531
      %p534 = scmp.ne.s32.totalorder %s519, %s533
      %p535 = scmp.eq.s32.totalorder %s35, 0
      %p536 = por %p534, %p535
      %s538 = sadd.s32 %s537, 1
      %p541 = scmp.eq.s32.totalorder %s29, 1
      %p542 = scmp.ne.s32.totalorder %s537, %s539
      %p543 = scmp.eq.s32.totalorder %s29, 0
      %p544 = por %p542, %p543
      %p545 = scmp.ne.s32.totalorder %s537, %s539
      %p546 = scmp.eq.s32.totalorder %s34, 1
      %p547 = por %p545, %p546
      %p548 = scmp.ne.s32.totalorder %s539, %s540
      %p549 = scmp.eq.s32.totalorder %s34, 0
      %p550 = por %p548, %p549
      %p551 = scmp.ne.s32.totalorder %s539, %s540
      %p552 = scmp.eq.s32.totalorder %s35, 1
      %p553 = por %p551, %p552
      %p555 = scmp.ne.s32.totalorder %s540, %s554
      %p556 = scmp.eq.s32.totalorder %s35, 0
      %p557 = por %p555, %p556
      %p558 = scmp.le.s32.totalorder 1, %s29
      %p559 = scmp.lt.s32.totalorder %s29, 3
      %p560 = pnand %p558, %p559
      %p561 = pneg %p560
      // Predicated region
      $region9: #{tpu_custom_call.1} parent=5 // pred_check
        _
      $region10: #{tpu_custom_call.1} parent=5 // pred_check_branch
        %563 = sbr.rel (%p560) target = $region12
      $region11: #{tpu_custom_call.1} parent=5 // pred_region
        %s564 = ssub.s32 %s29, 1
        // Predicated region
        $region13: #{tpu_custom_call.1} parent=11 // pred_check
          %p565 = pneg %p50
        $region14: #{tpu_custom_call.1} parent=11 // pred_check_branch
          %567 = sbr.rel (%p565) target = $region16
        $region15: #{tpu_custom_call.1} parent=11 // pred_region
          %s569 = ssub.s32 256, 256
          %570 = vsyncadd [#allocation5], %s569
          %s571 = sshll.u32 [#allocation4], 4
          %s572 = int_to_ptr.vmem [resolvable:$true] %s571
          %577 = dma.hbm_to_vmem [thread:$0]  %s0, 256, %s572, [#allocation5], 128, 128, 8
        $region16: #{tpu_custom_call.1} parent=11 // pred_fallthru
          _
        // Predicated region
        $region17: #{tpu_custom_call.1} parent=11 // pred_check
          %p578 = pneg %p71
        $region18: #{tpu_custom_call.1} parent=11 // pred_check_branch
          %580 = sbr.rel (%p578) target = $region20
        $region19: #{tpu_custom_call.1} parent=11 // pred_region
          %s582 = ssub.s32 32, 32
          %583 = vsyncadd [#allocation8], %s582
          %s584 = sshll.u32 [#allocation7], 4
          %s585 = int_to_ptr.vmem [resolvable:$true] %s584
          %590 = dma.hbm_to_vmem [thread:$0]  %s1, 32, %s585, [#allocation8], 16, 16, 1
        $region20: #{tpu_custom_call.1} parent=11 // pred_fallthru
          _
        // Predicated region
        $region21: #{tpu_custom_call.1} parent=11 // pred_check
          %p591 = pneg %p508
        $region22: #{tpu_custom_call.1} parent=11 // pred_check_branch
          %593 = sbr.rel (%p591) target = $region24
        $region23: #{tpu_custom_call.1} parent=11 // pred_region
          _
        $region24: #{tpu_custom_call.1} parent=11 // pred_fallthru
          _
        // Predicated region
        $region25: #{tpu_custom_call.1} parent=11 // pred_check
          %p594 = pneg %p529
        $region26: #{tpu_custom_call.1} parent=11 // pred_check_branch
          %596 = sbr.rel (%p594) target = $region28
        $region27: #{tpu_custom_call.1} parent=11 // pred_region
          _
        $region28: #{tpu_custom_call.1} parent=11 // pred_fallthru
          _
      $region12: #{tpu_custom_call.1} parent=5 // pred_fallthru
        _
      %p597 = scmp.lt.s32.totalorder %s29, 2
      // Predicated region
      $region29: #{tpu_custom_call.1} parent=5 // pred_check
        %p598 = pneg %p597
      $region30: #{tpu_custom_call.1} parent=5 // pred_check_branch
        %600 = sbr.rel (%p598) target = $region32
      $region31: #{tpu_custom_call.1} parent=5 // pred_region
        // Predicated region
        $region33: #{tpu_custom_call.1} parent=31 // pred_check
          %p601 = pneg %p91
        $region34: #{tpu_custom_call.1} parent=31 // pred_check_branch
          %603 = sbr.rel (%p601) target = $region36
        $region35: #{tpu_custom_call.1} parent=31 // pred_region
          %p604 = scmp.lt.s32.totalorder %s29, 1
          %s605 = scalar_select %p604, %s29, 1
          %s606 = scalar_lea.vmem %s2, %s605
        $region36: #{tpu_custom_call.1} parent=31 // pred_fallthru
          _
        // Predicated region
        $region37: #{tpu_custom_call.1} parent=31 // pred_check
          %p607 = pneg %p117
        $region38: #{tpu_custom_call.1} parent=31 // pred_check_branch
          %609 = sbr.rel (%p607) target = $region40
        $region39: #{tpu_custom_call.1} parent=31 // pred_region
          %p610 = scmp.lt.s32.totalorder %s29, 1
          %s611 = scalar_select %p610, %s29, 1
          %s612 = scalar_lea.vmem %s3, %s611
        $region40: #{tpu_custom_call.1} parent=31 // pred_fallthru
          _
        // Predicated region
        $region41: #{tpu_custom_call.1} parent=31 // pred_check
          %p613 = pneg %p143
        $region42: #{tpu_custom_call.1} parent=31 // pred_check_branch
          %615 = sbr.rel (%p613) target = $region44
        $region43: #{tpu_custom_call.1} parent=31 // pred_region
          %p616 = scmp.lt.s32.totalorder %s29, 1
          %s617 = scalar_select %p616, %s29, 1
          %s618 = smul.addr %s617, 4
          %s619 = smul.addr %s618, 4
          %s620 = scalar_lea.vmem %s4, %s619
        $region44: #{tpu_custom_call.1} parent=31 // pred_fallthru
          _
        // Predicated region
        $region45: #{tpu_custom_call.1} parent=31 // pred_check
          %p621 = pneg %p169
        $region46: #{tpu_custom_call.1} parent=31 // pred_check_branch
          %623 = sbr.rel (%p621) target = $region48
        $region47: #{tpu_custom_call.1} parent=31 // pred_region
          %p624 = scmp.lt.s32.totalorder %s29, 1
          %s625 = scalar_select %p624, %s29, 1
          %s626 = scalar_lea.vmem %s5, %s625
        $region48: #{tpu_custom_call.1} parent=31 // pred_fallthru
          _
        // Predicated region
        $region49: #{tpu_custom_call.1} parent=31 // pred_check
          %p627 = pneg %p195
        $region50: #{tpu_custom_call.1} parent=31 // pred_check_branch
          %629 = sbr.rel (%p627) target = $region52
        $region51: #{tpu_custom_call.1} parent=31 // pred_region
          %p630 = scmp.lt.s32.totalorder %s29, 1
          %s631 = scalar_select %p630, %s29, 1
          %s632 = smul.addr %s631, 4
          %s633 = smul.addr %s632, 4
          %s634 = scalar_lea.vmem %s6, %s633
        $region52: #{tpu_custom_call.1} parent=31 // pred_fallthru
          _
        // Predicated region
        $region53: #{tpu_custom_call.1} parent=31 // pred_check
          %p635 = pneg %p221
        $region54: #{tpu_custom_call.1} parent=31 // pred_check_branch
          %637 = sbr.rel (%p635) target = $region56
        $region55: #{tpu_custom_call.1} parent=31 // pred_region
          %p638 = scmp.lt.s32.totalorder %s29, 1
          %s639 = scalar_select %p638, %s29, 1
          %s640 = scalar_lea.vmem %s7, %s639
        $region56: #{tpu_custom_call.1} parent=31 // pred_fallthru
          _
        // Predicated region
        $region57: #{tpu_custom_call.1} parent=31 // pred_check
          %p641 = pneg %p247
        $region58: #{tpu_custom_call.1} parent=31 // pred_check_branch
          %643 = sbr.rel (%p641) target = $region60
        $region59: #{tpu_custom_call.1} parent=31 // pred_region
          %p644 = scmp.lt.s32.totalorder %s29, 1
          %s645 = scalar_select %p644, %s29, 1
          %s646 = smul.addr %s645, 4
          %s647 = smul.addr %s646, 4
          %s648 = scalar_lea.vmem %s8, %s647
        $region60: #{tpu_custom_call.1} parent=31 // pred_fallthru
          _
        // Predicated region
        $region61: #{tpu_custom_call.1} parent=31 // pred_check
          %p649 = pneg %p273
        $region62: #{tpu_custom_call.1} parent=31 // pred_check_branch
          %651 = sbr.rel (%p649) target = $region64
        $region63: #{tpu_custom_call.1} parent=31 // pred_region
          %p652 = scmp.lt.s32.totalorder %s29, 1
          %s653 = scalar_select %p652, %s29, 1
          %s654 = scalar_lea.vmem %s9, %s653
        $region64: #{tpu_custom_call.1} parent=31 // pred_fallthru
          _
        // Predicated region
        $region65: #{tpu_custom_call.1} parent=31 // pred_check
          %p655 = pneg %p299
        $region66: #{tpu_custom_call.1} parent=31 // pred_check_branch
          %657 = sbr.rel (%p655) target = $region68
        $region67: #{tpu_custom_call.1} parent=31 // pred_region
          %s658 = sand.u32 %s29, 1
          %s659 = scalar_lea.sflag [#allocation5], %s658
          %s660 = sand.u32 %s289, 1
          %s661 = smul.addr %s660, 16
          %s662 = scalar_lea.vmem [#allocation9], %s661
          %s664 = ssub.s32 256, 256
          %665 = vsyncadd %s659, %s664
          %s666 = smul.addr %s29, 4
          %s667 = smul.addr %s666, 64
          %s668 = scalar_lea.hbm %s10, %s667
          %s669 = sshll.u32 %s662, 4
          %s670 = int_to_ptr.vmem [resolvable:$true] %s669
          %675 = dma.hbm_to_vmem [thread:$0]  %s668, 256, %s670, %s659, 64, 64, 4
        $region68: #{tpu_custom_call.1} parent=31 // pred_fallthru
          _
        // Predicated region
        $region69: #{tpu_custom_call.1} parent=31 // pred_check
          %p676 = pneg %p325
        $region70: #{tpu_custom_call.1} parent=31 // pred_check_branch
          %678 = sbr.rel (%p676) target = $region72
        $region71: #{tpu_custom_call.1} parent=31 // pred_region
          %p679 = scmp.lt.s32.totalorder %s29, 1
          %s680 = scalar_select %p679, %s29, 1
          %s681 = scalar_lea.vmem %s11, %s680
        $region72: #{tpu_custom_call.1} parent=31 // pred_fallthru
          _
        // Predicated region
        $region73: #{tpu_custom_call.1} parent=31 // pred_check
          %p682 = pneg %p351
        $region74: #{tpu_custom_call.1} parent=31 // pred_check_branch
          %684 = sbr.rel (%p682) target = $region76
        $region75: #{tpu_custom_call.1} parent=31 // pred_region
          %p685 = scmp.lt.s32.totalorder %s29, 1
          %s686 = scalar_select %p685, %s29, 1
          %s687 = scalar_lea.vmem %s12, %s686
        $region76: #{tpu_custom_call.1} parent=31 // pred_fallthru
          _
        // Predicated region
        $region77: #{tpu_custom_call.1} parent=31 // pred_check
          %p688 = pneg %p377
        $region78: #{tpu_custom_call.1} parent=31 // pred_check_branch
          %690 = sbr.rel (%p688) target = $region80
        $region79: #{tpu_custom_call.1} parent=31 // pred_region
          %p691 = scmp.lt.s32.totalorder %s29, 1
          %s692 = scalar_select %p691, %s29, 1
          %s693 = scalar_lea.vmem %s13, %s692
        $region80: #{tpu_custom_call.1} parent=31 // pred_fallthru
          _
        // Predicated region
        $region81: #{tpu_custom_call.1} parent=31 // pred_check
          %p694 = pneg %p403
        $region82: #{tpu_custom_call.1} parent=31 // pred_check_branch
          %696 = sbr.rel (%p694) target = $region84
        $region83: #{tpu_custom_call.1} parent=31 // pred_region
          %s697 = sand.u32 %s29, 1
          %s698 = scalar_lea.sflag [#allocation5], %s697
          %s699 = sand.u32 %s393, 1
          %s700 = smul.addr %s699, 16
          %s701 = scalar_lea.vmem [#allocation10], %s700
          %s703 = ssub.s32 256, 256
          %704 = vsyncadd %s698, %s703
          %s705 = smul.addr %s29, 4
          %s706 = smul.addr %s705, 64
          %s707 = scalar_lea.hbm %s14, %s706
          %s708 = sshll.u32 %s701, 4
          %s709 = int_to_ptr.vmem [resolvable:$true] %s708
          %714 = dma.hbm_to_vmem [thread:$0]  %s707, 256, %s709, %s698, 64, 64, 4
        $region84: #{tpu_custom_call.1} parent=31 // pred_fallthru
          _
        // Predicated region
        $region85: #{tpu_custom_call.1} parent=31 // pred_check
          %p715 = pneg %p429
        $region86: #{tpu_custom_call.1} parent=31 // pred_check_branch
          %717 = sbr.rel (%p715) target = $region88
        $region87: #{tpu_custom_call.1} parent=31 // pred_region
          %p718 = scmp.lt.s32.totalorder %s29, 1
          %s719 = scalar_select %p718, %s29, 1
          %s720 = scalar_lea.vmem %s15, %s719
        $region88: #{tpu_custom_call.1} parent=31 // pred_fallthru
          _
        // Predicated region
        $region89: #{tpu_custom_call.1} parent=31 // pred_check
          %p721 = pneg %p455
        $region90: #{tpu_custom_call.1} parent=31 // pred_check_branch
          %723 = sbr.rel (%p721) target = $region92
        $region91: #{tpu_custom_call.1} parent=31 // pred_region
          %p724 = scmp.lt.s32.totalorder %s29, 1
          %s725 = scalar_select %p724, %s29, 1
          %s726 = smul.addr %s725, 8
          %s727 = smul.addr %s726, 4
          %s728 = scalar_lea.vmem %s16, %s727
        $region92: #{tpu_custom_call.1} parent=31 // pred_fallthru
          _
        // Predicated region
        $region93: #{tpu_custom_call.1} parent=31 // pred_check
          %p729 = pneg %p481
        $region94: #{tpu_custom_call.1} parent=31 // pred_check_branch
          %731 = sbr.rel (%p729) target = $region96
        $region95: #{tpu_custom_call.1} parent=31 // pred_region
          %p732 = scmp.lt.s32.totalorder %s29, 1
          %s733 = scalar_select %p732, %s29, 1
          %s734 = scalar_lea.vmem %s17, %s733
        $region96: #{tpu_custom_call.1} parent=31 // pred_fallthru
          _
      $region32: #{tpu_custom_call.1} parent=5 // pred_fallthru
        _
      %p735 = scmp.le.s32.totalorder 1, %s29
      %p736 = scmp.lt.s32.totalorder %s29, 3
      %p737 = pnand %p735, %p736
      %p738 = pneg %p737
      // Predicated region
      $region97: #{tpu_custom_call.1} parent=5 // pred_check
        _
      $region98: #{tpu_custom_call.1} parent=5 // pred_check_branch
        %740 = sbr.rel (%p737) target = $region100
      $region99: #{tpu_custom_call.1} parent=5 // pred_region
        %s741 = ssub.s32 %s29, 1
        // Predicated region
        $region101: #{tpu_custom_call.1} parent=99 // pred_check
          %p742 = pneg %p50
        $region102: #{tpu_custom_call.1} parent=99 // pred_check_branch
          %744 = sbr.rel (%p742) target = $region104
        $region103: #{tpu_custom_call.1} parent=99 // pred_region
          %745 = dma.done [#allocation5], 256
        $region104: #{tpu_custom_call.1} parent=99 // pred_fallthru
          _
        // Predicated region
        $region105: #{tpu_custom_call.1} parent=99 // pred_check
          %p746 = pneg %p71
        $region106: #{tpu_custom_call.1} parent=99 // pred_check_branch
          %748 = sbr.rel (%p746) target = $region108
        $region107: #{tpu_custom_call.1} parent=99 // pred_region
          %749 = dma.done [#allocation8], 32
        $region108: #{tpu_custom_call.1} parent=99 // pred_fallthru
          _
        %s750 = sand.u32 %s34, 1
        %s751 = scalar_lea.sflag [#allocation5], %s750
        %s752 = sand.u32 %s292, 1
        %s753 = smul.addr %s752, 16
        %s754 = scalar_lea.vmem [#allocation9], %s753
        // Predicated region
        $region109: #{tpu_custom_call.1} parent=99 // pred_check
          %p755 = pneg %p305
        $region110: #{tpu_custom_call.1} parent=99 // pred_check_branch
          %757 = sbr.rel (%p755) target = $region112
        $region111: #{tpu_custom_call.1} parent=99 // pred_region
          %758 = dma.done %s751, 256
        $region112: #{tpu_custom_call.1} parent=99 // pred_fallthru
          _
        %s759 = sand.u32 %s34, 1
        %s760 = scalar_lea.sflag [#allocation5], %s759
        %s761 = sand.u32 %s396, 1
        %s762 = smul.addr %s761, 16
        %s763 = scalar_lea.vmem [#allocation10], %s762
        // Predicated region
        $region113: #{tpu_custom_call.1} parent=99 // pred_check
          %p764 = pneg %p409
        $region114: #{tpu_custom_call.1} parent=99 // pred_check_branch
          %766 = sbr.rel (%p764) target = $region116
        $region115: #{tpu_custom_call.1} parent=99 // pred_region
          %767 = dma.done %s760, 256
        $region116: #{tpu_custom_call.1} parent=99 // pred_fallthru
          _
        %p768 = pneg %p50
        %p769 = pneg %p47
        %p770 = pneg %p71
        %p771 = pneg %p68
        %p772 = scmp.lt.s32.totalorder %s34, 1
        %s773 = scalar_select %p772, %s34, 1
        %s774 = scalar_lea.vmem %s2, %s773
        %p775 = pneg %p97
        %p776 = pneg %p94
        %p777 = scmp.lt.s32.totalorder %s34, 1
        %s778 = scalar_select %p777, %s34, 1
        %s779 = scalar_lea.vmem %s3, %s778
        %p780 = pneg %p123
        %p781 = pneg %p120
        %p782 = scmp.lt.s32.totalorder %s34, 1
        %s783 = scalar_select %p782, %s34, 1
        %s784 = smul.addr %s783, 4
        %s785 = smul.addr %s784, 4
        %s786 = scalar_lea.vmem %s4, %s785
        %p787 = pneg %p149
        %p788 = pneg %p146
        %p789 = scmp.lt.s32.totalorder %s34, 1
        %s790 = scalar_select %p789, %s34, 1
        %s791 = scalar_lea.vmem %s5, %s790
        %p792 = pneg %p175
        %p793 = pneg %p172
        %p794 = scmp.lt.s32.totalorder %s34, 1
        %s795 = scalar_select %p794, %s34, 1
        %s796 = smul.addr %s795, 4
        %s797 = smul.addr %s796, 4
        %s798 = scalar_lea.vmem %s6, %s797
        %p799 = pneg %p201
        %p800 = pneg %p198
        %p801 = scmp.lt.s32.totalorder %s34, 1
        %s802 = scalar_select %p801, %s34, 1
        %s803 = scalar_lea.vmem %s7, %s802
        %p804 = pneg %p227
        %p805 = pneg %p224
        %p806 = scmp.lt.s32.totalorder %s34, 1
        %s807 = scalar_select %p806, %s34, 1
        %s808 = smul.addr %s807, 4
        %s809 = smul.addr %s808, 4
        %s810 = scalar_lea.vmem %s8, %s809
        %p811 = pneg %p253
        %p812 = pneg %p250
        %p813 = scmp.lt.s32.totalorder %s34, 1
        %s814 = scalar_select %p813, %s34, 1
        %s815 = scalar_lea.vmem %s9, %s814
        %p816 = pneg %p279
        %p817 = pneg %p276
        %s818 = sand.u32 %s34, 1
        %s819 = scalar_lea.sflag [#allocation5], %s818
        %s820 = sand.u32 %s292, 1
        %s821 = smul.addr %s820, 16
        %s822 = scalar_lea.vmem [#allocation9], %s821
        %p823 = pneg %p305
        %p824 = pneg %p302
        %p825 = scmp.lt.s32.totalorder %s34, 1
        %s826 = scalar_select %p825, %s34, 1
        %s827 = scalar_lea.vmem %s11, %s826
        %p828 = pneg %p331
        %p829 = pneg %p328
        %p830 = scmp.lt.s32.totalorder %s34, 1
        %s831 = scalar_select %p830, %s34, 1
        %s832 = scalar_lea.vmem %s12, %s831
        %p833 = pneg %p357
        %p834 = pneg %p354
        %p835 = scmp.lt.s32.totalorder %s34, 1
        %s836 = scalar_select %p835, %s34, 1
        %s837 = scalar_lea.vmem %s13, %s836
        %p838 = pneg %p383
        %p839 = pneg %p380
        %s840 = sand.u32 %s34, 1
        %s841 = scalar_lea.sflag [#allocation5], %s840
        %s842 = sand.u32 %s396, 1
        %s843 = smul.addr %s842, 16
        %s844 = scalar_lea.vmem [#allocation10], %s843
        %p845 = pneg %p409
        %p846 = pneg %p406
        %p847 = scmp.lt.s32.totalorder %s34, 1
        %s848 = scalar_select %p847, %s34, 1
        %s849 = scalar_lea.vmem %s15, %s848
        %p850 = pneg %p435
        %p851 = pneg %p432
        %p852 = scmp.lt.s32.totalorder %s34, 1
        %s853 = scalar_select %p852, %s34, 1
        %s854 = smul.addr %s853, 8
        %s855 = smul.addr %s854, 4
        %s856 = scalar_lea.vmem %s16, %s855
        %p857 = pneg %p461
        %p858 = pneg %p458
        %p859 = scmp.lt.s32.totalorder %s34, 1
        %s860 = scalar_select %p859, %s34, 1
        %s861 = scalar_lea.vmem %s17, %s860
        %p862 = pneg %p487
        %p863 = pneg %p484
        %p864 = pneg %p508
        %p865 = pneg %p505
        %p866 = pneg %p529
        %p867 = pneg %p526
        %p868 = pneg %p550
        %p869 = pneg %p547
        %p870 = scmp.lt.s32.totalorder %s34, 1
        %s871 = scalar_select %p870, %s34, 1
        %s872 = scalar_lea.vmem %s2, %s871
        %p873 = scmp.lt.s32.totalorder %s34, 1
        %s874 = scalar_select %p873, %s34, 1
        %s875 = scalar_lea.vmem %s3, %s874
        %p876 = scmp.lt.s32.totalorder %s34, 1
        %s877 = scalar_select %p876, %s34, 1
        %s878 = smul.addr %s877, 4
        %s879 = smul.addr %s878, 4
        %s880 = scalar_lea.vmem %s4, %s879
        %p881 = scmp.lt.s32.totalorder %s34, 1
        %s882 = scalar_select %p881, %s34, 1
        %s883 = scalar_lea.vmem %s5, %s882
        %p884 = scmp.lt.s32.totalorder %s34, 1
        %s885 = scalar_select %p884, %s34, 1
        %s886 = smul.addr %s885, 4
        %s887 = smul.addr %s886, 4
        %s888 = scalar_lea.vmem %s6, %s887
        %p889 = scmp.lt.s32.totalorder %s34, 1
        %s890 = scalar_select %p889, %s34, 1
        %s891 = scalar_lea.vmem %s7, %s890
        %p892 = scmp.lt.s32.totalorder %s34, 1
        %s893 = scalar_select %p892, %s34, 1
        %s894 = smul.addr %s893, 4
        %s895 = smul.addr %s894, 4
        %s896 = scalar_lea.vmem %s8, %s895
        %p897 = scmp.lt.s32.totalorder %s34, 1
        %s898 = scalar_select %p897, %s34, 1
        %s899 = scalar_lea.vmem %s9, %s898
        %p900 = scmp.lt.s32.totalorder %s34, 1
        %s901 = scalar_select %p900, %s34, 1
        %s902 = scalar_lea.vmem %s11, %s901
        %p903 = scmp.lt.s32.totalorder %s34, 1
        %s904 = scalar_select %p903, %s34, 1
        %s905 = scalar_lea.vmem %s12, %s904
        %p906 = scmp.lt.s32.totalorder %s34, 1
        %s907 = scalar_select %p906, %s34, 1
        %s908 = scalar_lea.vmem %s13, %s907
        %p909 = scmp.lt.s32.totalorder %s34, 1
        %s910 = scalar_select %p909, %s34, 1
        %s911 = scalar_lea.vmem %s15, %s910
        %p912 = scmp.lt.s32.totalorder %s34, 1
        %s913 = scalar_select %p912, %s34, 1
        %s914 = smul.addr %s913, 8
        %s915 = smul.addr %s914, 4
        %s916 = scalar_lea.vmem %s16, %s915
        %p917 = scmp.lt.s32.totalorder %s34, 1
        %s918 = scalar_select %p917, %s34, 1
        %s919 = scalar_lea.vmem %s17, %s918
        %p921 = scmp.eq.s32.totalorder %s34, 0
        // Predicated region
        $region117: #{tpu_custom_call.1} parent=99 // pred_check
          %p922 = pneg %p921
        $region118: #{tpu_custom_call.1} parent=99 // pred_check_branch
          %924 = sbr.rel (%p922) target = $region120
        $region119: #{tpu_custom_call.1} parent=99 // pred_region
          %v925 = vld [vmem:[#allocation4] sm:$0xff]
          %v926 = vld [vmem:[#allocation4 + $0x8] sm:$0xff]
          %vm927 = vcmask 261120
          %928 = vst.msk [vmem:[#allocation2] sm:$0xff] %vm927, %v925
          %929 = vst.msk [vmem:[#allocation2 + $0x8] sm:$0xff] %vm927, %v926
        $region120: #{tpu_custom_call.1} parent=99 // pred_fallthru
          _
        %v930 = vld [vmem:[#allocation2] sm:$0xff]
        %v931 = vld [vmem:[#allocation2 + $0x8] sm:$0xff]
        %v932 = vld [vmem:[%s872] sm:$0x1]
        %v933 = vld [vmem:[%s875] sm:$0x1]
        %vm934 = vcmask 261120
        %v935 = vsel %vm934, %v930, 0.0
        %936 = vadd.xlane.f32.xlu0 %v935
        %v937 = vpop.xlane.xlu0 %936
        %v938 = vsel %vm934, %v931, 0.0
        %939 = vadd.xlane.f32.xlu0 %v938
        %v940 = vpop.xlane.xlu0 %939
        %v941 = vrcp.pop 32.0
        %v942 = vmul.f32 %v937, %v941
        %v943 = vmul.f32 %v940, %v941
        %v944 = vsub.f32 %v930, %v942
        %v945 = vsub.f32 %v931, %v943
        %v946 = vmul.f32 %v944, %v944
        %v947 = vmul.f32 %v945, %v945
        %v948 = vsel %vm934, %v946, 0.0
        %949 = vadd.xlane.f32.xlu0 %v948
        %v950 = vpop.xlane.xlu0 %949
        %v951 = vsel %vm934, %v947, 0.0
        %952 = vadd.xlane.f32.xlu0 %v951
        %v953 = vpop.xlane.xlu0 %952
        %v954 = vmul.f32 %v950, 0.032258064
        %v955 = vmul.f32 %v953, 0.032258064
        %v956 = vrsqrt.pop %v954
        %v957 = vmul.f32 %v954, %v956
        %vm958 = vcmp.eq.f32.partialorder %v954, inf
        %v959 = vsel %vm958, %v954, %v957
        %vm960 = vcmp.eq.f32.partialorder %v954, 0.0
        %v961 = vand.u32 %v954, 2147483648
        %v962 = vsel %vm960, %v961, %v959
        %v963 = vrsqrt.pop %v955
        %v964 = vmul.f32 %v955, %v963
        %vm965 = vcmp.eq.f32.partialorder %v955, inf
        %v966 = vsel %vm965, %v955, %v964
        %vm967 = vcmp.eq.f32.partialorder %v955, 0.0
        %v968 = vand.u32 %v955, 2147483648
        %v969 = vsel %vm967, %v968, %v966
        %v970 = vadd.f32 %v962, 1e-06
        %v971 = vadd.f32 %v969, 1e-06
        %v972 = vrcp.pop %v970
        %v973 = vrcp.pop %v971
        %v975 = vlaneseq
        %v976 = vshrl.u32 %v975, 7
        %v977 = vsub.s32 0, %v976
        %v978 = vrot.slane %v932, %v977
        %v980 = vmul.f32 %v978, %v944
        %v981 = vmul.f32 %v978, %v945
        %v982 = vmul.f32 %v980, %v972
        %v983 = vmul.f32 %v981, %v973
        %v985 = vlaneseq
        %v986 = vshrl.u32 %v985, 7
        %v987 = vsub.s32 0, %v986
        %v988 = vrot.slane %v933, %v987
        %v990 = vadd.f32 %v982, %v988
        %v991 = vadd.f32 %v983, %v988
        %v992 = vpack.c.bf16 %v991, %v990
        %v993 = vld [vmem:[%s880] sm:$0xf]
        %v994 = vld [vmem:[%s880 + $0x4] sm:$0xf]
        %v995 = vld [vmem:[%s880 + $0x8] sm:$0xf]
        %v996 = vld [vmem:[%s880 + $0xc] sm:$0xf]
        %v997 = vld [vmem:[%s883] sm:$0x1]
        %v999 = vlaneseq
        %v1000 = vshrl.u32 %v999, 7
        %v1001 = vsub.s32 0, %v1000
        %v1002 = vrot.slane %v997, %v1001
        %v1008 = vunpack.c.l.b16 %v993
        %v1009 = vunpack.c.l.b16 %v994
        %v1010 = vunpack.c.l.b16 %v995
        %v1011 = vunpack.c.l.b16 %v996
        %v1012 = vpack.c.b16 %v1009, %v1008
        %v1013 = vpack.c.b16 %v1011, %v1010
        %v1017 = vsel %vm934, %v992, 0
        %1019 = vmatprep.subr.bf16.mxu0 0
        %1020 = vmatpush1.bf16.msra.mxu0 0
        %1021 = vmatprep.subr.bf16.mxu0 0
        %1022 = vmatpush1.bf16.msra.mxu0 0
        %1023 = vmatprep.subr.bf16.mxu0 0
        %1024 = vmatpush1.bf16.msra.mxu0 0
        %1025 = vmatprep.subr.bf16.mxu0 0
        %1026 = vmatpush1.bf16.msra.mxu0 0
        %1027 = vmatprep.subr.bf16.mxu0 0
        %1028 = vmatpush1.bf16.msra.mxu0 0
        %1029 = vmatprep.subr.bf16.mxu0 0
        %1030 = vmatpush1.bf16.msra.mxu0 0
        %1031 = vmatprep.subr.bf16.mxu0 0
        %1032 = vmatpush1.bf16.msra.mxu0 %v1013
        %1033 = vmatprep.subr.bf16.mxu0 0
        %1034 = vmatpush1.bf16.msra.mxu0 %v1012
        %1035 = vmatprep.subr.bf16.mxu0 0
        %1036 = vmatpush2.bf16.msra.mxu0 0
        %1037 = vmatprep.subr.bf16.mxu0 0
        %1038 = vmatpush2.bf16.msra.mxu0 0
        %1039 = vmatprep.subr.bf16.mxu0 0
        %1040 = vmatpush2.bf16.msra.mxu0 0
        %1041 = vmatprep.subr.bf16.mxu0 0
        %1042 = vmatpush2.bf16.msra.mxu0 0
        %1043 = vmatprep.subr.bf16.mxu0 0
        %1044 = vmatpush2.bf16.msra.mxu0 0
        %1045 = vmatprep.subr.bf16.mxu0 0
        %1046 = vmatpush2.bf16.msra.mxu0 0
        %1047 = vmatprep.subr.bf16.mxu0 0
        %1048 = vmatpush2.bf16.msra.mxu0 0
        %1049 = vmatprep.subr.bf16.mxu0 0
        %1050 = vmatpush2.bf16.msra.mxu0 0
        %1051 = vmatprep.mubr.bf16.mxu0 0
        %1052 = vmatmul.mubr.bf16.gmra.mxu0 %v1017
        %v1053 = vpop.f32.mrf.mxu0
        %v1054 = vadd.f32 %v1002, %v1053
        %v1055 = vpop.f32.mrf.mxu0
        %v1056 = vpop.f32.mrf.mxu0
        %v1057 = vadd.f32 %v1002, %v1056
        %v1058 = vpop.f32.mrf.mxu0
        %1059 = vdwg.mxu0
        %v1060 = vld [vmem:[%s888] sm:$0xf]
        %v1061 = vld [vmem:[%s888 + $0x4] sm:$0xf]
        %v1062 = vld [vmem:[%s888 + $0x8] sm:$0xf]
        %v1063 = vld [vmem:[%s888 + $0xc] sm:$0xf]
        %v1064 = vld [vmem:[%s891] sm:$0x1]
        %v1066 = vlaneseq
        %v1067 = vshrl.u32 %v1066, 7
        %v1068 = vsub.s32 0, %v1067
        %v1069 = vrot.slane %v1064, %v1068
        %v1075 = vunpack.c.l.b16 %v1060
        %v1076 = vunpack.c.l.b16 %v1061
        %v1077 = vunpack.c.l.b16 %v1062
        %v1078 = vunpack.c.l.b16 %v1063
        %v1079 = vpack.c.b16 %v1076, %v1075
        %v1080 = vpack.c.b16 %v1078, %v1077
        %1083 = vmatprep.subr.bf16.mxu0 0
        %1084 = vmatpush1.bf16.msra.mxu0 0
        %1085 = vmatprep.subr.bf16.mxu0 0
        %1086 = vmatpush1.bf16.msra.mxu0 0
        %1087 = vmatprep.subr.bf16.mxu0 0
        %1088 = vmatpush1.bf16.msra.mxu0 0
        %1089 = vmatprep.subr.bf16.mxu0 0
        %1090 = vmatpush1.bf16.msra.mxu0 0
        %1091 = vmatprep.subr.bf16.mxu0 0
        %1092 = vmatpush1.bf16.msra.mxu0 0
        %1093 = vmatprep.subr.bf16.mxu0 0
        %1094 = vmatpush1.bf16.msra.mxu0 0
        %1095 = vmatprep.subr.bf16.mxu0 0
        %1096 = vmatpush1.bf16.msra.mxu0 %v1080
        %1097 = vmatprep.subr.bf16.mxu0 0
        %1098 = vmatpush1.bf16.msra.mxu0 %v1079
        %1099 = vmatprep.subr.bf16.mxu0 0
        %1100 = vmatpush2.bf16.msra.mxu0 0
        %1101 = vmatprep.subr.bf16.mxu0 0
        %1102 = vmatpush2.bf16.msra.mxu0 0
        %1103 = vmatprep.subr.bf16.mxu0 0
        %1104 = vmatpush2.bf16.msra.mxu0 0
        %1105 = vmatprep.subr.bf16.mxu0 0
        %1106 = vmatpush2.bf16.msra.mxu0 0
        %1107 = vmatprep.subr.bf16.mxu0 0
        %1108 = vmatpush2.bf16.msra.mxu0 0
        %1109 = vmatprep.subr.bf16.mxu0 0
        %1110 = vmatpush2.bf16.msra.mxu0 0
        %1111 = vmatprep.subr.bf16.mxu0 0
        %1112 = vmatpush2.bf16.msra.mxu0 0
        %1113 = vmatprep.subr.bf16.mxu0 0
        %1114 = vmatpush2.bf16.msra.mxu0 0
        %1115 = vmatprep.mubr.bf16.mxu0 0
        %1116 = vmatmul.mubr.bf16.gmra.mxu0 %v1017
        %v1117 = vpop.f32.mrf.mxu0
        %v1118 = vadd.f32 %v1069, %v1117
        %v1119 = vpop.f32.mrf.mxu0
        %v1120 = vpop.f32.mrf.mxu0
        %v1121 = vadd.f32 %v1069, %v1120
        %v1122 = vpop.f32.mrf.mxu0
        %1123 = vdwg.mxu0
        %v1124 = vld [vmem:[%s896] sm:$0xf]
        %v1125 = vld [vmem:[%s896 + $0x4] sm:$0xf]
        %v1126 = vld [vmem:[%s896 + $0x8] sm:$0xf]
        %v1127 = vld [vmem:[%s896 + $0xc] sm:$0xf]
        %v1128 = vld [vmem:[%s899] sm:$0x1]
        %v1130 = vlaneseq
        %v1131 = vshrl.u32 %v1130, 7
        %v1132 = vsub.s32 0, %v1131
        %v1133 = vrot.slane %v1128, %v1132
        %v1139 = vunpack.c.l.b16 %v1124
        %v1140 = vunpack.c.l.b16 %v1125
        %v1141 = vunpack.c.l.b16 %v1126
        %v1142 = vunpack.c.l.b16 %v1127
        %v1143 = vpack.c.b16 %v1140, %v1139
        %v1144 = vpack.c.b16 %v1142, %v1141
        %1147 = vmatprep.subr.bf16.mxu0 0
        %1148 = vmatpush1.bf16.msra.mxu0 0
        %1149 = vmatprep.subr.bf16.mxu0 0
        %1150 = vmatpush1.bf16.msra.mxu0 0
        %1151 = vmatprep.subr.bf16.mxu0 0
        %1152 = vmatpush1.bf16.msra.mxu0 0
        %1153 = vmatprep.subr.bf16.mxu0 0
        %1154 = vmatpush1.bf16.msra.mxu0 0
        %1155 = vmatprep.subr.bf16.mxu0 0
        %1156 = vmatpush1.bf16.msra.mxu0 0
        %1157 = vmatprep.subr.bf16.mxu0 0
        %1158 = vmatpush1.bf16.msra.mxu0 0
        %1159 = vmatprep.subr.bf16.mxu0 0
        %1160 = vmatpush1.bf16.msra.mxu0 %v1144
        %1161 = vmatprep.subr.bf16.mxu0 0
        %1162 = vmatpush1.bf16.msra.mxu0 %v1143
        %1163 = vmatprep.subr.bf16.mxu0 0
        %1164 = vmatpush2.bf16.msra.mxu0 0
        %1165 = vmatprep.subr.bf16.mxu0 0
        %1166 = vmatpush2.bf16.msra.mxu0 0
        %1167 = vmatprep.subr.bf16.mxu0 0
        %1168 = vmatpush2.bf16.msra.mxu0 0
        %1169 = vmatprep.subr.bf16.mxu0 0
        %1170 = vmatpush2.bf16.msra.mxu0 0
        %1171 = vmatprep.subr.bf16.mxu0 0
        %1172 = vmatpush2.bf16.msra.mxu0 0
        %1173 = vmatprep.subr.bf16.mxu0 0
        %1174 = vmatpush2.bf16.msra.mxu0 0
        %1175 = vmatprep.subr.bf16.mxu0 0
        %1176 = vmatpush2.bf16.msra.mxu0 0
        %1177 = vmatprep.subr.bf16.mxu0 0
        %1178 = vmatpush2.bf16.msra.mxu0 0
        %1179 = vmatprep.mubr.bf16.mxu0 0
        %1180 = vmatmul.mubr.bf16.gmra.mxu0 %v1017
        %v1181 = vpop.f32.mrf.mxu0
        %v1182 = vadd.f32 %v1133, %v1181
        %v1183 = vpop.f32.mrf.mxu0
        %v1184 = vpop.f32.mrf.mxu0
        %v1185 = vadd.f32 %v1133, %v1184
        %v1186 = vpop.f32.mrf.mxu0
        %1187 = vdwg.mxu0
        %v1188 = vld [vmem:[#allocation7] sm:$0x1]
        %vm1189 = vcmp.ne.f32.partialorder %v1188, 0.0
        %v1190 = vpack.c.bf16 %v1054, %v1054
        %v1191 = vpack.c.bf16 %v1118, %v1118
        %v1192 = vpack.c.bf16 %v1182, %v1182
        %vm1193 = vcmask 64512
        %v1195 = vsel %vm1193, %v1190, 0
        %v1198 = vsel %vm1193, %v1191, 0
        %1200 = vmatprep.subr.bf16.mxu0 0
        %1201 = vmatpush1.bf16.xpose.msra.mxu0 0
        %1202 = vmatprep.subr.bf16.mxu0 0
        %1203 = vmatpush1.bf16.xpose.msra.mxu0 0
        %1204 = vmatprep.subr.bf16.mxu0 0
        %1205 = vmatpush1.bf16.xpose.msra.mxu0 0
        %1206 = vmatprep.subr.bf16.mxu0 0
        %1207 = vmatpush1.bf16.xpose.msra.mxu0 0
        %1208 = vmatprep.subr.bf16.mxu0 0
        %1209 = vmatpush1.bf16.xpose.msra.mxu0 0
        %1210 = vmatprep.subr.bf16.mxu0 0
        %1211 = vmatpush1.bf16.xpose.msra.mxu0 0
        %1212 = vmatprep.subr.bf16.mxu0 0
        %1213 = vmatpush1.bf16.xpose.msra.mxu0 0
        %1214 = vmatprep.subr.bf16.mxu0 0
        %1215 = vmatpush1.bf16.xpose.msra.mxu0 %v1198
        %1216 = vmatprep.subr.bf16.mxu0 0
        %1217 = vmatpush2.bf16.xpose.msra.mxu0 0
        %1218 = vmatprep.subr.bf16.mxu0 0
        %1219 = vmatpush2.bf16.xpose.msra.mxu0 0
        %1220 = vmatprep.subr.bf16.mxu0 0
        %1221 = vmatpush2.bf16.xpose.msra.mxu0 0
        %1222 = vmatprep.subr.bf16.mxu0 0
        %1223 = vmatpush2.bf16.xpose.msra.mxu0 0
        %1224 = vmatprep.subr.bf16.mxu0 0
        %1225 = vmatpush2.bf16.xpose.msra.mxu0 0
        %1226 = vmatprep.subr.bf16.mxu0 0
        %1227 = vmatpush2.bf16.xpose.msra.mxu0 0
        %1228 = vmatprep.subr.bf16.mxu0 0
        %1229 = vmatpush2.bf16.xpose.msra.mxu0 0
        %1230 = vmatprep.subr.bf16.mxu0 0
        %1231 = vmatpush2.bf16.xpose.msra.mxu0 0
        %1232 = vmatprep.mubr.bf16.mxu0 0
        %1233 = vmatmul.mubr.bf16.gmra.mxu0 %v1195
        %v1234 = vpop.f32.mrf.mxu0
        %v1235 = vadd.f32 0.0, %v1234
        %v1236 = vpop.f32.mrf.mxu0
        %v1237 = vpop.f32.mrf.mxu0
        %v1238 = vpop.f32.mrf.mxu0
        %1239 = vdwg.mxu0
        %v1240 = vmul.f32 %v1235, 0.35355338
        %v1241 = vsel %vm1189, 1, 0
        %v1242 = vlaneseq
        %v1243 = vshrl.u32 %v1242, 7
        %v1244 = vsub.s32 0, %v1243
        %v1245 = vrot.slane %v1241, %v1244
        %vm1246 = vcmp.eq.s32.totalorder %v1245, 1
        %v1247 = vsel %vm1246, %v1240, -1e+09
        %v1248 = vsel %vm1193, %v1247, -inf
        %1249 = vmax.xlane.f32.xlu0 %v1248
        %v1250 = vpop.xlane.xlu0 %1249
        %v1251 = vsub.f32 %v1247, %v1250
        %v1252 = vmul.f32 %v1251, 1.442695
        %v1253 = vpow.pop %v1252
        %v1254 = vsel %vm1193, %v1253, 0.0
        %1255 = vadd.xlane.f32.xlu0 %v1254
        %v1256 = vpop.xlane.xlu0 %1255
        %v1257 = vrcp.pop %v1256
        %v1258 = vmul.f32 %v1253, %v1257
        %v1259 = vpack.c.bf16 %v1258, %v1258
        %v1261 = vsel %vm1193, %v1259, 0
        %vm1263 = vcmask 1043456
        %v1265 = vsel %vm1263, %v1192, 0
        %1267 = vmatprep.subr.bf16.mxu0 0
        %1268 = vmatpush1.bf16.msra.mxu0 0
        %1269 = vmatprep.subr.bf16.mxu0 0
        %1270 = vmatpush1.bf16.msra.mxu0 0
        %1271 = vmatprep.subr.bf16.mxu0 0
        %1272 = vmatpush1.bf16.msra.mxu0 0
        %1273 = vmatprep.subr.bf16.mxu0 0
        %1274 = vmatpush1.bf16.msra.mxu0 0
        %1275 = vmatprep.subr.bf16.mxu0 0
        %1276 = vmatpush1.bf16.msra.mxu0 0
        %1277 = vmatprep.subr.bf16.mxu0 0
        %1278 = vmatpush1.bf16.msra.mxu0 0
        %1279 = vmatprep.subr.bf16.mxu0 0
        %1280 = vmatpush1.bf16.msra.mxu0 0
        %1281 = vmatprep.subr.bf16.mxu0 0
        %1282 = vmatpush1.bf16.msra.mxu0 %v1265
        %1283 = vmatprep.subr.bf16.mxu0 0
        %1284 = vmatpush2.bf16.msra.mxu0 0
        %1285 = vmatprep.subr.bf16.mxu0 0
        %1286 = vmatpush2.bf16.msra.mxu0 0
        %1287 = vmatprep.subr.bf16.mxu0 0
        %1288 = vmatpush2.bf16.msra.mxu0 0
        %1289 = vmatprep.subr.bf16.mxu0 0
        %1290 = vmatpush2.bf16.msra.mxu0 0
        %1291 = vmatprep.subr.bf16.mxu0 0
        %1292 = vmatpush2.bf16.msra.mxu0 0
        %1293 = vmatprep.subr.bf16.mxu0 0
        %1294 = vmatpush2.bf16.msra.mxu0 0
        %1295 = vmatprep.subr.bf16.mxu0 0
        %1296 = vmatpush2.bf16.msra.mxu0 0
        %1297 = vmatprep.subr.bf16.mxu0 0
        %1298 = vmatpush2.bf16.msra.mxu0 0
        %1299 = vmatprep.mubr.bf16.mxu0 0
        %1300 = vmatmul.mubr.bf16.gmra.mxu0 %v1261
        %v1301 = vpop.f32.mrf.mxu0
        %v1302 = vadd.f32 0.0, %v1301
        %v1303 = vpop.f32.mrf.mxu0
        %v1304 = vpop.f32.mrf.mxu0
        %v1305 = vpop.f32.mrf.mxu0
        %1306 = vdwg.mxu0
        %1307 = vst.msk [vmem:[#allocation3] sm:$0xff] %vm1193, %v1302
        %1309 = vrot.lane.b32.xlu0 %v1190, 120
        %v1310 = vpop.permute.xlu0 %1309
        %1312 = vrot.lane.b32.xlu0 %v1191, 120
        %v1313 = vpop.permute.xlu0 %1312
        %v1315 = vsel %vm1193, %v1310, 0
        %v1318 = vsel %vm1193, %v1313, 0
        %1320 = vmatprep.subr.bf16.mxu0 0
        %1321 = vmatpush1.bf16.xpose.msra.mxu0 0
        %1322 = vmatprep.subr.bf16.mxu0 0
        %1323 = vmatpush1.bf16.xpose.msra.mxu0 0
        %1324 = vmatprep.subr.bf16.mxu0 0
        %1325 = vmatpush1.bf16.xpose.msra.mxu0 0
        %1326 = vmatprep.subr.bf16.mxu0 0
        %1327 = vmatpush1.bf16.xpose.msra.mxu0 0
        %1328 = vmatprep.subr.bf16.mxu0 0
        %1329 = vmatpush1.bf16.xpose.msra.mxu0 0
        %1330 = vmatprep.subr.bf16.mxu0 0
        %1331 = vmatpush1.bf16.xpose.msra.mxu0 0
        %1332 = vmatprep.subr.bf16.mxu0 0
        %1333 = vmatpush1.bf16.xpose.msra.mxu0 0
        %1334 = vmatprep.subr.bf16.mxu0 0
        %1335 = vmatpush1.bf16.xpose.msra.mxu0 %v1318
        %1336 = vmatprep.subr.bf16.mxu0 0
        %1337 = vmatpush2.bf16.xpose.msra.mxu0 0
        %1338 = vmatprep.subr.bf16.mxu0 0
        %1339 = vmatpush2.bf16.xpose.msra.mxu0 0
        %1340 = vmatprep.subr.bf16.mxu0 0
        %1341 = vmatpush2.bf16.xpose.msra.mxu0 0
        %1342 = vmatprep.subr.bf16.mxu0 0
        %1343 = vmatpush2.bf16.xpose.msra.mxu0 0
        %1344 = vmatprep.subr.bf16.mxu0 0
        %1345 = vmatpush2.bf16.xpose.msra.mxu0 0
        %1346 = vmatprep.subr.bf16.mxu0 0
        %1347 = vmatpush2.bf16.xpose.msra.mxu0 0
        %1348 = vmatprep.subr.bf16.mxu0 0
        %1349 = vmatpush2.bf16.xpose.msra.mxu0 0
        %1350 = vmatprep.subr.bf16.mxu0 0
        %1351 = vmatpush2.bf16.xpose.msra.mxu0 0
        %1352 = vmatprep.mubr.bf16.mxu0 0
        %1353 = vmatmul.mubr.bf16.gmra.mxu0 %v1315
        %v1354 = vpop.f32.mrf.mxu0
        %v1355 = vadd.f32 0.0, %v1354
        %v1356 = vpop.f32.mrf.mxu0
        %v1357 = vpop.f32.mrf.mxu0
        %v1358 = vpop.f32.mrf.mxu0
        %1359 = vdwg.mxu0
        %v1360 = vmul.f32 %v1355, 0.35355338
        %v1361 = vsel %vm1246, %v1360, -1e+09
        %v1362 = vsel %vm1193, %v1361, -inf
        %1363 = vmax.xlane.f32.xlu0 %v1362
        %v1364 = vpop.xlane.xlu0 %1363
        %v1365 = vsub.f32 %v1361, %v1364
        %v1366 = vmul.f32 %v1365, 1.442695
        %v1367 = vpow.pop %v1366
        %v1368 = vsel %vm1193, %v1367, 0.0
        %1369 = vadd.xlane.f32.xlu0 %v1368
        %v1370 = vpop.xlane.xlu0 %1369
        %v1371 = vrcp.pop %v1370
        %v1372 = vmul.f32 %v1367, %v1371
        %v1373 = vpack.c.bf16 %v1372, %v1372
        %1375 = vrot.lane.b32.xlu0 %v1192, 120
        %v1376 = vpop.permute.xlu0 %1375
        %v1378 = vsel %vm1193, %v1373, 0
        %v1381 = vsel %vm1263, %v1376, 0
        %1383 = vmatprep.subr.bf16.mxu0 0
        %1384 = vmatpush1.bf16.msra.mxu0 0
        %1385 = vmatprep.subr.bf16.mxu0 0
        %1386 = vmatpush1.bf16.msra.mxu0 0
        %1387 = vmatprep.subr.bf16.mxu0 0
        %1388 = vmatpush1.bf16.msra.mxu0 0
        %1389 = vmatprep.subr.bf16.mxu0 0
        %1390 = vmatpush1.bf16.msra.mxu0 0
        %1391 = vmatprep.subr.bf16.mxu0 0
        %1392 = vmatpush1.bf16.msra.mxu0 0
        %1393 = vmatprep.subr.bf16.mxu0 0
        %1394 = vmatpush1.bf16.msra.mxu0 0
        %1395 = vmatprep.subr.bf16.mxu0 0
        %1396 = vmatpush1.bf16.msra.mxu0 0
        %1397 = vmatprep.subr.bf16.mxu0 0
        %1398 = vmatpush1.bf16.msra.mxu0 %v1381
        %1399 = vmatprep.subr.bf16.mxu0 0
        %1400 = vmatpush2.bf16.msra.mxu0 0
        %1401 = vmatprep.subr.bf16.mxu0 0
        %1402 = vmatpush2.bf16.msra.mxu0 0
        %1403 = vmatprep.subr.bf16.mxu0 0
        %1404 = vmatpush2.bf16.msra.mxu0 0
        %1405 = vmatprep.subr.bf16.mxu0 0
        %1406 = vmatpush2.bf16.msra.mxu0 0
        %1407 = vmatprep.subr.bf16.mxu0 0
        %1408 = vmatpush2.bf16.msra.mxu0 0
        %1409 = vmatprep.subr.bf16.mxu0 0
        %1410 = vmatpush2.bf16.msra.mxu0 0
        %1411 = vmatprep.subr.bf16.mxu0 0
        %1412 = vmatpush2.bf16.msra.mxu0 0
        %1413 = vmatprep.subr.bf16.mxu0 0
        %1414 = vmatpush2.bf16.msra.mxu0 0
        %1415 = vmatprep.mubr.bf16.mxu0 0
        %1416 = vmatmul.mubr.bf16.gmra.mxu0 %v1378
        %v1417 = vpop.f32.mrf.mxu0
        %v1418 = vadd.f32 0.0, %v1417
        %v1419 = vpop.f32.mrf.mxu0
        %v1420 = vpop.f32.mrf.mxu0
        %v1421 = vpop.f32.mrf.mxu0
        %1422 = vdwg.mxu0
        %1424 = vrot.lane.b32.xlu0 %v1418, 8
        %v1425 = vpop.permute.xlu0 %1424
        %vm1427 = vcmask 130112
        %1428 = vst.msk [vmem:[#allocation3] sm:$0xff] %vm1427, %v1425
        %1429 = vrot.lane.b32.xlu0 %v1190, 112
        %v1430 = vpop.permute.xlu0 %1429
        %1431 = vrot.lane.b32.xlu0 %v1191, 112
        %v1432 = vpop.permute.xlu0 %1431
        %v1434 = vsel %vm1193, %v1430, 0
        %v1437 = vsel %vm1193, %v1432, 0
        %1439 = vmatprep.subr.bf16.mxu0 0
        %1440 = vmatpush1.bf16.xpose.msra.mxu0 0
        %1441 = vmatprep.subr.bf16.mxu0 0
        %1442 = vmatpush1.bf16.xpose.msra.mxu0 0
        %1443 = vmatprep.subr.bf16.mxu0 0
        %1444 = vmatpush1.bf16.xpose.msra.mxu0 0
        %1445 = vmatprep.subr.bf16.mxu0 0
        %1446 = vmatpush1.bf16.xpose.msra.mxu0 0
        %1447 = vmatprep.subr.bf16.mxu0 0
        %1448 = vmatpush1.bf16.xpose.msra.mxu0 0
        %1449 = vmatprep.subr.bf16.mxu0 0
        %1450 = vmatpush1.bf16.xpose.msra.mxu0 0
        %1451 = vmatprep.subr.bf16.mxu0 0
        %1452 = vmatpush1.bf16.xpose.msra.mxu0 0
        %1453 = vmatprep.subr.bf16.mxu0 0
        %1454 = vmatpush1.bf16.xpose.msra.mxu0 %v1437
        %1455 = vmatprep.subr.bf16.mxu0 0
        %1456 = vmatpush2.bf16.xpose.msra.mxu0 0
        %1457 = vmatprep.subr.bf16.mxu0 0
        %1458 = vmatpush2.bf16.xpose.msra.mxu0 0
        %1459 = vmatprep.subr.bf16.mxu0 0
        %1460 = vmatpush2.bf16.xpose.msra.mxu0 0
        %1461 = vmatprep.subr.bf16.mxu0 0
        %1462 = vmatpush2.bf16.xpose.msra.mxu0 0
        %1463 = vmatprep.subr.bf16.mxu0 0
        %1464 = vmatpush2.bf16.xpose.msra.mxu0 0
        %1465 = vmatprep.subr.bf16.mxu0 0
        %1466 = vmatpush2.bf16.xpose.msra.mxu0 0
        %1467 = vmatprep.subr.bf16.mxu0 0
        %1468 = vmatpush2.bf16.xpose.msra.mxu0 0
        %1469 = vmatprep.subr.bf16.mxu0 0
        %1470 = vmatpush2.bf16.xpose.msra.mxu0 0
        %1471 = vmatprep.mubr.bf16.mxu0 0
        %1472 = vmatmul.mubr.bf16.gmra.mxu0 %v1434
        %v1473 = vpop.f32.mrf.mxu0
        %v1474 = vadd.f32 0.0, %v1473
        %v1475 = vpop.f32.mrf.mxu0
        %v1476 = vpop.f32.mrf.mxu0
        %v1477 = vpop.f32.mrf.mxu0
        %1478 = vdwg.mxu0
        %v1479 = vmul.f32 %v1474, 0.35355338
        %v1480 = vsel %vm1246, %v1479, -1e+09
        %v1481 = vsel %vm1193, %v1480, -inf
        %1482 = vmax.xlane.f32.xlu0 %v1481
        %v1483 = vpop.xlane.xlu0 %1482
        %v1484 = vsub.f32 %v1480, %v1483
        %v1485 = vmul.f32 %v1484, 1.442695
        %v1486 = vpow.pop %v1485
        %v1487 = vsel %vm1193, %v1486, 0.0
        %1488 = vadd.xlane.f32.xlu0 %v1487
        %v1489 = vpop.xlane.xlu0 %1488
        %v1490 = vrcp.pop %v1489
        %v1491 = vmul.f32 %v1486, %v1490
        %v1492 = vpack.c.bf16 %v1491, %v1491
        %1493 = vrot.lane.b32.xlu0 %v1192, 112
        %v1494 = vpop.permute.xlu0 %1493
        %v1496 = vsel %vm1193, %v1492, 0
        %v1499 = vsel %vm1263, %v1494, 0
        %1501 = vmatprep.subr.bf16.mxu0 0
        %1502 = vmatpush1.bf16.msra.mxu0 0
        %1503 = vmatprep.subr.bf16.mxu0 0
        %1504 = vmatpush1.bf16.msra.mxu0 0
        %1505 = vmatprep.subr.bf16.mxu0 0
        %1506 = vmatpush1.bf16.msra.mxu0 0
        %1507 = vmatprep.subr.bf16.mxu0 0
        %1508 = vmatpush1.bf16.msra.mxu0 0
        %1509 = vmatprep.subr.bf16.mxu0 0
        %1510 = vmatpush1.bf16.msra.mxu0 0
        %1511 = vmatprep.subr.bf16.mxu0 0
        %1512 = vmatpush1.bf16.msra.mxu0 0
        %1513 = vmatprep.subr.bf16.mxu0 0
        %1514 = vmatpush1.bf16.msra.mxu0 0
        %1515 = vmatprep.subr.bf16.mxu0 0
        %1516 = vmatpush1.bf16.msra.mxu0 %v1499
        %1517 = vmatprep.subr.bf16.mxu0 0
        %1518 = vmatpush2.bf16.msra.mxu0 0
        %1519 = vmatprep.subr.bf16.mxu0 0
        %1520 = vmatpush2.bf16.msra.mxu0 0
        %1521 = vmatprep.subr.bf16.mxu0 0
        %1522 = vmatpush2.bf16.msra.mxu0 0
        %1523 = vmatprep.subr.bf16.mxu0 0
        %1524 = vmatpush2.bf16.msra.mxu0 0
        %1525 = vmatprep.subr.bf16.mxu0 0
        %1526 = vmatpush2.bf16.msra.mxu0 0
        %1527 = vmatprep.subr.bf16.mxu0 0
        %1528 = vmatpush2.bf16.msra.mxu0 0
        %1529 = vmatprep.subr.bf16.mxu0 0
        %1530 = vmatpush2.bf16.msra.mxu0 0
        %1531 = vmatprep.subr.bf16.mxu0 0
        %1532 = vmatpush2.bf16.msra.mxu0 0
        %1533 = vmatprep.mubr.bf16.mxu0 0
        %1534 = vmatmul.mubr.bf16.gmra.mxu0 %v1496
        %v1535 = vpop.f32.mrf.mxu0
        %v1536 = vadd.f32 0.0, %v1535
        %v1537 = vpop.f32.mrf.mxu0
        %v1538 = vpop.f32.mrf.mxu0
        %v1539 = vpop.f32.mrf.mxu0
        %1540 = vdwg.mxu0
        %1542 = vrot.lane.b32.xlu0 %v1536, 16
        %v1543 = vpop.permute.xlu0 %1542
        %vm1545 = vcmask 195712
        %1546 = vst.msk [vmem:[#allocation3] sm:$0xff] %vm1545, %v1543
        %1547 = vrot.lane.b32.xlu0 %v1190, 104
        %v1548 = vpop.permute.xlu0 %1547
        %1549 = vrot.lane.b32.xlu0 %v1191, 104
        %v1550 = vpop.permute.xlu0 %1549
        %v1552 = vsel %vm1193, %v1548, 0
        %v1555 = vsel %vm1193, %v1550, 0
        %1557 = vmatprep.subr.bf16.mxu0 0
        %1558 = vmatpush1.bf16.xpose.msra.mxu0 0
        %1559 = vmatprep.subr.bf16.mxu0 0
        %1560 = vmatpush1.bf16.xpose.msra.mxu0 0
        %1561 = vmatprep.subr.bf16.mxu0 0
        %1562 = vmatpush1.bf16.xpose.msra.mxu0 0
        %1563 = vmatprep.subr.bf16.mxu0 0
        %1564 = vmatpush1.bf16.xpose.msra.mxu0 0
        %1565 = vmatprep.subr.bf16.mxu0 0
        %1566 = vmatpush1.bf16.xpose.msra.mxu0 0
        %1567 = vmatprep.subr.bf16.mxu0 0
        %1568 = vmatpush1.bf16.xpose.msra.mxu0 0
        %1569 = vmatprep.subr.bf16.mxu0 0
        %1570 = vmatpush1.bf16.xpose.msra.mxu0 0
        %1571 = vmatprep.subr.bf16.mxu0 0
        %1572 = vmatpush1.bf16.xpose.msra.mxu0 %v1555
        %1573 = vmatprep.subr.bf16.mxu0 0
        %1574 = vmatpush2.bf16.xpose.msra.mxu0 0
        %1575 = vmatprep.subr.bf16.mxu0 0
        %1576 = vmatpush2.bf16.xpose.msra.mxu0 0
        %1577 = vmatprep.subr.bf16.mxu0 0
        %1578 = vmatpush2.bf16.xpose.msra.mxu0 0
        %1579 = vmatprep.subr.bf16.mxu0 0
        %1580 = vmatpush2.bf16.xpose.msra.mxu0 0
        %1581 = vmatprep.subr.bf16.mxu0 0
        %1582 = vmatpush2.bf16.xpose.msra.mxu0 0
        %1583 = vmatprep.subr.bf16.mxu0 0
        %1584 = vmatpush2.bf16.xpose.msra.mxu0 0
        %1585 = vmatprep.subr.bf16.mxu0 0
        %1586 = vmatpush2.bf16.xpose.msra.mxu0 0
        %1587 = vmatprep.subr.bf16.mxu0 0
        %1588 = vmatpush2.bf16.xpose.msra.mxu0 0
        %1589 = vmatprep.mubr.bf16.mxu0 0
        %1590 = vmatmul.mubr.bf16.gmra.mxu0 %v1552
        %v1591 = vpop.f32.mrf.mxu0
        %v1592 = vadd.f32 0.0, %v1591
        %v1593 = vpop.f32.mrf.mxu0
        %v1594 = vpop.f32.mrf.mxu0
        %v1595 = vpop.f32.mrf.mxu0
        %1596 = vdwg.mxu0
        %v1597 = vmul.f32 %v1592, 0.35355338
        %v1598 = vsel %vm1246, %v1597, -1e+09
        %v1599 = vsel %vm1193, %v1598, -inf
        %1600 = vmax.xlane.f32.xlu0 %v1599
        %v1601 = vpop.xlane.xlu0 %1600
        %v1602 = vsub.f32 %v1598, %v1601
        %v1603 = vmul.f32 %v1602, 1.442695
        %v1604 = vpow.pop %v1603
        %v1605 = vsel %vm1193, %v1604, 0.0
        %1606 = vadd.xlane.f32.xlu0 %v1605
        %v1607 = vpop.xlane.xlu0 %1606
        %v1608 = vrcp.pop %v1607
        %v1609 = vmul.f32 %v1604, %v1608
        %v1610 = vpack.c.bf16 %v1609, %v1609
        %1611 = vrot.lane.b32.xlu0 %v1192, 104
        %v1612 = vpop.permute.xlu0 %1611
        %v1614 = vsel %vm1193, %v1610, 0
        %v1617 = vsel %vm1263, %v1612, 0
        %1619 = vmatprep.subr.bf16.mxu0 0
        %1620 = vmatpush1.bf16.msra.mxu0 0
        %1621 = vmatprep.subr.bf16.mxu0 0
        %1622 = vmatpush1.bf16.msra.mxu0 0
        %1623 = vmatprep.subr.bf16.mxu0 0
        %1624 = vmatpush1.bf16.msra.mxu0 0
        %1625 = vmatprep.subr.bf16.mxu0 0
        %1626 = vmatpush1.bf16.msra.mxu0 0
        %1627 = vmatprep.subr.bf16.mxu0 0
        %1628 = vmatpush1.bf16.msra.mxu0 0
        %1629 = vmatprep.subr.bf16.mxu0 0
        %1630 = vmatpush1.bf16.msra.mxu0 0
        %1631 = vmatprep.subr.bf16.mxu0 0
        %1632 = vmatpush1.bf16.msra.mxu0 0
        %1633 = vmatprep.subr.bf16.mxu0 0
        %1634 = vmatpush1.bf16.msra.mxu0 %v1617
        %1635 = vmatprep.subr.bf16.mxu0 0
        %1636 = vmatpush2.bf16.msra.mxu0 0
        %1637 = vmatprep.subr.bf16.mxu0 0
        %1638 = vmatpush2.bf16.msra.mxu0 0
        %1639 = vmatprep.subr.bf16.mxu0 0
        %1640 = vmatpush2.bf16.msra.mxu0 0
        %1641 = vmatprep.subr.bf16.mxu0 0
        %1642 = vmatpush2.bf16.msra.mxu0 0
        %1643 = vmatprep.subr.bf16.mxu0 0
        %1644 = vmatpush2.bf16.msra.mxu0 0
        %1645 = vmatprep.subr.bf16.mxu0 0
        %1646 = vmatpush2.bf16.msra.mxu0 0
        %1647 = vmatprep.subr.bf16.mxu0 0
        %1648 = vmatpush2.bf16.msra.mxu0 0
        %1649 = vmatprep.subr.bf16.mxu0 0
        %1650 = vmatpush2.bf16.msra.mxu0 0
        %1651 = vmatprep.mubr.bf16.mxu0 0
        %1652 = vmatmul.mubr.bf16.gmra.mxu0 %v1614
        %v1653 = vpop.f32.mrf.mxu0
        %v1654 = vadd.f32 0.0, %v1653
        %v1655 = vpop.f32.mrf.mxu0
        %v1656 = vpop.f32.mrf.mxu0
        %v1657 = vpop.f32.mrf.mxu0
        %1658 = vdwg.mxu0
        %1660 = vrot.lane.b32.xlu0 %v1654, 24
        %v1661 = vpop.permute.xlu0 %1660
        %vm1663 = vcmask 261312
        %1664 = vst.msk [vmem:[#allocation3] sm:$0xff] %vm1663, %v1661
        %s1665 = scalar_lea.vmem [#allocation7], 1
        %v1666 = vld [vmem:[%s1665] sm:$0x1]
        %vm1667 = vcmp.ne.f32.partialorder %v1666, 0.0
        %v1668 = vpack.c.bf16 %v1057, %v1057
        %v1669 = vpack.c.bf16 %v1121, %v1121
        %v1670 = vpack.c.bf16 %v1185, %v1185
        %v1672 = vsel %vm1193, %v1668, 0
        %v1675 = vsel %vm1193, %v1669, 0
        %1677 = vmatprep.subr.bf16.mxu0 0
        %1678 = vmatpush1.bf16.xpose.msra.mxu0 0
        %1679 = vmatprep.subr.bf16.mxu0 0
        %1680 = vmatpush1.bf16.xpose.msra.mxu0 0
        %1681 = vmatprep.subr.bf16.mxu0 0
        %1682 = vmatpush1.bf16.xpose.msra.mxu0 0
        %1683 = vmatprep.subr.bf16.mxu0 0
        %1684 = vmatpush1.bf16.xpose.msra.mxu0 0
        %1685 = vmatprep.subr.bf16.mxu0 0
        %1686 = vmatpush1.bf16.xpose.msra.mxu0 0
        %1687 = vmatprep.subr.bf16.mxu0 0
        %1688 = vmatpush1.bf16.xpose.msra.mxu0 0
        %1689 = vmatprep.subr.bf16.mxu0 0
        %1690 = vmatpush1.bf16.xpose.msra.mxu0 0
        %1691 = vmatprep.subr.bf16.mxu0 0
        %1692 = vmatpush1.bf16.xpose.msra.mxu0 %v1675
        %1693 = vmatprep.subr.bf16.mxu0 0
        %1694 = vmatpush2.bf16.xpose.msra.mxu0 0
        %1695 = vmatprep.subr.bf16.mxu0 0
        %1696 = vmatpush2.bf16.xpose.msra.mxu0 0
        %1697 = vmatprep.subr.bf16.mxu0 0
        %1698 = vmatpush2.bf16.xpose.msra.mxu0 0
        %1699 = vmatprep.subr.bf16.mxu0 0
        %1700 = vmatpush2.bf16.xpose.msra.mxu0 0
        %1701 = vmatprep.subr.bf16.mxu0 0
        %1702 = vmatpush2.bf16.xpose.msra.mxu0 0
        %1703 = vmatprep.subr.bf16.mxu0 0
        %1704 = vmatpush2.bf16.xpose.msra.mxu0 0
        %1705 = vmatprep.subr.bf16.mxu0 0
        %1706 = vmatpush2.bf16.xpose.msra.mxu0 0
        %1707 = vmatprep.subr.bf16.mxu0 0
        %1708 = vmatpush2.bf16.xpose.msra.mxu0 0
        %1709 = vmatprep.mubr.bf16.mxu0 0
        %1710 = vmatmul.mubr.bf16.gmra.mxu0 %v1672
        %v1711 = vpop.f32.mrf.mxu0
        %v1712 = vadd.f32 0.0, %v1711
        %v1713 = vpop.f32.mrf.mxu0
        %v1714 = vpop.f32.mrf.mxu0
        %v1715 = vpop.f32.mrf.mxu0
        %1716 = vdwg.mxu0
        %v1717 = vmul.f32 %v1712, 0.35355338
        %v1718 = vsel %vm1667, 1, 0
        %v1719 = vlaneseq
        %v1720 = vshrl.u32 %v1719, 7
        %v1721 = vsub.s32 0, %v1720
        %v1722 = vrot.slane %v1718, %v1721
        %vm1723 = vcmp.eq.s32.totalorder %v1722, 1
        %v1724 = vsel %vm1723, %v1717, -1e+09
        %v1725 = vsel %vm1193, %v1724, -inf
        %1726 = vmax.xlane.f32.xlu0 %v1725
        %v1727 = vpop.xlane.xlu0 %1726
        %v1728 = vsub.f32 %v1724, %v1727
        %v1729 = vmul.f32 %v1728, 1.442695
        %v1730 = vpow.pop %v1729
        %v1731 = vsel %vm1193, %v1730, 0.0
        %1732 = vadd.xlane.f32.xlu0 %v1731
        %v1733 = vpop.xlane.xlu0 %1732
        %v1734 = vrcp.pop %v1733
        %v1735 = vmul.f32 %v1730, %v1734
        %v1736 = vpack.c.bf16 %v1735, %v1735
        %v1738 = vsel %vm1193, %v1736, 0
        %v1741 = vsel %vm1263, %v1670, 0
        %1743 = vmatprep.subr.bf16.mxu0 0
        %1744 = vmatpush1.bf16.msra.mxu0 0
        %1745 = vmatprep.subr.bf16.mxu0 0
        %1746 = vmatpush1.bf16.msra.mxu0 0
        %1747 = vmatprep.subr.bf16.mxu0 0
        %1748 = vmatpush1.bf16.msra.mxu0 0
        %1749 = vmatprep.subr.bf16.mxu0 0
        %1750 = vmatpush1.bf16.msra.mxu0 0
        %1751 = vmatprep.subr.bf16.mxu0 0
        %1752 = vmatpush1.bf16.msra.mxu0 0
        %1753 = vmatprep.subr.bf16.mxu0 0
        %1754 = vmatpush1.bf16.msra.mxu0 0
        %1755 = vmatprep.subr.bf16.mxu0 0
        %1756 = vmatpush1.bf16.msra.mxu0 0
        %1757 = vmatprep.subr.bf16.mxu0 0
        %1758 = vmatpush1.bf16.msra.mxu0 %v1741
        %1759 = vmatprep.subr.bf16.mxu0 0
        %1760 = vmatpush2.bf16.msra.mxu0 0
        %1761 = vmatprep.subr.bf16.mxu0 0
        %1762 = vmatpush2.bf16.msra.mxu0 0
        %1763 = vmatprep.subr.bf16.mxu0 0
        %1764 = vmatpush2.bf16.msra.mxu0 0
        %1765 = vmatprep.subr.bf16.mxu0 0
        %1766 = vmatpush2.bf16.msra.mxu0 0
        %1767 = vmatprep.subr.bf16.mxu0 0
        %1768 = vmatpush2.bf16.msra.mxu0 0
        %1769 = vmatprep.subr.bf16.mxu0 0
        %1770 = vmatpush2.bf16.msra.mxu0 0
        %1771 = vmatprep.subr.bf16.mxu0 0
        %1772 = vmatpush2.bf16.msra.mxu0 0
        %1773 = vmatprep.subr.bf16.mxu0 0
        %1774 = vmatpush2.bf16.msra.mxu0 0
        %1775 = vmatprep.mubr.bf16.mxu0 0
        %1776 = vmatmul.mubr.bf16.gmra.mxu0 %v1738
        %v1777 = vpop.f32.mrf.mxu0
        %v1778 = vadd.f32 0.0, %v1777
        %v1779 = vpop.f32.mrf.mxu0
        %v1780 = vpop.f32.mrf.mxu0
        %v1781 = vpop.f32.mrf.mxu0
        %1782 = vdwg.mxu0
        %1783 = vst.msk [vmem:[#allocation3 + $0x8] sm:$0xff] %vm1193, %v1778
        %1785 = vrot.lane.b32.xlu0 %v1668, 120
        %v1786 = vpop.permute.xlu0 %1785
        %1788 = vrot.lane.b32.xlu0 %v1669, 120
        %v1789 = vpop.permute.xlu0 %1788
        %v1791 = vsel %vm1193, %v1786, 0
        %v1794 = vsel %vm1193, %v1789, 0
        %1796 = vmatprep.subr.bf16.mxu0 0
        %1797 = vmatpush1.bf16.xpose.msra.mxu0 0
        %1798 = vmatprep.subr.bf16.mxu0 0
        %1799 = vmatpush1.bf16.xpose.msra.mxu0 0
        %1800 = vmatprep.subr.bf16.mxu0 0
        %1801 = vmatpush1.bf16.xpose.msra.mxu0 0
        %1802 = vmatprep.subr.bf16.mxu0 0
        %1803 = vmatpush1.bf16.xpose.msra.mxu0 0
        %1804 = vmatprep.subr.bf16.mxu0 0
        %1805 = vmatpush1.bf16.xpose.msra.mxu0 0
        %1806 = vmatprep.subr.bf16.mxu0 0
        %1807 = vmatpush1.bf16.xpose.msra.mxu0 0
        %1808 = vmatprep.subr.bf16.mxu0 0
        %1809 = vmatpush1.bf16.xpose.msra.mxu0 0
        %1810 = vmatprep.subr.bf16.mxu0 0
        %1811 = vmatpush1.bf16.xpose.msra.mxu0 %v1794
        %1812 = vmatprep.subr.bf16.mxu0 0
        %1813 = vmatpush2.bf16.xpose.msra.mxu0 0
        %1814 = vmatprep.subr.bf16.mxu0 0
        %1815 = vmatpush2.bf16.xpose.msra.mxu0 0
        %1816 = vmatprep.subr.bf16.mxu0 0
        %1817 = vmatpush2.bf16.xpose.msra.mxu0 0
        %1818 = vmatprep.subr.bf16.mxu0 0
        %1819 = vmatpush2.bf16.xpose.msra.mxu0 0
        %1820 = vmatprep.subr.bf16.mxu0 0
        %1821 = vmatpush2.bf16.xpose.msra.mxu0 0
        %1822 = vmatprep.subr.bf16.mxu0 0
        %1823 = vmatpush2.bf16.xpose.msra.mxu0 0
        %1824 = vmatprep.subr.bf16.mxu0 0
        %1825 = vmatpush2.bf16.xpose.msra.mxu0 0
        %1826 = vmatprep.subr.bf16.mxu0 0
        %1827 = vmatpush2.bf16.xpose.msra.mxu0 0
        %1828 = vmatprep.mubr.bf16.mxu0 0
        %1829 = vmatmul.mubr.bf16.gmra.mxu0 %v1791
        %v1830 = vpop.f32.mrf.mxu0
        %v1831 = vadd.f32 0.0, %v1830
        %v1832 = vpop.f32.mrf.mxu0
        %v1833 = vpop.f32.mrf.mxu0
        %v1834 = vpop.f32.mrf.mxu0
        %1835 = vdwg.mxu0
        %v1836 = vmul.f32 %v1831, 0.35355338
        %v1837 = vsel %vm1723, %v1836, -1e+09
        %v1838 = vsel %vm1193, %v1837, -inf
        %1839 = vmax.xlane.f32.xlu0 %v1838
        %v1840 = vpop.xlane.xlu0 %1839
        %v1841 = vsub.f32 %v1837, %v1840
        %v1842 = vmul.f32 %v1841, 1.442695
        %v1843 = vpow.pop %v1842
        %v1844 = vsel %vm1193, %v1843, 0.0
        %1845 = vadd.xlane.f32.xlu0 %v1844
        %v1846 = vpop.xlane.xlu0 %1845
        %v1847 = vrcp.pop %v1846
        %v1848 = vmul.f32 %v1843, %v1847
        %v1849 = vpack.c.bf16 %v1848, %v1848
        %1851 = vrot.lane.b32.xlu0 %v1670, 120
        %v1852 = vpop.permute.xlu0 %1851
        %v1854 = vsel %vm1193, %v1849, 0
        %v1857 = vsel %vm1263, %v1852, 0
        %1859 = vmatprep.subr.bf16.mxu0 0
        %1860 = vmatpush1.bf16.msra.mxu0 0
        %1861 = vmatprep.subr.bf16.mxu0 0
        %1862 = vmatpush1.bf16.msra.mxu0 0
        %1863 = vmatprep.subr.bf16.mxu0 0
        %1864 = vmatpush1.bf16.msra.mxu0 0
        %1865 = vmatprep.subr.bf16.mxu0 0
        %1866 = vmatpush1.bf16.msra.mxu0 0
        %1867 = vmatprep.subr.bf16.mxu0 0
        %1868 = vmatpush1.bf16.msra.mxu0 0
        %1869 = vmatprep.subr.bf16.mxu0 0
        %1870 = vmatpush1.bf16.msra.mxu0 0
        %1871 = vmatprep.subr.bf16.mxu0 0
        %1872 = vmatpush1.bf16.msra.mxu0 0
        %1873 = vmatprep.subr.bf16.mxu0 0
        %1874 = vmatpush1.bf16.msra.mxu0 %v1857
        %1875 = vmatprep.subr.bf16.mxu0 0
        %1876 = vmatpush2.bf16.msra.mxu0 0
        %1877 = vmatprep.subr.bf16.mxu0 0
        %1878 = vmatpush2.bf16.msra.mxu0 0
        %1879 = vmatprep.subr.bf16.mxu0 0
        %1880 = vmatpush2.bf16.msra.mxu0 0
        %1881 = vmatprep.subr.bf16.mxu0 0
        %1882 = vmatpush2.bf16.msra.mxu0 0
        %1883 = vmatprep.subr.bf16.mxu0 0
        %1884 = vmatpush2.bf16.msra.mxu0 0
        %1885 = vmatprep.subr.bf16.mxu0 0
        %1886 = vmatpush2.bf16.msra.mxu0 0
        %1887 = vmatprep.subr.bf16.mxu0 0
        %1888 = vmatpush2.bf16.msra.mxu0 0
        %1889 = vmatprep.subr.bf16.mxu0 0
        %1890 = vmatpush2.bf16.msra.mxu0 0
        %1891 = vmatprep.mubr.bf16.mxu0 0
        %1892 = vmatmul.mubr.bf16.gmra.mxu0 %v1854
        %v1893 = vpop.f32.mrf.mxu0
        %v1894 = vadd.f32 0.0, %v1893
        %v1895 = vpop.f32.mrf.mxu0
        %v1896 = vpop.f32.mrf.mxu0
        %v1897 = vpop.f32.mrf.mxu0
        %1898 = vdwg.mxu0
        %1900 = vrot.lane.b32.xlu0 %v1894, 8
        %v1901 = vpop.permute.xlu0 %1900
        %1903 = vst.msk [vmem:[#allocation3 + $0x8] sm:$0xff] %vm1427, %v1901
        %1904 = vrot.lane.b32.xlu0 %v1668, 112
        %v1905 = vpop.permute.xlu0 %1904
        %1906 = vrot.lane.b32.xlu0 %v1669, 112
        %v1907 = vpop.permute.xlu0 %1906
        %v1909 = vsel %vm1193, %v1905, 0
        %v1912 = vsel %vm1193, %v1907, 0
        %1914 = vmatprep.subr.bf16.mxu0 0
        %1915 = vmatpush1.bf16.xpose.msra.mxu0 0
        %1916 = vmatprep.subr.bf16.mxu0 0
        %1917 = vmatpush1.bf16.xpose.msra.mxu0 0
        %1918 = vmatprep.subr.bf16.mxu0 0
        %1919 = vmatpush1.bf16.xpose.msra.mxu0 0
        %1920 = vmatprep.subr.bf16.mxu0 0
        %1921 = vmatpush1.bf16.xpose.msra.mxu0 0
        %1922 = vmatprep.subr.bf16.mxu0 0
        %1923 = vmatpush1.bf16.xpose.msra.mxu0 0
        %1924 = vmatprep.subr.bf16.mxu0 0
        %1925 = vmatpush1.bf16.xpose.msra.mxu0 0
        %1926 = vmatprep.subr.bf16.mxu0 0
        %1927 = vmatpush1.bf16.xpose.msra.mxu0 0
        %1928 = vmatprep.subr.bf16.mxu0 0
        %1929 = vmatpush1.bf16.xpose.msra.mxu0 %v1912
        %1930 = vmatprep.subr.bf16.mxu0 0
        %1931 = vmatpush2.bf16.xpose.msra.mxu0 0
        %1932 = vmatprep.subr.bf16.mxu0 0
        %1933 = vmatpush2.bf16.xpose.msra.mxu0 0
        %1934 = vmatprep.subr.bf16.mxu0 0
        %1935 = vmatpush2.bf16.xpose.msra.mxu0 0
        %1936 = vmatprep.subr.bf16.mxu0 0
        %1937 = vmatpush2.bf16.xpose.msra.mxu0 0
        %1938 = vmatprep.subr.bf16.mxu0 0
        %1939 = vmatpush2.bf16.xpose.msra.mxu0 0
        %1940 = vmatprep.subr.bf16.mxu0 0
        %1941 = vmatpush2.bf16.xpose.msra.mxu0 0
        %1942 = vmatprep.subr.bf16.mxu0 0
        %1943 = vmatpush2.bf16.xpose.msra.mxu0 0
        %1944 = vmatprep.subr.bf16.mxu0 0
        %1945 = vmatpush2.bf16.xpose.msra.mxu0 0
        %1946 = vmatprep.mubr.bf16.mxu0 0
        %1947 = vmatmul.mubr.bf16.gmra.mxu0 %v1909
        %v1948 = vpop.f32.mrf.mxu0
        %v1949 = vadd.f32 0.0, %v1948
        %v1950 = vpop.f32.mrf.mxu0
        %v1951 = vpop.f32.mrf.mxu0
        %v1952 = vpop.f32.mrf.mxu0
        %1953 = vdwg.mxu0
        %v1954 = vmul.f32 %v1949, 0.35355338
        %v1955 = vsel %vm1723, %v1954, -1e+09
        %v1956 = vsel %vm1193, %v1955, -inf
        %1957 = vmax.xlane.f32.xlu0 %v1956
        %v1958 = vpop.xlane.xlu0 %1957
        %v1959 = vsub.f32 %v1955, %v1958
        %v1960 = vmul.f32 %v1959, 1.442695
        %v1961 = vpow.pop %v1960
        %v1962 = vsel %vm1193, %v1961, 0.0
        %1963 = vadd.xlane.f32.xlu0 %v1962
        %v1964 = vpop.xlane.xlu0 %1963
        %v1965 = vrcp.pop %v1964
        %v1966 = vmul.f32 %v1961, %v1965
        %v1967 = vpack.c.bf16 %v1966, %v1966
        %1968 = vrot.lane.b32.xlu0 %v1670, 112
        %v1969 = vpop.permute.xlu0 %1968
        %v1971 = vsel %vm1193, %v1967, 0
        %v1974 = vsel %vm1263, %v1969, 0
        %1976 = vmatprep.subr.bf16.mxu0 0
        %1977 = vmatpush1.bf16.msra.mxu0 0
        %1978 = vmatprep.subr.bf16.mxu0 0
        %1979 = vmatpush1.bf16.msra.mxu0 0
        %1980 = vmatprep.subr.bf16.mxu0 0
        %1981 = vmatpush1.bf16.msra.mxu0 0
        %1982 = vmatprep.subr.bf16.mxu0 0
        %1983 = vmatpush1.bf16.msra.mxu0 0
        %1984 = vmatprep.subr.bf16.mxu0 0
        %1985 = vmatpush1.bf16.msra.mxu0 0
        %1986 = vmatprep.subr.bf16.mxu0 0
        %1987 = vmatpush1.bf16.msra.mxu0 0
        %1988 = vmatprep.subr.bf16.mxu0 0
        %1989 = vmatpush1.bf16.msra.mxu0 0
        %1990 = vmatprep.subr.bf16.mxu0 0
        %1991 = vmatpush1.bf16.msra.mxu0 %v1974
        %1992 = vmatprep.subr.bf16.mxu0 0
        %1993 = vmatpush2.bf16.msra.mxu0 0
        %1994 = vmatprep.subr.bf16.mxu0 0
        %1995 = vmatpush2.bf16.msra.mxu0 0
        %1996 = vmatprep.subr.bf16.mxu0 0
        %1997 = vmatpush2.bf16.msra.mxu0 0
        %1998 = vmatprep.subr.bf16.mxu0 0
        %1999 = vmatpush2.bf16.msra.mxu0 0
        %2000 = vmatprep.subr.bf16.mxu0 0
        %2001 = vmatpush2.bf16.msra.mxu0 0
        %2002 = vmatprep.subr.bf16.mxu0 0
        %2003 = vmatpush2.bf16.msra.mxu0 0
        %2004 = vmatprep.subr.bf16.mxu0 0
        %2005 = vmatpush2.bf16.msra.mxu0 0
        %2006 = vmatprep.subr.bf16.mxu0 0
        %2007 = vmatpush2.bf16.msra.mxu0 0
        %2008 = vmatprep.mubr.bf16.mxu0 0
        %2009 = vmatmul.mubr.bf16.gmra.mxu0 %v1971
        %v2010 = vpop.f32.mrf.mxu0
        %v2011 = vadd.f32 0.0, %v2010
        %v2012 = vpop.f32.mrf.mxu0
        %v2013 = vpop.f32.mrf.mxu0
        %v2014 = vpop.f32.mrf.mxu0
        %2015 = vdwg.mxu0
        %2017 = vrot.lane.b32.xlu0 %v2011, 16
        %v2018 = vpop.permute.xlu0 %2017
        %2020 = vst.msk [vmem:[#allocation3 + $0x8] sm:$0xff] %vm1545, %v2018
        %2021 = vrot.lane.b32.xlu0 %v1668, 104
        %v2022 = vpop.permute.xlu0 %2021
        %2023 = vrot.lane.b32.xlu0 %v1669, 104
        %v2024 = vpop.permute.xlu0 %2023
        %v2026 = vsel %vm1193, %v2022, 0
        %v2029 = vsel %vm1193, %v2024, 0
        %2031 = vmatprep.subr.bf16.mxu0 0
        %2032 = vmatpush1.bf16.xpose.msra.mxu0 0
        %2033 = vmatprep.subr.bf16.mxu0 0
        %2034 = vmatpush1.bf16.xpose.msra.mxu0 0
        %2035 = vmatprep.subr.bf16.mxu0 0
        %2036 = vmatpush1.bf16.xpose.msra.mxu0 0
        %2037 = vmatprep.subr.bf16.mxu0 0
        %2038 = vmatpush1.bf16.xpose.msra.mxu0 0
        %2039 = vmatprep.subr.bf16.mxu0 0
        %2040 = vmatpush1.bf16.xpose.msra.mxu0 0
        %2041 = vmatprep.subr.bf16.mxu0 0
        %2042 = vmatpush1.bf16.xpose.msra.mxu0 0
        %2043 = vmatprep.subr.bf16.mxu0 0
        %2044 = vmatpush1.bf16.xpose.msra.mxu0 0
        %2045 = vmatprep.subr.bf16.mxu0 0
        %2046 = vmatpush1.bf16.xpose.msra.mxu0 %v2029
        %2047 = vmatprep.subr.bf16.mxu0 0
        %2048 = vmatpush2.bf16.xpose.msra.mxu0 0
        %2049 = vmatprep.subr.bf16.mxu0 0
        %2050 = vmatpush2.bf16.xpose.msra.mxu0 0
        %2051 = vmatprep.subr.bf16.mxu0 0
        %2052 = vmatpush2.bf16.xpose.msra.mxu0 0
        %2053 = vmatprep.subr.bf16.mxu0 0
        %2054 = vmatpush2.bf16.xpose.msra.mxu0 0
        %2055 = vmatprep.subr.bf16.mxu0 0
        %2056 = vmatpush2.bf16.xpose.msra.mxu0 0
        %2057 = vmatprep.subr.bf16.mxu0 0
        %2058 = vmatpush2.bf16.xpose.msra.mxu0 0
        %2059 = vmatprep.subr.bf16.mxu0 0
        %2060 = vmatpush2.bf16.xpose.msra.mxu0 0
        %2061 = vmatprep.subr.bf16.mxu0 0
        %2062 = vmatpush2.bf16.xpose.msra.mxu0 0
        %2063 = vmatprep.mubr.bf16.mxu0 0
        %2064 = vmatmul.mubr.bf16.gmra.mxu0 %v2026
        %v2065 = vpop.f32.mrf.mxu0
        %v2066 = vadd.f32 0.0, %v2065
        %v2067 = vpop.f32.mrf.mxu0
        %v2068 = vpop.f32.mrf.mxu0
        %v2069 = vpop.f32.mrf.mxu0
        %2070 = vdwg.mxu0
        %v2071 = vmul.f32 %v2066, 0.35355338
        %v2072 = vsel %vm1723, %v2071, -1e+09
        %v2073 = vsel %vm1193, %v2072, -inf
        %2074 = vmax.xlane.f32.xlu0 %v2073
        %v2075 = vpop.xlane.xlu0 %2074
        %v2076 = vsub.f32 %v2072, %v2075
        %v2077 = vmul.f32 %v2076, 1.442695
        %v2078 = vpow.pop %v2077
        %v2079 = vsel %vm1193, %v2078, 0.0
        %2080 = vadd.xlane.f32.xlu0 %v2079
        %v2081 = vpop.xlane.xlu0 %2080
        %v2082 = vrcp.pop %v2081
        %v2083 = vmul.f32 %v2078, %v2082
        %v2084 = vpack.c.bf16 %v2083, %v2083
        %2085 = vrot.lane.b32.xlu0 %v1670, 104
        %v2086 = vpop.permute.xlu0 %2085
        %v2088 = vsel %vm1193, %v2084, 0
        %v2091 = vsel %vm1263, %v2086, 0
        %2093 = vmatprep.subr.bf16.mxu0 0
        %2094 = vmatpush1.bf16.msra.mxu0 0
        %2095 = vmatprep.subr.bf16.mxu0 0
        %2096 = vmatpush1.bf16.msra.mxu0 0
        %2097 = vmatprep.subr.bf16.mxu0 0
        %2098 = vmatpush1.bf16.msra.mxu0 0
        %2099 = vmatprep.subr.bf16.mxu0 0
        %2100 = vmatpush1.bf16.msra.mxu0 0
        %2101 = vmatprep.subr.bf16.mxu0 0
        %2102 = vmatpush1.bf16.msra.mxu0 0
        %2103 = vmatprep.subr.bf16.mxu0 0
        %2104 = vmatpush1.bf16.msra.mxu0 0
        %2105 = vmatprep.subr.bf16.mxu0 0
        %2106 = vmatpush1.bf16.msra.mxu0 0
        %2107 = vmatprep.subr.bf16.mxu0 0
        %2108 = vmatpush1.bf16.msra.mxu0 %v2091
        %2109 = vmatprep.subr.bf16.mxu0 0
        %2110 = vmatpush2.bf16.msra.mxu0 0
        %2111 = vmatprep.subr.bf16.mxu0 0
        %2112 = vmatpush2.bf16.msra.mxu0 0
        %2113 = vmatprep.subr.bf16.mxu0 0
        %2114 = vmatpush2.bf16.msra.mxu0 0
        %2115 = vmatprep.subr.bf16.mxu0 0
        %2116 = vmatpush2.bf16.msra.mxu0 0
        %2117 = vmatprep.subr.bf16.mxu0 0
        %2118 = vmatpush2.bf16.msra.mxu0 0
        %2119 = vmatprep.subr.bf16.mxu0 0
        %2120 = vmatpush2.bf16.msra.mxu0 0
        %2121 = vmatprep.subr.bf16.mxu0 0
        %2122 = vmatpush2.bf16.msra.mxu0 0
        %2123 = vmatprep.subr.bf16.mxu0 0
        %2124 = vmatpush2.bf16.msra.mxu0 0
        %2125 = vmatprep.mubr.bf16.mxu0 0
        %2126 = vmatmul.mubr.bf16.gmra.mxu0 %v2088
        %v2127 = vpop.f32.mrf.mxu0
        %v2128 = vadd.f32 0.0, %v2127
        %v2129 = vpop.f32.mrf.mxu0
        %v2130 = vpop.f32.mrf.mxu0
        %v2131 = vpop.f32.mrf.mxu0
        %2132 = vdwg.mxu0
        %2134 = vrot.lane.b32.xlu0 %v2128, 24
        %v2135 = vpop.permute.xlu0 %2134
        %2137 = vst.msk [vmem:[#allocation3 + $0x8] sm:$0xff] %vm1663, %v2135
        %v2138 = vld [vmem:[#allocation3] sm:$0xff]
        %v2139 = vld [vmem:[#allocation3 + $0x8] sm:$0xff]
        %v2140 = vpack.c.bf16 %v2139, %v2138
        %v2141 = vld [vmem:[%s754] sm:$0xf]
        %v2142 = vld [vmem:[%s754 + $0x4] sm:$0xf]
        %v2143 = vld [vmem:[%s754 + $0x8] sm:$0xf]
        %v2144 = vld [vmem:[%s754 + $0xc] sm:$0xf]
        %v2145 = vld [vmem:[%s902] sm:$0x1]
        %v2147 = vlaneseq
        %v2148 = vshrl.u32 %v2147, 7
        %v2149 = vsub.s32 0, %v2148
        %v2150 = vrot.slane %v2145, %v2149
        %v2156 = vunpack.c.l.b16 %v2141
        %v2157 = vunpack.c.l.b16 %v2142
        %v2158 = vunpack.c.l.b16 %v2143
        %v2159 = vunpack.c.l.b16 %v2144
        %v2160 = vpack.c.b16 %v2157, %v2156
        %v2161 = vpack.c.b16 %v2159, %v2158
        %v2165 = vsel %vm934, %v2140, 0
        %2167 = vmatprep.subr.bf16.mxu0 0
        %2168 = vmatpush1.bf16.msra.mxu0 0
        %2169 = vmatprep.subr.bf16.mxu0 0
        %2170 = vmatpush1.bf16.msra.mxu0 0
        %2171 = vmatprep.subr.bf16.mxu0 0
        %2172 = vmatpush1.bf16.msra.mxu0 0
        %2173 = vmatprep.subr.bf16.mxu0 0
        %2174 = vmatpush1.bf16.msra.mxu0 0
        %2175 = vmatprep.subr.bf16.mxu0 0
        %2176 = vmatpush1.bf16.msra.mxu0 0
        %2177 = vmatprep.subr.bf16.mxu0 0
        %2178 = vmatpush1.bf16.msra.mxu0 0
        %2179 = vmatprep.subr.bf16.mxu0 0
        %2180 = vmatpush1.bf16.msra.mxu0 %v2161
        %2181 = vmatprep.subr.bf16.mxu0 0
        %2182 = vmatpush1.bf16.msra.mxu0 %v2160
        %2183 = vmatprep.subr.bf16.mxu0 0
        %2184 = vmatpush2.bf16.msra.mxu0 0
        %2185 = vmatprep.subr.bf16.mxu0 0
        %2186 = vmatpush2.bf16.msra.mxu0 0
        %2187 = vmatprep.subr.bf16.mxu0 0
        %2188 = vmatpush2.bf16.msra.mxu0 0
        %2189 = vmatprep.subr.bf16.mxu0 0
        %2190 = vmatpush2.bf16.msra.mxu0 0
        %2191 = vmatprep.subr.bf16.mxu0 0
        %2192 = vmatpush2.bf16.msra.mxu0 0
        %2193 = vmatprep.subr.bf16.mxu0 0
        %2194 = vmatpush2.bf16.msra.mxu0 0
        %2195 = vmatprep.subr.bf16.mxu0 0
        %2196 = vmatpush2.bf16.msra.mxu0 0
        %2197 = vmatprep.subr.bf16.mxu0 0
        %2198 = vmatpush2.bf16.msra.mxu0 0
        %2199 = vmatprep.mubr.bf16.mxu0 0
        %2200 = vmatmul.mubr.bf16.gmra.mxu0 %v2165
        %v2201 = vpop.f32.mrf.mxu0
        %v2202 = vadd.f32 %v2150, %v2201
        %v2203 = vpop.f32.mrf.mxu0
        %v2204 = vpop.f32.mrf.mxu0
        %v2205 = vadd.f32 %v2150, %v2204
        %v2206 = vpop.f32.mrf.mxu0
        %2207 = vdwg.mxu0
        %v2208 = vadd.f32 %v930, %v2202
        %v2209 = vadd.f32 %v931, %v2205
        %v2210 = vld [vmem:[%s905] sm:$0x1]
        %v2211 = vld [vmem:[%s908] sm:$0x1]
        %v2212 = vsel %vm934, %v2208, 0.0
        %2213 = vadd.xlane.f32.xlu0 %v2212
        %v2214 = vpop.xlane.xlu0 %2213
        %v2215 = vsel %vm934, %v2209, 0.0
        %2216 = vadd.xlane.f32.xlu0 %v2215
        %v2217 = vpop.xlane.xlu0 %2216
        %v2218 = vmul.f32 %v2214, %v941
        %v2219 = vmul.f32 %v2217, %v941
        %v2220 = vsub.f32 %v2208, %v2218
        %v2221 = vsub.f32 %v2209, %v2219
        %v2222 = vmul.f32 %v2220, %v2220
        %v2223 = vmul.f32 %v2221, %v2221
        %v2224 = vsel %vm934, %v2222, 0.0
        %2225 = vadd.xlane.f32.xlu0 %v2224
        %v2226 = vpop.xlane.xlu0 %2225
        %v2227 = vsel %vm934, %v2223, 0.0
        %2228 = vadd.xlane.f32.xlu0 %v2227
        %v2229 = vpop.xlane.xlu0 %2228
        %v2230 = vmul.f32 %v2226, 0.032258064
        %v2231 = vmul.f32 %v2229, 0.032258064
        %v2232 = vrsqrt.pop %v2230
        %v2233 = vmul.f32 %v2230, %v2232
        %vm2234 = vcmp.eq.f32.partialorder %v2230, inf
        %v2235 = vsel %vm2234, %v2230, %v2233
        %vm2236 = vcmp.eq.f32.partialorder %v2230, 0.0
        %v2237 = vand.u32 %v2230, 2147483648
        %v2238 = vsel %vm2236, %v2237, %v2235
        %v2239 = vrsqrt.pop %v2231
        %v2240 = vmul.f32 %v2231, %v2239
        %vm2241 = vcmp.eq.f32.partialorder %v2231, inf
        %v2242 = vsel %vm2241, %v2231, %v2240
        %vm2243 = vcmp.eq.f32.partialorder %v2231, 0.0
        %v2244 = vand.u32 %v2231, 2147483648
        %v2245 = vsel %vm2243, %v2244, %v2242
        %v2246 = vadd.f32 %v2238, 1e-06
        %v2247 = vadd.f32 %v2245, 1e-06
        %v2248 = vrcp.pop %v2246
        %v2249 = vrcp.pop %v2247
        %v2251 = vlaneseq
        %v2252 = vshrl.u32 %v2251, 7
        %v2253 = vsub.s32 0, %v2252
        %v2254 = vrot.slane %v2210, %v2253
        %v2256 = vmul.f32 %v2254, %v2220
        %v2257 = vmul.f32 %v2254, %v2221
        %v2258 = vmul.f32 %v2256, %v2248
        %v2259 = vmul.f32 %v2257, %v2249
        %v2261 = vlaneseq
        %v2262 = vshrl.u32 %v2261, 7
        %v2263 = vsub.s32 0, %v2262
        %v2264 = vrot.slane %v2211, %v2263
        %v2266 = vadd.f32 %v2258, %v2264
        %v2267 = vadd.f32 %v2259, %v2264
        %v2268 = vpack.c.bf16 %v2267, %v2266
        %v2269 = vld [vmem:[%s763] sm:$0xf]
        %v2270 = vld [vmem:[%s763 + $0x4] sm:$0xf]
        %v2271 = vld [vmem:[%s763 + $0x8] sm:$0xf]
        %v2272 = vld [vmem:[%s763 + $0xc] sm:$0xf]
        %v2273 = vld [vmem:[%s911] sm:$0x1]
        %v2275 = vlaneseq
        %v2276 = vshrl.u32 %v2275, 7
        %v2277 = vsub.s32 0, %v2276
        %v2278 = vrot.slane %v2273, %v2277
        %v2284 = vunpack.c.l.b16 %v2269
        %v2285 = vunpack.c.l.b16 %v2270
        %v2286 = vunpack.c.l.b16 %v2271
        %v2287 = vunpack.c.l.b16 %v2272
        %v2288 = vpack.c.b16 %v2285, %v2284
        %v2289 = vpack.c.b16 %v2287, %v2286
        %v2293 = vsel %vm934, %v2268, 0
        %2295 = vmatprep.subr.bf16.mxu0 0
        %2296 = vmatpush1.bf16.msra.mxu0 0
        %2297 = vmatprep.subr.bf16.mxu0 0
        %2298 = vmatpush1.bf16.msra.mxu0 0
        %2299 = vmatprep.subr.bf16.mxu0 0
        %2300 = vmatpush1.bf16.msra.mxu0 0
        %2301 = vmatprep.subr.bf16.mxu0 0
        %2302 = vmatpush1.bf16.msra.mxu0 0
        %2303 = vmatprep.subr.bf16.mxu0 0
        %2304 = vmatpush1.bf16.msra.mxu0 0
        %2305 = vmatprep.subr.bf16.mxu0 0
        %2306 = vmatpush1.bf16.msra.mxu0 0
        %2307 = vmatprep.subr.bf16.mxu0 0
        %2308 = vmatpush1.bf16.msra.mxu0 %v2289
        %2309 = vmatprep.subr.bf16.mxu0 0
        %2310 = vmatpush1.bf16.msra.mxu0 %v2288
        %2311 = vmatprep.subr.bf16.mxu0 0
        %2312 = vmatpush2.bf16.msra.mxu0 0
        %2313 = vmatprep.subr.bf16.mxu0 0
        %2314 = vmatpush2.bf16.msra.mxu0 0
        %2315 = vmatprep.subr.bf16.mxu0 0
        %2316 = vmatpush2.bf16.msra.mxu0 0
        %2317 = vmatprep.subr.bf16.mxu0 0
        %2318 = vmatpush2.bf16.msra.mxu0 0
        %2319 = vmatprep.subr.bf16.mxu0 0
        %2320 = vmatpush2.bf16.msra.mxu0 0
        %2321 = vmatprep.subr.bf16.mxu0 0
        %2322 = vmatpush2.bf16.msra.mxu0 0
        %2323 = vmatprep.subr.bf16.mxu0 0
        %2324 = vmatpush2.bf16.msra.mxu0 0
        %2325 = vmatprep.subr.bf16.mxu0 0
        %2326 = vmatpush2.bf16.msra.mxu0 0
        %2327 = vmatprep.mubr.bf16.mxu0 0
        %2328 = vmatmul.mubr.bf16.gmra.mxu0 %v2293
        %v2329 = vpop.f32.mrf.mxu0
        %v2330 = vadd.f32 %v2278, %v2329
        %v2331 = vpop.f32.mrf.mxu0
        %v2332 = vpop.f32.mrf.mxu0
        %v2333 = vadd.f32 %v2278, %v2332
        %v2334 = vpop.f32.mrf.mxu0
        %2335 = vdwg.mxu0
        %v2336 = vmax.f32 %v2330, 0.0
        %v2337 = vmax.f32 %v2333, 0.0
        %v2338 = vpack.c.bf16 %v2337, %v2336
        %v2339 = vld [vmem:[%s916] sm:$0xf]
        %v2340 = vld [vmem:[%s916 + $0x4] sm:$0xf]
        %v2341 = vld [vmem:[%s916 + $0x8] sm:$0xf]
        %v2342 = vld [vmem:[%s916 + $0xc] sm:$0xf]
        %v2343 = vld [vmem:[%s916 + $0x10] sm:$0xf]
        %v2344 = vld [vmem:[%s916 + $0x14] sm:$0xf]
        %v2345 = vld [vmem:[%s916 + $0x18] sm:$0xf]
        %v2346 = vld [vmem:[%s916 + $0x1c] sm:$0xf]
        %v2347 = vld [vmem:[%s919] sm:$0x1]
        %v2349 = vlaneseq
        %v2350 = vshrl.u32 %v2349, 7
        %v2351 = vsub.s32 0, %v2350
        %v2352 = vrot.slane %v2347, %v2351
        %v2362 = vunpack.c.l.b16 %v2339
        %v2363 = vunpack.c.l.b16 %v2340
        %v2364 = vunpack.c.l.b16 %v2341
        %v2365 = vunpack.c.l.b16 %v2342
        %v2366 = vunpack.c.l.b16 %v2343
        %v2367 = vunpack.c.l.b16 %v2344
        %v2368 = vunpack.c.l.b16 %v2345
        %v2369 = vunpack.c.l.b16 %v2346
        %v2370 = vpack.c.b16 %v2363, %v2362
        %v2371 = vpack.c.b16 %v2365, %v2364
        %v2372 = vpack.c.b16 %v2367, %v2366
        %v2373 = vpack.c.b16 %v2369, %v2368
        %vm2378 = vcmask 523264
        %v2380 = vsel %vm2378, %v2338, 0
        %2382 = vmatprep.subr.bf16.mxu0 0
        %2383 = vmatpush1.bf16.msra.mxu0 0
        %2384 = vmatprep.subr.bf16.mxu0 0
        %2385 = vmatpush1.bf16.msra.mxu0 0
        %2386 = vmatprep.subr.bf16.mxu0 0
        %2387 = vmatpush1.bf16.msra.mxu0 0
        %2388 = vmatprep.subr.bf16.mxu0 0
        %2389 = vmatpush1.bf16.msra.mxu0 0
        %2390 = vmatprep.subr.bf16.mxu0 0
        %2391 = vmatpush1.bf16.msra.mxu0 %v2373
        %2392 = vmatprep.subr.bf16.mxu0 0
        %2393 = vmatpush1.bf16.msra.mxu0 %v2372
        %2394 = vmatprep.subr.bf16.mxu0 0
        %2395 = vmatpush1.bf16.msra.mxu0 %v2371
        %2396 = vmatprep.subr.bf16.mxu0 0
        %2397 = vmatpush1.bf16.msra.mxu0 %v2370
        %2398 = vmatprep.subr.bf16.mxu0 0
        %2399 = vmatpush2.bf16.msra.mxu0 0
        %2400 = vmatprep.subr.bf16.mxu0 0
        %2401 = vmatpush2.bf16.msra.mxu0 0
        %2402 = vmatprep.subr.bf16.mxu0 0
        %2403 = vmatpush2.bf16.msra.mxu0 0
        %2404 = vmatprep.subr.bf16.mxu0 0
        %2405 = vmatpush2.bf16.msra.mxu0 0
        %2406 = vmatprep.subr.bf16.mxu0 0
        %2407 = vmatpush2.bf16.msra.mxu0 0
        %2408 = vmatprep.subr.bf16.mxu0 0
        %2409 = vmatpush2.bf16.msra.mxu0 0
        %2410 = vmatprep.subr.bf16.mxu0 0
        %2411 = vmatpush2.bf16.msra.mxu0 0
        %2412 = vmatprep.subr.bf16.mxu0 0
        %2413 = vmatpush2.bf16.msra.mxu0 0
        %2414 = vmatprep.mubr.bf16.mxu0 0
        %2415 = vmatmul.mubr.bf16.gmra.mxu0 %v2380
        %v2416 = vpop.f32.mrf.mxu0
        %v2417 = vadd.f32 %v2352, %v2416
        %v2418 = vpop.f32.mrf.mxu0
        %v2419 = vpop.f32.mrf.mxu0
        %v2420 = vadd.f32 %v2352, %v2419
        %v2421 = vpop.f32.mrf.mxu0
        %2422 = vdwg.mxu0
        %v2423 = vadd.f32 %v2208, %v2417
        %v2424 = vadd.f32 %v2209, %v2420
        %2425 = vst.msk [vmem:[#allocation2] sm:$0xff] %vm934, %v2423
        %2426 = vst.msk [vmem:[#allocation2 + $0x8] sm:$0xff] %vm934, %v2424
        %p2427 = scmp.eq.s32.totalorder %s34, 1
        // Predicated region
        $region121: #{tpu_custom_call.1} parent=99 // pred_check
          %p2428 = pneg %p2427
        $region122: #{tpu_custom_call.1} parent=99 // pred_check_branch
          %2430 = sbr.rel (%p2428) target = $region124
        $region123: #{tpu_custom_call.1} parent=99 // pred_region
          %v2431 = vld [vmem:[%s18] sm:$0x1]
          %v2432 = vld [vmem:[%s19] sm:$0x1]
          %v2433 = vsel %vm934, %v2423, 0.0
          %2434 = vadd.xlane.f32.xlu0 %v2433
          %v2435 = vpop.xlane.xlu0 %2434
          %v2436 = vsel %vm934, %v2424, 0.0
          %2437 = vadd.xlane.f32.xlu0 %v2436
          %v2438 = vpop.xlane.xlu0 %2437
          %v2439 = vmul.f32 %v2435, %v941
          %v2440 = vmul.f32 %v2438, %v941
          %v2441 = vsub.f32 %v2423, %v2439
          %v2442 = vsub.f32 %v2424, %v2440
          %v2443 = vmul.f32 %v2441, %v2441
          %v2444 = vmul.f32 %v2442, %v2442
          %v2445 = vsel %vm934, %v2443, 0.0
          %2446 = vadd.xlane.f32.xlu0 %v2445
          %v2447 = vpop.xlane.xlu0 %2446
          %v2448 = vsel %vm934, %v2444, 0.0
          %2449 = vadd.xlane.f32.xlu0 %v2448
          %v2450 = vpop.xlane.xlu0 %2449
          %v2451 = vmul.f32 %v2447, 0.032258064
          %v2452 = vmul.f32 %v2450, 0.032258064
          %v2453 = vrsqrt.pop %v2451
          %v2454 = vmul.f32 %v2451, %v2453
          %vm2455 = vcmp.eq.f32.partialorder %v2451, inf
          %v2456 = vsel %vm2455, %v2451, %v2454
          %vm2457 = vcmp.eq.f32.partialorder %v2451, 0.0
          %v2458 = vand.u32 %v2451, 2147483648
          %v2459 = vsel %vm2457, %v2458, %v2456
          %v2460 = vrsqrt.pop %v2452
          %v2461 = vmul.f32 %v2452, %v2460
          %vm2462 = vcmp.eq.f32.partialorder %v2452, inf
          %v2463 = vsel %vm2462, %v2452, %v2461
          %vm2464 = vcmp.eq.f32.partialorder %v2452, 0.0
          %v2465 = vand.u32 %v2452, 2147483648
          %v2466 = vsel %vm2464, %v2465, %v2463
          %v2467 = vadd.f32 %v2459, 1e-06
          %v2468 = vadd.f32 %v2466, 1e-06
          %v2469 = vrcp.pop %v2467
          %v2470 = vrcp.pop %v2468
          %v2472 = vlaneseq
          %v2473 = vshrl.u32 %v2472, 7
          %v2474 = vsub.s32 0, %v2473
          %v2475 = vrot.slane %v2431, %v2474
          %v2477 = vmul.f32 %v2475, %v2441
          %v2478 = vmul.f32 %v2475, %v2442
          %v2479 = vmul.f32 %v2477, %v2469
          %v2480 = vmul.f32 %v2478, %v2470
          %v2482 = vlaneseq
          %v2483 = vshrl.u32 %v2482, 7
          %v2484 = vsub.s32 0, %v2483
          %v2485 = vrot.slane %v2432, %v2484
          %v2487 = vadd.f32 %v2479, %v2485
          %v2488 = vadd.f32 %v2480, %v2485
          %2489 = vst.msk [vmem:[#allocation11] sm:$0xff] %vm934, %v2487
          %2490 = vst.msk [vmem:[#allocation11 + $0x8] sm:$0xff] %vm934, %v2488
        $region124: #{tpu_custom_call.1} parent=99 // pred_fallthru
          _
        // Predicated region
        $region125: #{tpu_custom_call.1} parent=99 // pred_check
          %p2491 = pneg %p547
        $region126: #{tpu_custom_call.1} parent=99 // pred_check_branch
          %2493 = sbr.rel (%p2491) target = $region128
        $region127: #{tpu_custom_call.1} parent=99 // pred_region
          %s2495 = ssub.s32 256, 256
          %2496 = vsyncadd [#allocation6], %s2495
          %s2497 = sshll.u32 [#allocation11], 4
          %s2498 = int_to_ptr.vmem [resolvable:$true] %s2497
          %2503 = dma.vmem_to_hbm [thread:$0]  %s2498, 256, %s20, [#allocation6], 128, 128, 8
        $region128: #{tpu_custom_call.1} parent=99 // pred_fallthru
          _
        // Predicated region
        $region129: #{tpu_custom_call.1} parent=99 // pred_check
          %p2504 = pneg %p547
        $region130: #{tpu_custom_call.1} parent=99 // pred_check_branch
          %2506 = sbr.rel (%p2504) target = $region132
        $region131: #{tpu_custom_call.1} parent=99 // pred_region
          %2507 = dma.done [#allocation6], 256
        $region132: #{tpu_custom_call.1} parent=99 // pred_fallthru
          _
      $region100: #{tpu_custom_call.1} parent=5 // pred_fallthru
        _
      %p2508 = scmp.le.s32.totalorder 2, %s29
      // Predicated region
      $region133: #{tpu_custom_call.1} parent=5 // pred_check
        %p2509 = pneg %p2508
      $region134: #{tpu_custom_call.1} parent=5 // pred_check_branch
        %2511 = sbr.rel (%p2509) target = $region136
      $region135: #{tpu_custom_call.1} parent=5 // pred_region
        %s2512 = ssub.s32 %s29, 2
      $region136: #{tpu_custom_call.1} parent=5 // pred_fallthru
        _
    $region6: #{tpu_custom_call.1} parent=1 // loop_footer
      %s33 = sadd.s32 1, %s29
    $region7: #{tpu_custom_call.1} parent=1 // loop_footer_branch
      %28 = sbr.rel target = $region3
    $region8: #{tpu_custom_call.1} parent=1 // loop_exit
      _
    %2513 = vsyncpa [#allocation5], 1
    %s2514 = scalar_lea.sflag [#allocation5], 1
    %2515 = vsyncpa %s2514, 1
    %2516 = vsyncpa [#allocation8], 1
    %2517 = vsyncpa [#allocation6], 1
    %s2518 = scalar_lea.sflag [#allocation6], 1
    %2519 = vsyncpa %s2518, 1

</llo_original>
